<compile_context>
chip_gen: v7x
topology: tpu7x:2x2x1
jax: 0.10.0
libtpu: 0.0.40
codegen_flags: <defaults>
</compile_context>

<pallas_src>
import functools

import jax
import jax.numpy as jnp
from jax import lax
from jax.experimental import pallas as pl
from jax.experimental.pallas import tpu as pltpu


def _round_up(x, m):
    return (x + m - 1) // m * m


def _downblock_kernel(x_ref, *args, nb_conv, W2, Wp8, N, pre, band_start,
                      halo_hi_start, halo_hi_len):
    # x_ref : (Sp, Cin_p)  zero-padded, flattened (Hp x Wp8) pooled image (x.dtype)
    # args  : [w_0, b_0, ..., w_{nb-1}, b_{nb-1}, out_ref, upad]
    #   w_l : (9, ci_p, co_p)  x.dtype  (BN scale folded in, tap-major, lane-padded)
    #   b_l : (1, co_p)        f32      (conv bias + BN shift folded in, lane-padded)
    # out_ref : (N, Cout_p) x.dtype (pad columns / pad lanes stripped by wrapper)
    # upad    : (Sp, Cscr_p) x.dtype scratch holding the re-embedded activation
    params = args[: 2 * nb_conv]
    out_ref = args[2 * nb_conv]
    upad = args[2 * nb_conv + 1]

    # mask for the Wp8-grid padding columns (w >= W2) of an output slab
    q = lax.broadcasted_iota(jnp.int32, (N, 1), 0)
    col_ok = (q % Wp8) < W2

    if nb_conv > 1:
        # Zero only the halo rows of the scratch once per image; the interior
        # band [band_start, band_start + N) is fully overwritten every layer
        # (its pad columns are zeroed through col_ok), so no per-layer re-zero.
        upad[pl.ds(0, band_start), :] = jnp.zeros(
            (band_start, upad.shape[1]), upad.dtype)
        upad[pl.ds(halo_hi_start, halo_hi_len), :] = jnp.zeros(
            (halo_hi_len, upad.shape[1]), upad.dtype)

    cur = x_ref
    for l in range(nb_conv):
        w_ref = params[2 * l]
        b_ref = params[2 * l + 1]
        c_out = w_ref.shape[2]

        # 9 shifted, contiguous, static tap slices -> MXU matmuls, f32 accumulate.
        # TODO(synk): if the Mosaic dump shows vreg spills for very large
        #             N*ci tiles, bound live ranges with
        #             lax.fori_loop(..., unroll=True) or split N in halves.
        acc = jnp.zeros((N, c_out), dtype=jnp.float32)
        for t in range(9):
            kh, kw = divmod(t, 3)
            d = pre + kh * Wp8 + kw                  # static flattened tap offset
            tap = cur[pl.ds(d, N), :]                # native dtype -> MXU
            acc += jnp.dot(tap, w_ref[t], preferred_element_type=jnp.float32)

        y = jnp.maximum(acc + b_ref[...], 0.0)       # folded BN + bias + ReLU (f32)

        if l < nb_conv - 1:
            # zero the pad columns and re-embed into the padded (Hp, Wp8) grid
            # with one contiguous, sublane-aligned store.
            y = jnp.where(col_ok, y, 0.0)
            upad[pl.ds(band_start, N), :] = y.astype(upad.dtype)
            cur = upad
        else:
            # NOTE: pad columns / pad lanes are written un-masked; the wrapper
            # strips them — do not consume the raw kernel output directly.
            out_ref[...] = y.astype(out_ref.dtype)


def downblock_forward(x, params, *, eps=1e-5):
    """x: (B, C_in, H, W) NCHW. params: list (len nb_Conv) of dicts with keys
    'w' (C_out, C_in_l, 3, 3), 'b', 'gamma', 'beta', 'mean', 'var' (each (C_out,))."""
    B, C_in, H, W = x.shape
    assert H % 2 == 0 and W % 2 == 0
    nb_conv = len(params)
    assert nb_conv >= 1
    assert params[0]["w"].shape[1] == C_in
    for l in range(1, nb_conv):
        assert params[l]["w"].shape[1] == params[l - 1]["w"].shape[0]
    inter_co = {params[l]["w"].shape[0] for l in range(nb_conv - 1)}
    assert len(inter_co) <= 1, "intermediate channel widths must be uniform"

    cdtype = x.dtype
    itemsize = jnp.dtype(cdtype).itemsize
    sub = max(8, 32 // itemsize)          # sublane rows per vreg at this dtype

    H2, W2 = H // 2, W // 2
    Hp = H2 + 2
    Wp8 = _round_up(W2 + 2, 8)            # sublane-friendly padded row width
    pre = (-(Wp8 + 1)) % sub              # origin offset: aligns the band store
    band_start = pre + Wp8 + 1            # multiple of `sub`
    N = H2 * Wp8                          # output rows per image on (H2, Wp8) grid
    Sp = _round_up(pre + Hp * Wp8 + 2, sub)
    halo_hi_start = band_start + N
    halo_hi_len = Sp - halo_hi_start

    LANE = 128
    Cin_p = _round_up(C_in, LANE)
    C_out = params[-1]["w"].shape[0]
    Cout_p = _round_up(C_out, LANE)
    Cscr_p = _round_up(next(iter(inter_co)), LANE) if inter_co else Cout_p

    # ---- 2x2 max-pool (stride 2) + layout: lane-padded NHWC on a padded,
    #      origin-shifted, flattened (Hp*Wp8) grid  (plain JAX, see TODOs) ----
    p = x.reshape(B, C_in, H2, 2, W2, 2).max(axis=(3, 5))          # (B,C,H2,W2)
    p = jnp.transpose(p, (0, 2, 3, 1))                             # (B,H2,W2,C)
    p = jnp.pad(p, ((0, 0), (1, 1), (1, Wp8 - W2 - 1), (0, Cin_p - C_in)))
    p = p.reshape(B, Hp * Wp8, Cin_p)
    p = jnp.pad(p, ((0, 0), (pre, Sp - pre - Hp * Wp8), (0, 0)))   # (B,Sp,Cin_p)

    # ---- fold conv bias + inference BatchNorm into per-tap weights / bias ----
    kernel_args = [p]
    in_specs = [pl.BlockSpec((None, Sp, Cin_p), lambda b: (b, 0, 0))]
    flops = 0
    param_bytes = 0
    for layer in params:
        w = layer["w"].astype(jnp.float32)                         # (co,ci,3,3)
        co, ci = w.shape[0], w.shape[1]
        ci_p, co_p = _round_up(ci, LANE), _round_up(co, LANE)
        s = layer["gamma"].astype(jnp.float32) * lax.rsqrt(
            layer["var"].astype(jnp.float32) + eps)
        b_eff = (layer["b"].astype(jnp.float32)
                 - layer["mean"].astype(jnp.float32)) * s \
                + layer["beta"].astype(jnp.float32)
        w_eff = jnp.transpose(w * s[:, None, None, None], (2, 3, 1, 0))
        w_eff = w_eff.reshape(9, ci, co)
        w_eff = jnp.pad(w_eff, ((0, 0), (0, ci_p - ci), (0, co_p - co)))
        w_eff = w_eff.astype(cdtype)       # MXU operand dtype = activation dtype
        b_eff = jnp.pad(b_eff, (0, co_p - co)).reshape(1, co_p)    # stays f32
        kernel_args += [w_eff, b_eff]
        in_specs += [pl.BlockSpec((9, ci_p, co_p), lambda b: (0, 0, 0)),
                     pl.BlockSpec((1, co_p), lambda b: (0, 0))]
        flops += 2 * 9 * N * ci_p * co_p
        param_bytes += 9 * ci_p * co_p * itemsize + co_p * 4

    cost = pl.CostEstimate(
        flops=B * flops, transcendentals=0,
        bytes_accessed=B * (Sp * Cin_p + N * Cout_p) * itemsize + param_bytes)

    # ---- per-image VMEM budget -> explicit scoped-VMEM limit ----
    vmem_needed = (2 * Sp * Cin_p * itemsize            # input double-buffer
                   + 2 * N * Cout_p * itemsize          # output double-buffer
                   + Sp * Cscr_p * itemsize             # re-embed scratch
                   + param_bytes                        # resident folded weights
                   + 2 * N * max(Cout_p, Cscr_p) * 4)   # live f32 acc / y
    try:
        phys_vmem = pltpu.get_tpu_info().vmem_capacity_bytes
    except Exception:
        phys_vmem = 64 << 20                            # v7x-safe fallback
    vmem_limit = int(max(32 << 20, 1.25 * vmem_needed + (4 << 20)))
    vmem_limit = max(16 << 20, min(vmem_limit, phys_vmem - (8 << 20)))
    # TODO(synk): if a single padded image + scratch overflows v7x's 64 MiB,
    #             add a second (parallel) grid axis over H2 row tiles with a
    #             1-row halo instead of raising the limit further.

    kernel = functools.partial(
        _downblock_kernel, nb_conv=nb_conv, W2=W2, Wp8=Wp8, N=N, pre=pre,
        band_start=band_start, halo_hi_start=halo_hi_start,
        halo_hi_len=halo_hi_len)

    # TODO(synk): with B == 1 (or odd B) on v7x, add a second parallel grid
    #             axis (row tiles / channel blocks) so both TensorCores stay busy.
    out = pl.pallas_call(
        kernel,
        out_shape=jax.ShapeDtypeStruct((B, N, Cout_p), cdtype),
        grid=(B,),
        in_specs=in_specs,
        out_specs=pl.BlockSpec((None, N, Cout_p), lambda b: (b, 0, 0)),
        scratch_shapes=[pltpu.VMEM((Sp, Cscr_p), cdtype)],
        compiler_params=pltpu.CompilerParams(
            dimension_semantics=("parallel",),
            vmem_limit_bytes=vmem_limit),
        cost_estimate=cost,
    )(*kernel_args)

    # strip the Wp8-grid padding columns and the lane padding, return NCHW
    out = out.reshape(B, H2, Wp8, Cout_p)[:, :, :W2, :C_out]
    return jnp.transpose(out, (0, 3, 1, 2))                        # (B,C_out,H2,W2)


def _reference(x, params, eps=1e-5):
    B, C, H, W = x.shape
    out = x.astype(jnp.float32).reshape(B, C, H // 2, 2, W // 2, 2).max(axis=(3, 5))
    for layer in params:
        out = lax.conv_general_dilated(
            out, layer["w"].astype(jnp.float32),
            window_strides=(1, 1), padding=((1, 1), (1, 1)),
            dimension_numbers=("NCHW", "OIHW", "NCHW"),
            precision=lax.Precision.HIGHEST)
        out = out + layer["b"][None, :, None, None]
        inv = layer["gamma"] * lax.rsqrt(layer["var"] + eps)
        out = (out - layer["mean"][None, :, None, None]) * inv[None, :, None, None] \
              + layer["beta"][None, :, None, None]
        out = jnp.maximum(out, 0.0)
    return out


if __name__ == "__main__":
    key = jax.random.PRNGKey(0)
    B, C_in, C_out, H, W = 2, 4, 8, 16, 16
    nb_conv = 2

    keys = jax.random.split(key, 1 + 6 * nb_conv)
    x = jax.random.normal(keys[0], (B, C_in, H, W), dtype=jnp.float32)

    params = []
    ci = C_in
    idx = 1
    for _ in range(nb_conv):
        kw_, kb, kg, kbe, km, kv = keys[idx:idx + 6]
        idx += 6
        params.append(dict(
            w=jax.random.normal(kw_, (C_out, ci, 3, 3), jnp.float32) * 0.1,
            b=jax.random.normal(kb, (C_out,), jnp.float32) * 0.1,
            gamma=1.0 + 0.1 * jax.random.normal(kg, (C_out,), jnp.float32),
            beta=0.1 * jax.random.normal(kbe, (C_out,), jnp.float32),
            mean=0.1 * jax.random.normal(km, (C_out,), jnp.float32),
            var=1.0 + 0.5 * jax.random.uniform(kv, (C_out,), jnp.float32),
        ))
        ci = C_out

    # float32 path (tight tolerance)
    out = jax.block_until_ready(downblock_forward(x, params))
    ref = _reference(x, params)
    assert out.shape == ref.shape == (B, C_out, H // 2, W // 2)
    assert jnp.max(jnp.abs(out.astype(jnp.float32) - ref)) < 1e-4

    # bfloat16 path (bf16 MXU operands + bf16 scratch, f32 accumulate)
    x_bf = x.astype(jnp.bfloat16)
    out_bf = jax.block_until_ready(downblock_forward(x_bf, params))
    ref_bf = _reference(x_bf, params)
    assert out_bf.dtype == jnp.bfloat16
    assert jnp.max(jnp.abs(out_bf.astype(jnp.float32) - ref_bf)) < 0.3

    print("KERNEL_OK")
</pallas_src>

<mosaic_0001>
module attributes {stable_mosaic.version = 11 : i64} {
  func.func @_downblock_kernel(%arg0: i32, %arg1: memref<1x176x128xf32, #tpu.memory_space<vmem>>, %arg2: memref<9x128x128xf32, #tpu.memory_space<vmem>>, %arg3: memref<1x128xf32, #tpu.memory_space<vmem>>, %arg4: memref<9x128x128xf32, #tpu.memory_space<vmem>>, %arg5: memref<1x128xf32, #tpu.memory_space<vmem>>, %arg6: memref<1x128x128xf32, #tpu.memory_space<vmem>>, %arg7: memref<176x128xf32, #tpu.memory_space<vmem>>) attributes {dimension_semantics = [#tpu.dimension_semantics<parallel>], iteration_bounds = array<i64: 2>, scalar_prefetch = 0 : i64, scratch_operands = 1 : i64, tpu.core_type = #tpu.core_type<tc>, window_params = [{transform_indices = @transform_0, window_bounds = array<i64: 1, 176, 128>}, {pipeline_mode = #tpu.pipeline_mode<synchronous>, transform_indices = @transform_1, window_bounds = array<i64: 9, 128, 128>}, {pipeline_mode = #tpu.pipeline_mode<synchronous>, transform_indices = @transform_2, window_bounds = array<i64: 1, 128>}, {pipeline_mode = #tpu.pipeline_mode<synchronous>, transform_indices = @transform_3, window_bounds = array<i64: 9, 128, 128>}, {pipeline_mode = #tpu.pipeline_mode<synchronous>, transform_indices = @transform_4, window_bounds = array<i64: 1, 128>}, {transform_indices = @transform_5, window_bounds = array<i64: 1, 128, 128>}]} {
    %0 = tpu.iota {dimensions = array<i32: 0>} : vector<128x1xi32>
    %c16_i32 = arith.constant 16 : i32
    %c0_i32 = arith.constant 0 : i32
    %1 = arith.cmpi eq, %c16_i32, %c0_i32 : i32
    %c1_i32 = arith.constant 1 : i32
    %2 = arith.select %1, %c1_i32, %c16_i32 : i32
    %3 = vector.broadcast %2 : i32 to vector<128x1xi32>
    %4 = arith.remsi %0, %3 : vector<128x1xi32>
    %c0_i32_0 = arith.constant 0 : i32
    %5 = vector.broadcast %c0_i32_0 : i32 to vector<128x1xi32>
    %6 = arith.cmpi ne, %4, %5 : vector<128x1xi32>
    %c0_i32_1 = arith.constant 0 : i32
    %7 = vector.broadcast %c0_i32_1 : i32 to vector<128x1xi32>
    %8 = arith.cmpi slt, %4, %7 : vector<128x1xi32>
    %c0_i32_2 = arith.constant 0 : i32
    %9 = arith.cmpi slt, %2, %c0_i32_2 : i32
    %10 = vector.broadcast %9 : i1 to vector<128x1xi1>
    %11 = vector.broadcast %10 : vector<128x1xi1> to vector<128x1xi1>
    %12 = arith.xori %8, %11 : vector<128x1xi1>
    %13 = arith.andi %12, %6 : vector<128x1xi1>
    %14 = vector.broadcast %2 : i32 to vector<128x1xi32>
    %15 = arith.addi %4, %14 : vector<128x1xi32>
    %16 = arith.select %13, %15, %4 : vector<128x1xi1>, vector<128x1xi32>
    %c8_i32 = arith.constant 8 : i32
    %17 = vector.broadcast %c8_i32 : i32 to vector<128x1xi32>
    %18 = arith.cmpi slt, %16, %17 : vector<128x1xi32>
    %cst = arith.constant 0.000000e+00 : f32
    %19 = vector.broadcast %cst : f32 to vector<24x128xf32>
    %c0 = arith.constant 0 : index
    %c0_3 = arith.constant 0 : index
    %20 = vector.load %arg7[%c0, %c0_3] : memref<176x128xf32, #tpu.memory_space<vmem>>, vector<24x128xf32>
    tpu.vector_store %arg7[%c0, %c0_3], %19 {strides = array<i32>} : memref<176x128xf32, #tpu.memory_space<vmem>>, vector<24x128xf32>,
    %cst_4 = arith.constant 0.000000e+00 : f32
    %21 = vector.broadcast %cst_4 : f32 to vector<24x128xf32>
    %c152 = arith.constant 152 : index
    %c0_5 = arith.constant 0 : index
    %22 = vector.load %arg7[%c152, %c0_5] : memref<176x128xf32, #tpu.memory_space<vmem>>, vector<24x128xf32>
    tpu.vector_store %arg7[%c152, %c0_5], %21 {strides = array<i32>} : memref<176x128xf32, #tpu.memory_space<vmem>>, vector<24x128xf32>,
    %cst_6 = arith.constant 0.000000e+00 : f32
    %23 = vector.broadcast %cst_6 : f32 to vector<128x128xf32>
    %c0_7 = arith.constant 0 : index
    %c7 = arith.constant 7 : index
    %c0_8 = arith.constant 0 : index
    %24 = vector.load %arg1[%c0_7, %c7, %c0_8] : memref<1x176x128xf32, #tpu.memory_space<vmem>>, vector<1x128x128xf32>
    %25 = vector.shape_cast %24 : vector<1x128x128xf32> to vector<128x128xf32>
    %c0_9 = arith.constant 0 : index
    %c0_10 = arith.constant 0 : index
    %c0_11 = arith.constant 0 : index
    %26 = vector.load %arg2[%c0_9, %c0_10, %c0_11] : memref<9x128x128xf32, #tpu.memory_space<vmem>>, vector<1x128x128xf32>
    %27 = vector.shape_cast %26 : vector<1x128x128xf32> to vector<128x128xf32>
    %cst_12 = arith.constant dense<0.000000e+00> : vector<128x128xf32>
    %28 = tpu.matmul %25, %27, %cst_12 {dimension_numbers = #tpu.dot_dimension_numbers<[1], [0], [0], [1], [0, 0, 1, 1], [], []>} : vector<128x128xf32>, vector<128x128xf32>, vector<128x128xf32> -> vector<128x128xf32>
    %29 = arith.addf %23, %28 : vector<128x128xf32>
    %c0_13 = arith.constant 0 : index
    %c8 = arith.constant 8 : index
    %c0_14 = arith.constant 0 : index
    %30 = vector.load %arg1[%c0_13, %c8, %c0_14] : memref<1x176x128xf32, #tpu.memory_space<vmem>>, vector<1x128x128xf32>
    %31 = vector.shape_cast %30 : vector<1x128x128xf32> to vector<128x128xf32>
    %c1 = arith.constant 1 : index
    %c0_15 = arith.constant 0 : index
    %c0_16 = arith.constant 0 : index
    %32 = vector.load %arg2[%c1, %c0_15, %c0_16] : memref<9x128x128xf32, #tpu.memory_space<vmem>>, vector<1x128x128xf32>
    %33 = vector.shape_cast %32 : vector<1x128x128xf32> to vector<128x128xf32>
    %cst_17 = arith.constant dense<0.000000e+00> : vector<128x128xf32>
    %34 = tpu.matmul %31, %33, %cst_17 {dimension_numbers = #tpu.dot_dimension_numbers<[1], [0], [0], [1], [0, 0, 1, 1], [], []>} : vector<128x128xf32>, vector<128x128xf32>, vector<128x128xf32> -> vector<128x128xf32>
    %35 = arith.addf %29, %34 : vector<128x128xf32>
    %c0_18 = arith.constant 0 : index
    %c9 = arith.constant 9 : index
    %c0_19 = arith.constant 0 : index
    %36 = vector.load %arg1[%c0_18, %c9, %c0_19] : memref<1x176x128xf32, #tpu.memory_space<vmem>>, vector<1x128x128xf32>
    %37 = vector.shape_cast %36 : vector<1x128x128xf32> to vector<128x128xf32>
    %c2 = arith.constant 2 : index
    %c0_20 = arith.constant 0 : index
    %c0_21 = arith.constant 0 : index
    %38 = vector.load %arg2[%c2, %c0_20, %c0_21] : memref<9x128x128xf32, #tpu.memory_space<vmem>>, vector<1x128x128xf32>
    %39 = vector.shape_cast %38 : vector<1x128x128xf32> to vector<128x128xf32>
    %cst_22 = arith.constant dense<0.000000e+00> : vector<128x128xf32>
    %40 = tpu.matmul %37, %39, %cst_22 {dimension_numbers = #tpu.dot_dimension_numbers<[1], [0], [0], [1], [0, 0, 1, 1], [], []>} : vector<128x128xf32>, vector<128x128xf32>, vector<128x128xf32> -> vector<128x128xf32>
    %41 = arith.addf %35, %40 : vector<128x128xf32>
    %c0_23 = arith.constant 0 : index
    %c23 = arith.constant 23 : index
    %c0_24 = arith.constant 0 : index
    %42 = vector.load %arg1[%c0_23, %c23, %c0_24] : memref<1x176x128xf32, #tpu.memory_space<vmem>>, vector<1x128x128xf32>
    %43 = vector.shape_cast %42 : vector<1x128x128xf32> to vector<128x128xf32>
    %c3 = arith.constant 3 : index
    %c0_25 = arith.constant 0 : index
    %c0_26 = arith.constant 0 : index
    %44 = vector.load %arg2[%c3, %c0_25, %c0_26] : memref<9x128x128xf32, #tpu.memory_space<vmem>>, vector<1x128x128xf32>
    %45 = vector.shape_cast %44 : vector<1x128x128xf32> to vector<128x128xf32>
    %cst_27 = arith.constant dense<0.000000e+00> : vector<128x128xf32>
    %46 = tpu.matmul %43, %45, %cst_27 {dimension_numbers = #tpu.dot_dimension_numbers<[1], [0], [0], [1], [0, 0, 1, 1], [], []>} : vector<128x128xf32>, vector<128x128xf32>, vector<128x128xf32> -> vector<128x128xf32>
    %47 = arith.addf %41, %46 : vector<128x128xf32>
    %c0_28 = arith.constant 0 : index
    %c24 = arith.constant 24 : index
    %c0_29 = arith.constant 0 : index
    %48 = vector.load %arg1[%c0_28, %c24, %c0_29] : memref<1x176x128xf32, #tpu.memory_space<vmem>>, vector<1x128x128xf32>
    %49 = vector.shape_cast %48 : vector<1x128x128xf32> to vector<128x128xf32>
    %c4 = arith.constant 4 : index
    %c0_30 = arith.constant 0 : index
    %c0_31 = arith.constant 0 : index
    %50 = vector.load %arg2[%c4, %c0_30, %c0_31] : memref<9x128x128xf32, #tpu.memory_space<vmem>>, vector<1x128x128xf32>
    %51 = vector.shape_cast %50 : vector<1x128x128xf32> to vector<128x128xf32>
    %cst_32 = arith.constant dense<0.000000e+00> : vector<128x128xf32>
    %52 = tpu.matmul %49, %51, %cst_32 {dimension_numbers = #tpu.dot_dimension_numbers<[1], [0], [0], [1], [0, 0, 1, 1], [], []>} : vector<128x128xf32>, vector<128x128xf32>, vector<128x128xf32> -> vector<128x128xf32>
    %53 = arith.addf %47, %52 : vector<128x128xf32>
    %c0_33 = arith.constant 0 : index
    %c25 = arith.constant 25 : index
    %c0_34 = arith.constant 0 : index
    %54 = vector.load %arg1[%c0_33, %c25, %c0_34] : memref<1x176x128xf32, #tpu.memory_space<vmem>>, vector<1x128x128xf32>
    %55 = vector.shape_cast %54 : vector<1x128x128xf32> to vector<128x128xf32>
    %c5 = arith.constant 5 : index
    %c0_35 = arith.constant 0 : index
    %c0_36 = arith.constant 0 : index
    %56 = vector.load %arg2[%c5, %c0_35, %c0_36] : memref<9x128x128xf32, #tpu.memory_space<vmem>>, vector<1x128x128xf32>
    %57 = vector.shape_cast %56 : vector<1x128x128xf32> to vector<128x128xf32>
    %cst_37 = arith.constant dense<0.000000e+00> : vector<128x128xf32>
    %58 = tpu.matmul %55, %57, %cst_37 {dimension_numbers = #tpu.dot_dimension_numbers<[1], [0], [0], [1], [0, 0, 1, 1], [], []>} : vector<128x128xf32>, vector<128x128xf32>, vector<128x128xf32> -> vector<128x128xf32>
    %59 = arith.addf %53, %58 : vector<128x128xf32>
    %c0_38 = arith.constant 0 : index
    %c39 = arith.constant 39 : index
    %c0_39 = arith.constant 0 : index
    %60 = vector.load %arg1[%c0_38, %c39, %c0_39] : memref<1x176x128xf32, #tpu.memory_space<vmem>>, vector<1x128x128xf32>
    %61 = vector.shape_cast %60 : vector<1x128x128xf32> to vector<128x128xf32>
    %c6 = arith.constant 6 : index
    %c0_40 = arith.constant 0 : index
    %c0_41 = arith.constant 0 : index
    %62 = vector.load %arg2[%c6, %c0_40, %c0_41] : memref<9x128x128xf32, #tpu.memory_space<vmem>>, vector<1x128x128xf32>
    %63 = vector.shape_cast %62 : vector<1x128x128xf32> to vector<128x128xf32>
    %cst_42 = arith.constant dense<0.000000e+00> : vector<128x128xf32>
    %64 = tpu.matmul %61, %63, %cst_42 {dimension_numbers = #tpu.dot_dimension_numbers<[1], [0], [0], [1], [0, 0, 1, 1], [], []>} : vector<128x128xf32>, vector<128x128xf32>, vector<128x128xf32> -> vector<128x128xf32>
    %65 = arith.addf %59, %64 : vector<128x128xf32>
    %c0_43 = arith.constant 0 : index
    %c40 = arith.constant 40 : index
    %c0_44 = arith.constant 0 : index
    %66 = vector.load %arg1[%c0_43, %c40, %c0_44] : memref<1x176x128xf32, #tpu.memory_space<vmem>>, vector<1x128x128xf32>
    %67 = vector.shape_cast %66 : vector<1x128x128xf32> to vector<128x128xf32>
    %c7_45 = arith.constant 7 : index
    %c0_46 = arith.constant 0 : index
    %c0_47 = arith.constant 0 : index
    %68 = vector.load %arg2[%c7_45, %c0_46, %c0_47] : memref<9x128x128xf32, #tpu.memory_space<vmem>>, vector<1x128x128xf32>
    %69 = vector.shape_cast %68 : vector<1x128x128xf32> to vector<128x128xf32>
    %cst_48 = arith.constant dense<0.000000e+00> : vector<128x128xf32>
    %70 = tpu.matmul %67, %69, %cst_48 {dimension_numbers = #tpu.dot_dimension_numbers<[1], [0], [0], [1], [0, 0, 1, 1], [], []>} : vector<128x128xf32>, vector<128x128xf32>, vector<128x128xf32> -> vector<128x128xf32>
    %71 = arith.addf %65, %70 : vector<128x128xf32>
    %c0_49 = arith.constant 0 : index
    %c41 = arith.constant 41 : index
    %c0_50 = arith.constant 0 : index
    %72 = vector.load %arg1[%c0_49, %c41, %c0_50] : memref<1x176x128xf32, #tpu.memory_space<vmem>>, vector<1x128x128xf32>
    %73 = vector.shape_cast %72 : vector<1x128x128xf32> to vector<128x128xf32>
    %c8_51 = arith.constant 8 : index
    %c0_52 = arith.constant 0 : index
    %c0_53 = arith.constant 0 : index
    %74 = vector.load %arg2[%c8_51, %c0_52, %c0_53] : memref<9x128x128xf32, #tpu.memory_space<vmem>>, vector<1x128x128xf32>
    %75 = vector.shape_cast %74 : vector<1x128x128xf32> to vector<128x128xf32>
    %cst_54 = arith.constant dense<0.000000e+00> : vector<128x128xf32>
    %76 = tpu.matmul %73, %75, %cst_54 {dimension_numbers = #tpu.dot_dimension_numbers<[1], [0], [0], [1], [0, 0, 1, 1], [], []>} : vector<128x128xf32>, vector<128x128xf32>, vector<128x128xf32> -> vector<128x128xf32>
    %77 = arith.addf %71, %76 : vector<128x128xf32>
    %c0_55 = arith.constant 0 : index
    %c0_56 = arith.constant 0 : index
    %78 = vector.load %arg3[%c0_55, %c0_56] : memref<1x128xf32, #tpu.memory_space<vmem>>, vector<1x128xf32>
    %79 = vector.broadcast %78 : vector<1x128xf32> to vector<128x128xf32>
    %80 = arith.addf %77, %79 : vector<128x128xf32>
    %cst_57 = arith.constant 0.000000e+00 : f32
    %81 = vector.broadcast %cst_57 : f32 to vector<128x128xf32>
    %82 = arith.maximumf %80, %81 : vector<128x128xf32>
    %cst_58 = arith.constant 0.000000e+00 : f32
    %83 = vector.shape_cast %18 : vector<128x1xi1> to vector<128x1xi1>
    %84 = vector.broadcast %83 : vector<128x1xi1> to vector<128x128xi1>
    %85 = vector.broadcast %cst_58 : f32 to vector<128x128xf32>
    %86 = arith.select %84, %82, %85 : vector<128x128xi1>, vector<128x128xf32>
    %c24_59 = arith.constant 24 : index
    %c0_60 = arith.constant 0 : index
    %87 = vector.load %arg7[%c24_59, %c0_60] : memref<176x128xf32, #tpu.memory_space<vmem>>, vector<128x128xf32>
    tpu.vector_store %arg7[%c24_59, %c0_60], %86 {strides = array<i32>} : memref<176x128xf32, #tpu.memory_space<vmem>>, vector<128x128xf32>,
    %cst_61 = arith.constant 0.000000e+00 : f32
    %88 = vector.broadcast %cst_61 : f32 to vector<128x128xf32>
    %c7_62 = arith.constant 7 : index
    %c0_63 = arith.constant 0 : index
    %89 = vector.load %arg7[%c7_62, %c0_63] : memref<176x128xf32, #tpu.memory_space<vmem>>, vector<128x128xf32>
    %c0_64 = arith.constant 0 : index
    %c0_65 = arith.constant 0 : index
    %c0_66 = arith.constant 0 : index
    %90 = vector.load %arg4[%c0_64, %c0_65, %c0_66] : memref<9x128x128xf32, #tpu.memory_space<vmem>>, vector<1x128x128xf32>
    %91 = vector.shape_cast %90 : vector<1x128x128xf32> to vector<128x128xf32>
    %cst_67 = arith.constant dense<0.000000e+00> : vector<128x128xf32>
    %92 = tpu.matmul %89, %91, %cst_67 {dimension_numbers = #tpu.dot_dimension_numbers<[1], [0], [0], [1], [0, 0, 1, 1], [], []>} : vector<128x128xf32>, vector<128x128xf32>, vector<128x128xf32> -> vector<128x128xf32>
    %93 = arith.addf %88, %92 : vector<128x128xf32>
    %c8_68 = arith.constant 8 : index
    %c0_69 = arith.constant 0 : index
    %94 = vector.load %arg7[%c8_68, %c0_69] : memref<176x128xf32, #tpu.memory_space<vmem>>, vector<128x128xf32>
    %c1_70 = arith.constant 1 : index
    %c0_71 = arith.constant 0 : index
    %c0_72 = arith.constant 0 : index
    %95 = vector.load %arg4[%c1_70, %c0_71, %c0_72] : memref<9x128x128xf32, #tpu.memory_space<vmem>>, vector<1x128x128xf32>
    %96 = vector.shape_cast %95 : vector<1x128x128xf32> to vector<128x128xf32>
    %cst_73 = arith.constant dense<0.000000e+00> : vector<128x128xf32>
    %97 = tpu.matmul %94, %96, %cst_73 {dimension_numbers = #tpu.dot_dimension_numbers<[1], [0], [0], [1], [0, 0, 1, 1], [], []>} : vector<128x128xf32>, vector<128x128xf32>, vector<128x128xf32> -> vector<128x128xf32>
    %98 = arith.addf %93, %97 : vector<128x128xf32>
    %c9_74 = arith.constant 9 : index
    %c0_75 = arith.constant 0 : index
    %99 = vector.load %arg7[%c9_74, %c0_75] : memref<176x128xf32, #tpu.memory_space<vmem>>, vector<128x128xf32>
    %c2_76 = arith.constant 2 : index
    %c0_77 = arith.constant 0 : index
    %c0_78 = arith.constant 0 : index
    %100 = vector.load %arg4[%c2_76, %c0_77, %c0_78] : memref<9x128x128xf32, #tpu.memory_space<vmem>>, vector<1x128x128xf32>
    %101 = vector.shape_cast %100 : vector<1x128x128xf32> to vector<128x128xf32>
    %cst_79 = arith.constant dense<0.000000e+00> : vector<128x128xf32>
    %102 = tpu.matmul %99, %101, %cst_79 {dimension_numbers = #tpu.dot_dimension_numbers<[1], [0], [0], [1], [0, 0, 1, 1], [], []>} : vector<128x128xf32>, vector<128x128xf32>, vector<128x128xf32> -> vector<128x128xf32>
    %103 = arith.addf %98, %102 : vector<128x128xf32>
    %c23_80 = arith.constant 23 : index
    %c0_81 = arith.constant 0 : index
    %104 = vector.load %arg7[%c23_80, %c0_81] : memref<176x128xf32, #tpu.memory_space<vmem>>, vector<128x128xf32>
    %c3_82 = arith.constant 3 : index
    %c0_83 = arith.constant 0 : index
    %c0_84 = arith.constant 0 : index
    %105 = vector.load %arg4[%c3_82, %c0_83, %c0_84] : memref<9x128x128xf32, #tpu.memory_space<vmem>>, vector<1x128x128xf32>
    %106 = vector.shape_cast %105 : vector<1x128x128xf32> to vector<128x128xf32>
    %cst_85 = arith.constant dense<0.000000e+00> : vector<128x128xf32>
    %107 = tpu.matmul %104, %106, %cst_85 {dimension_numbers = #tpu.dot_dimension_numbers<[1], [0], [0], [1], [0, 0, 1, 1], [], []>} : vector<128x128xf32>, vector<128x128xf32>, vector<128x128xf32> -> vector<128x128xf32>
    %108 = arith.addf %103, %107 : vector<128x128xf32>
    %c24_86 = arith.constant 24 : index
    %c0_87 = arith.constant 0 : index
    %109 = vector.load %arg7[%c24_86, %c0_87] : memref<176x128xf32, #tpu.memory_space<vmem>>, vector<128x128xf32>
    %c4_88 = arith.constant 4 : index
    %c0_89 = arith.constant 0 : index
    %c0_90 = arith.constant 0 : index
    %110 = vector.load %arg4[%c4_88, %c0_89, %c0_90] : memref<9x128x128xf32, #tpu.memory_space<vmem>>, vector<1x128x128xf32>
    %111 = vector.shape_cast %110 : vector<1x128x128xf32> to vector<128x128xf32>
    %cst_91 = arith.constant dense<0.000000e+00> : vector<128x128xf32>
    %112 = tpu.matmul %109, %111, %cst_91 {dimension_numbers = #tpu.dot_dimension_numbers<[1], [0], [0], [1], [0, 0, 1, 1], [], []>} : vector<128x128xf32>, vector<128x128xf32>, vector<128x128xf32> -> vector<128x128xf32>
    %113 = arith.addf %108, %112 : vector<128x128xf32>
    %c25_92 = arith.constant 25 : index
    %c0_93 = arith.constant 0 : index
    %114 = vector.load %arg7[%c25_92, %c0_93] : memref<176x128xf32, #tpu.memory_space<vmem>>, vector<128x128xf32>
    %c5_94 = arith.constant 5 : index
    %c0_95 = arith.constant 0 : index
    %c0_96 = arith.constant 0 : index
    %115 = vector.load %arg4[%c5_94, %c0_95, %c0_96] : memref<9x128x128xf32, #tpu.memory_space<vmem>>, vector<1x128x128xf32>
    %116 = vector.shape_cast %115 : vector<1x128x128xf32> to vector<128x128xf32>
    %cst_97 = arith.constant dense<0.000000e+00> : vector<128x128xf32>
    %117 = tpu.matmul %114, %116, %cst_97 {dimension_numbers = #tpu.dot_dimension_numbers<[1], [0], [0], [1], [0, 0, 1, 1], [], []>} : vector<128x128xf32>, vector<128x128xf32>, vector<128x128xf32> -> vector<128x128xf32>
    %118 = arith.addf %113, %117 : vector<128x128xf32>
    %c39_98 = arith.constant 39 : index
    %c0_99 = arith.constant 0 : index
    %119 = vector.load %arg7[%c39_98, %c0_99] : memref<176x128xf32, #tpu.memory_space<vmem>>, vector<128x128xf32>
    %c6_100 = arith.constant 6 : index
    %c0_101 = arith.constant 0 : index
    %c0_102 = arith.constant 0 : index
    %120 = vector.load %arg4[%c6_100, %c0_101, %c0_102] : memref<9x128x128xf32, #tpu.memory_space<vmem>>, vector<1x128x128xf32>
    %121 = vector.shape_cast %120 : vector<1x128x128xf32> to vector<128x128xf32>
    %cst_103 = arith.constant dense<0.000000e+00> : vector<128x128xf32>
    %122 = tpu.matmul %119, %121, %cst_103 {dimension_numbers = #tpu.dot_dimension_numbers<[1], [0], [0], [1], [0, 0, 1, 1], [], []>} : vector<128x128xf32>, vector<128x128xf32>, vector<128x128xf32> -> vector<128x128xf32>
    %123 = arith.addf %118, %122 : vector<128x128xf32>
    %c40_104 = arith.constant 40 : index
    %c0_105 = arith.constant 0 : index
    %124 = vector.load %arg7[%c40_104, %c0_105] : memref<176x128xf32, #tpu.memory_space<vmem>>, vector<128x128xf32>
    %c7_106 = arith.constant 7 : index
    %c0_107 = arith.constant 0 : index
    %c0_108 = arith.constant 0 : index
    %125 = vector.load %arg4[%c7_106, %c0_107, %c0_108] : memref<9x128x128xf32, #tpu.memory_space<vmem>>, vector<1x128x128xf32>
    %126 = vector.shape_cast %125 : vector<1x128x128xf32> to vector<128x128xf32>
    %cst_109 = arith.constant dense<0.000000e+00> : vector<128x128xf32>
    %127 = tpu.matmul %124, %126, %cst_109 {dimension_numbers = #tpu.dot_dimension_numbers<[1], [0], [0], [1], [0, 0, 1, 1], [], []>} : vector<128x128xf32>, vector<128x128xf32>, vector<128x128xf32> -> vector<128x128xf32>
    %128 = arith.addf %123, %127 : vector<128x128xf32>
    %c41_110 = arith.constant 41 : index
    %c0_111 = arith.constant 0 : index
    %129 = vector.load %arg7[%c41_110, %c0_111] : memref<176x128xf32, #tpu.memory_space<vmem>>, vector<128x128xf32>
    %c8_112 = arith.constant 8 : index
    %c0_113 = arith.constant 0 : index
    %c0_114 = arith.constant 0 : index
    %130 = vector.load %arg4[%c8_112, %c0_113, %c0_114] : memref<9x128x128xf32, #tpu.memory_space<vmem>>, vector<1x128x128xf32>
    %131 = vector.shape_cast %130 : vector<1x128x128xf32> to vector<128x128xf32>
    %cst_115 = arith.constant dense<0.000000e+00> : vector<128x128xf32>
    %132 = tpu.matmul %129, %131, %cst_115 {dimension_numbers = #tpu.dot_dimension_numbers<[1], [0], [0], [1], [0, 0, 1, 1], [], []>} : vector<128x128xf32>, vector<128x128xf32>, vector<128x128xf32> -> vector<128x128xf32>
    %133 = arith.addf %128, %132 : vector<128x128xf32>
    %c0_116 = arith.constant 0 : index
    %c0_117 = arith.constant 0 : index
    %134 = vector.load %arg5[%c0_116, %c0_117] : memref<1x128xf32, #tpu.memory_space<vmem>>, vector<1x128xf32>
    %135 = vector.broadcast %134 : vector<1x128xf32> to vector<128x128xf32>
    %136 = arith.addf %133, %135 : vector<128x128xf32>
    %cst_118 = arith.constant 0.000000e+00 : f32
    %137 = vector.broadcast %cst_118 : f32 to vector<128x128xf32>
    %138 = arith.maximumf %136, %137 : vector<128x128xf32>
    %c0_119 = arith.constant 0 : index
    %c0_120 = arith.constant 0 : index
    %c0_121 = arith.constant 0 : index
    %139 = vector.load %arg6[%c0_119, %c0_120, %c0_121] : memref<1x128x128xf32, #tpu.memory_space<vmem>>, vector<1x128x128xf32>
    %140 = vector.shape_cast %139 : vector<1x128x128xf32> to vector<128x128xf32>
    %141 = vector.shape_cast %138 : vector<128x128xf32> to vector<1x128x128xf32>
    tpu.vector_store %arg6[%c0_119, %c0_120, %c0_121], %141 {strides = array<i32>} : memref<1x128x128xf32, #tpu.memory_space<vmem>>, vector<1x128x128xf32>,
    return
  }
  func.func @transform_0(%arg0: i32) -> (i32, i32, i32) {
    %c0_i32 = arith.constant 0 : i32
    %c0_i32_0 = arith.constant 0 : i32
    %c0_i32_1 = arith.constant 0 : i32
    return %arg0, %c0_i32, %c0_i32_0 : i32, i32, i32
  }
  func.func @transform_1(%arg0: i32) -> (i32, i32, i32) {
    %c0_i32 = arith.constant 0 : i32
    %c0_i32_0 = arith.constant 0 : i32
    %c0_i32_1 = arith.constant 0 : i32
    %c0_i32_2 = arith.constant 0 : i32
    return %c0_i32, %c0_i32_0, %c0_i32_1 : i32, i32, i32
  }
  func.func @transform_2(%arg0: i32) -> (i32, i32) {
    %c0_i32 = arith.constant 0 : i32
    %c0_i32_0 = arith.constant 0 : i32
    %c0_i32_1 = arith.constant 0 : i32
    return %c0_i32, %c0_i32_0 : i32, i32
  }
  func.func @transform_3(%arg0: i32) -> (i32, i32, i32) {
    %c0_i32 = arith.constant 0 : i32
    %c0_i32_0 = arith.constant 0 : i32
    %c0_i32_1 = arith.constant 0 : i32
    %c0_i32_2 = arith.constant 0 : i32
    return %c0_i32, %c0_i32_0, %c0_i32_1 : i32, i32, i32
  }
  func.func @transform_4(%arg0: i32) -> (i32, i32) {
    %c0_i32 = arith.constant 0 : i32
    %c0_i32_0 = arith.constant 0 : i32
    %c0_i32_1 = arith.constant 0 : i32
    return %c0_i32, %c0_i32_0 : i32, i32
  }
  func.func @transform_5(%arg0: i32) -> (i32, i32, i32) {
    %c0_i32 = arith.constant 0 : i32
    %c0_i32_0 = arith.constant 0 : i32
    %c0_i32_1 = arith.constant 0 : i32
    return %arg0, %c0_i32, %c0_i32_0 : i32, i32, i32
  }
}

</mosaic_0001>

<llo_original>
// kernel: tpu_custom_call.1
$region0: #{tpu_custom_call.1}
  #allocation0 [shape = 'u32[]', space=smem, size = 0x4, offset = 0x4, fixed_abs, tag = 'smem constant byte address 0x4 - core index']
  #allocation1 [shape = 'u32[144,128]{1,0:T(1,128)}', space=vmem, size = 0x12000, scoped, tag = 'internal scratch']
  #allocation2 [shape = 'f32[176,128]{1,0:T(8,128)}', space=vmem, size = 0x16000, scoped, tag = 'scratch operand']
  %s0 = inlined_call_operand.hbm [shape: f32[2,176,128], index: 0, kind: input, shape index: {}]
  %s1 = inlined_call_operand.hbm [shape: f32[9,128,128], index: 1, kind: input, shape index: {}]
  %s2 = inlined_call_operand.vmem [shape: f32[1,128], index: 2, kind: input, shape index: {}]
  %s3 = inlined_call_operand.hbm [shape: f32[9,128,128], index: 3, kind: input, shape index: {}]
  %s4 = inlined_call_operand.vmem [shape: f32[1,128], index: 4, kind: input, shape index: {}]
  %s5 = inlined_call_operand.hbm [shape: f32[2,128,128], index: 5, kind: output, shape index: {}]
  %s6 = sld [smem:[#allocation0]]
  $region65: #{tpu_custom_call.1} parent=0
    _
  %s8 = ssub.s32 1, %s6
  %s9 = scalar_select 0, %s8, %s6
  $region1: #{tpu_custom_call.1} parent=0
    #allocation3 [shape = 'u8[180224]{0}', space=vmem, size = 0x2c000, scoped, tag = 'input window, operand 0']
    #allocation4 [shape = 's32[2]{0}', space=sflag, size = 0x8, scoped, tag = 'scoped memory for tpu_custom_call.1']
    #allocation5 [shape = 's32[2]{0}', space=sflag, size = 0x8, scoped, tag = 'scoped memory for tpu_custom_call.1']
    #allocation6 [shape = 'u8[589824]{0}', space=vmem, size = 0x90000, scoped, tag = 'input window, operand 1, single buffered']
    #allocation7 [shape = 's32[1]{0}', space=sflag, size = 0x4, scoped, tag = 'scoped memory for tpu_custom_call.1']
    #allocation8 [shape = 'u8[589824]{0}', space=vmem, size = 0x90000, scoped, tag = 'input window, operand 3, single buffered']
    #allocation9 [shape = 'u8[131072]{0}', space=vmem, size = 0x20000, scoped, tag = 'output window, operand 0']
    %10 = vsyncpa [#allocation4], 0
    %s11 = scalar_lea.sflag [#allocation4], 1
    %12 = vsyncpa %s11, 0
    %13 = vsyncpa [#allocation7], 0
    %14 = vsyncpa [#allocation5], 0
    %s15 = scalar_lea.sflag [#allocation5], 1
    %16 = vsyncpa %s15, 0
    loop: start=0, step=1, limit=4
    $region2: #{tpu_custom_call.1} parent=1 // loop_pre_header
      _
    $region3: #{tpu_custom_call.1} parent=1 // loop_header
      %s18 = sphi 0, %s22
      %p19 = scmp.ge.s32.totalorder %s18, 4
      %s28 = sphi 0, %s30
      %s31 = sphi 0, %s28
      %s32 = sphi 0, %s31
      %s48 = sphi 0, %s32
      %s52 = sphi 0, %s52
      %s54 = sphi 0, %s52
      %s55 = sphi 0, %s54
      %s69 = sphi 0, %s55
      %s73 = sphi 0, %s73
      %s75 = sphi 0, %s73
      %s76 = sphi 0, %s75
      %s90 = sphi 0, %s76
      %s94 = sphi 0, %s94
      %s96 = sphi 0, %s94
      %s97 = sphi 0, %s96
      %s111 = sphi 0, %s97
      %s115 = sphi 0, %s115
      %s117 = sphi 0, %s115
      %s118 = sphi 0, %s117
      %s132 = sphi 0, %s118
      %s138 = sphi 0, %s140
      %s141 = sphi 0, %s138
      %s142 = sphi 0, %s141
      %s158 = sphi 0, %s142
    $region4: #{tpu_custom_call.1} parent=1 // loop_header_branch
      %21 = sbr.rel (%p19) target = $region8
    $region5: #{tpu_custom_call.1} parent=1 // loop_body
      %s23 = ssub.s32 %s18, 1
      %s24 = ssub.s32 %s18, 2
      %s25 = sadd.s32 %s18, 1
      %s26 = ssub.s32 %s18, %s25
      %p27 = scmp.eq.s32.totalorder %s26, 0
      %s29 = sadd.s32 %s28, 1
      %s30 = scalar_select %p27, %s28, %s29
      %p33 = pneg %p27
      %p34 = scmp.eq.s32.totalorder %s18, 1
      %p35 = por %p33, %p34
      %p36 = scmp.ne.s32.totalorder %s28, %s31
      %p37 = scmp.eq.s32.totalorder %s18, 0
      %p38 = por %p36, %p37
      %p39 = scmp.ne.s32.totalorder %s28, %s31
      %p40 = scmp.eq.s32.totalorder %s23, 1
      %p41 = por %p39, %p40
      %p42 = scmp.ne.s32.totalorder %s31, %s32
      %p43 = scmp.eq.s32.totalorder %s23, 0
      %p44 = por %p42, %p43
      %p45 = scmp.ne.s32.totalorder %s31, %s32
      %p46 = scmp.eq.s32.totalorder %s24, 1
      %p47 = por %p45, %p46
      %p49 = scmp.ne.s32.totalorder %s32, %s48
      %p50 = scmp.eq.s32.totalorder %s24, 0
      %p51 = por %p49, %p50
      %s53 = sadd.s32 %s52, 1
      %p56 = scmp.eq.s32.totalorder %s18, 1
      %p57 = scmp.ne.s32.totalorder %s52, %s54
      %p58 = scmp.eq.s32.totalorder %s18, 0
      %p59 = por %p57, %p58
      %p60 = scmp.ne.s32.totalorder %s52, %s54
      %p61 = scmp.eq.s32.totalorder %s23, 1
      %p62 = por %p60, %p61
      %p63 = scmp.ne.s32.totalorder %s54, %s55
      %p64 = scmp.eq.s32.totalorder %s23, 0
      %p65 = por %p63, %p64
      %p66 = scmp.ne.s32.totalorder %s54, %s55
      %p67 = scmp.eq.s32.totalorder %s24, 1
      %p68 = por %p66, %p67
      %p70 = scmp.ne.s32.totalorder %s55, %s69
      %p71 = scmp.eq.s32.totalorder %s24, 0
      %p72 = por %p70, %p71
      %s74 = sadd.s32 %s73, 1
      %p77 = scmp.eq.s32.totalorder %s18, 1
      %p78 = scmp.ne.s32.totalorder %s73, %s75
      %p79 = scmp.eq.s32.totalorder %s18, 0
      %p80 = por %p78, %p79
      %p81 = scmp.ne.s32.totalorder %s73, %s75
      %p82 = scmp.eq.s32.totalorder %s23, 1
      %p83 = por %p81, %p82
      %p84 = scmp.ne.s32.totalorder %s75, %s76
      %p85 = scmp.eq.s32.totalorder %s23, 0
      %p86 = por %p84, %p85
      %p87 = scmp.ne.s32.totalorder %s75, %s76
      %p88 = scmp.eq.s32.totalorder %s24, 1
      %p89 = por %p87, %p88
      %p91 = scmp.ne.s32.totalorder %s76, %s90
      %p92 = scmp.eq.s32.totalorder %s24, 0
      %p93 = por %p91, %p92
      %s95 = sadd.s32 %s94, 1
      %p98 = scmp.eq.s32.totalorder %s18, 1
      %p99 = scmp.ne.s32.totalorder %s94, %s96
      %p100 = scmp.eq.s32.totalorder %s18, 0
      %p101 = por %p99, %p100
      %p102 = scmp.ne.s32.totalorder %s94, %s96
      %p103 = scmp.eq.s32.totalorder %s23, 1
      %p104 = por %p102, %p103
      %p105 = scmp.ne.s32.totalorder %s96, %s97
      %p106 = scmp.eq.s32.totalorder %s23, 0
      %p107 = por %p105, %p106
      %p108 = scmp.ne.s32.totalorder %s96, %s97
      %p109 = scmp.eq.s32.totalorder %s24, 1
      %p110 = por %p108, %p109
      %p112 = scmp.ne.s32.totalorder %s97, %s111
      %p113 = scmp.eq.s32.totalorder %s24, 0
      %p114 = por %p112, %p113
      %s116 = sadd.s32 %s115, 1
      %p119 = scmp.eq.s32.totalorder %s18, 1
      %p120 = scmp.ne.s32.totalorder %s115, %s117
      %p121 = scmp.eq.s32.totalorder %s18, 0
      %p122 = por %p120, %p121
      %p123 = scmp.ne.s32.totalorder %s115, %s117
      %p124 = scmp.eq.s32.totalorder %s23, 1
      %p125 = por %p123, %p124
      %p126 = scmp.ne.s32.totalorder %s117, %s118
      %p127 = scmp.eq.s32.totalorder %s23, 0
      %p128 = por %p126, %p127
      %p129 = scmp.ne.s32.totalorder %s117, %s118
      %p130 = scmp.eq.s32.totalorder %s24, 1
      %p131 = por %p129, %p130
      %p133 = scmp.ne.s32.totalorder %s118, %s132
      %p134 = scmp.eq.s32.totalorder %s24, 0
      %p135 = por %p133, %p134
      %s136 = ssub.s32 %s18, %s25
      %p137 = scmp.eq.s32.totalorder %s136, 0
      %s139 = sadd.s32 %s138, 1
      %s140 = scalar_select %p137, %s138, %s139
      %p143 = pneg %p137
      %p144 = scmp.eq.s32.totalorder %s18, 1
      %p145 = por %p143, %p144
      %p146 = scmp.ne.s32.totalorder %s138, %s141
      %p147 = scmp.eq.s32.totalorder %s18, 0
      %p148 = por %p146, %p147
      %p149 = scmp.ne.s32.totalorder %s138, %s141
      %p150 = scmp.eq.s32.totalorder %s23, 1
      %p151 = por %p149, %p150
      %p152 = scmp.ne.s32.totalorder %s141, %s142
      %p153 = scmp.eq.s32.totalorder %s23, 0
      %p154 = por %p152, %p153
      %p155 = scmp.ne.s32.totalorder %s141, %s142
      %p156 = scmp.eq.s32.totalorder %s24, 1
      %p157 = por %p155, %p156
      %p159 = scmp.ne.s32.totalorder %s142, %s158
      %p160 = scmp.eq.s32.totalorder %s24, 0
      %p161 = por %p159, %p160
      %p162 = scmp.le.s32.totalorder 1, %s18
      %p163 = scmp.lt.s32.totalorder %s18, 3
      %p164 = pnand %p162, %p163
      %p165 = pneg %p164
      // Predicated region
      $region9: #{tpu_custom_call.1} parent=5 // pred_check
        _
      $region10: #{tpu_custom_call.1} parent=5 // pred_check_branch
        %167 = sbr.rel (%p164) target = $region12
      $region11: #{tpu_custom_call.1} parent=5 // pred_region
        %s168 = ssub.s32 %s18, 1
        // Predicated region
        $region13: #{tpu_custom_call.1} parent=11 // pred_check
          %p169 = pneg %p65
        $region14: #{tpu_custom_call.1} parent=11 // pred_check_branch
          %171 = sbr.rel (%p169) target = $region16
        $region15: #{tpu_custom_call.1} parent=11 // pred_region
          %s173 = ssub.s32 18432, 18432
          %174 = vsyncadd [#allocation7], %s173
          %s175 = sshll.u32 [#allocation6], 4
          %s176 = int_to_ptr.vmem [resolvable:$true] %s175
          %181 = dma.hbm_to_vmem [thread:$0]  %s1, 18432, %s176, [#allocation7], 128, 128, 8
        $region16: #{tpu_custom_call.1} parent=11 // pred_fallthru
          _
        // Predicated region
        $region17: #{tpu_custom_call.1} parent=11 // pred_check
          %p182 = pneg %p86
        $region18: #{tpu_custom_call.1} parent=11 // pred_check_branch
          %184 = sbr.rel (%p182) target = $region20
        $region19: #{tpu_custom_call.1} parent=11 // pred_region
          _
        $region20: #{tpu_custom_call.1} parent=11 // pred_fallthru
          _
        // Predicated region
        $region21: #{tpu_custom_call.1} parent=11 // pred_check
          %p185 = pneg %p107
        $region22: #{tpu_custom_call.1} parent=11 // pred_check_branch
          %187 = sbr.rel (%p185) target = $region24
        $region23: #{tpu_custom_call.1} parent=11 // pred_region
          %s189 = ssub.s32 18432, 18432
          %190 = vsyncadd [#allocation7], %s189
          %s191 = sshll.u32 [#allocation8], 4
          %s192 = int_to_ptr.vmem [resolvable:$true] %s191
          %197 = dma.hbm_to_vmem [thread:$0]  %s3, 18432, %s192, [#allocation7], 128, 128, 8
        $region24: #{tpu_custom_call.1} parent=11 // pred_fallthru
          _
        // Predicated region
        $region25: #{tpu_custom_call.1} parent=11 // pred_check
          %p198 = pneg %p128
        $region26: #{tpu_custom_call.1} parent=11 // pred_check_branch
          %200 = sbr.rel (%p198) target = $region28
        $region27: #{tpu_custom_call.1} parent=11 // pred_region
          _
        $region28: #{tpu_custom_call.1} parent=11 // pred_fallthru
          _
      $region12: #{tpu_custom_call.1} parent=5 // pred_fallthru
        _
      %p201 = scmp.lt.s32.totalorder %s18, 2
      // Predicated region
      $region29: #{tpu_custom_call.1} parent=5 // pred_check
        %p202 = pneg %p201
      $region30: #{tpu_custom_call.1} parent=5 // pred_check_branch
        %204 = sbr.rel (%p202) target = $region32
      $region31: #{tpu_custom_call.1} parent=5 // pred_region
        // Predicated region
        $region33: #{tpu_custom_call.1} parent=31 // pred_check
          %p205 = pneg %p38
        $region34: #{tpu_custom_call.1} parent=31 // pred_check_branch
          %207 = sbr.rel (%p205) target = $region36
        $region35: #{tpu_custom_call.1} parent=31 // pred_region
          %s208 = sand.u32 %s28, 1
          %s209 = scalar_lea.sflag [#allocation4], %s208
          %s210 = sand.u32 %s28, 1
          %s211 = smul.addr %s210, 176
          %s212 = scalar_lea.vmem [#allocation3], %s211
          %s214 = ssub.s32 2816, 2816
          %215 = vsyncadd %s209, %s214
          %s216 = smul.addr %s18, 22
          %s217 = smul.addr %s216, 128
          %s218 = scalar_lea.hbm %s0, %s217
          %s219 = sshll.u32 %s212, 4
          %s220 = int_to_ptr.vmem [resolvable:$true] %s219
          %225 = dma.hbm_to_vmem [thread:$0]  %s218, 2816, %s220, %s209, 128, 128, 8
        $region36: #{tpu_custom_call.1} parent=31 // pred_fallthru
          _
      $region32: #{tpu_custom_call.1} parent=5 // pred_fallthru
        _
      %p226 = scmp.le.s32.totalorder 1, %s18
      %p227 = scmp.lt.s32.totalorder %s18, 3
      %p228 = pnand %p226, %p227
      %p229 = pneg %p228
      // Predicated region
      $region37: #{tpu_custom_call.1} parent=5 // pred_check
        _
      $region38: #{tpu_custom_call.1} parent=5 // pred_check_branch
        %231 = sbr.rel (%p228) target = $region40
      $region39: #{tpu_custom_call.1} parent=5 // pred_region
        %s232 = ssub.s32 %s18, 1
        %s233 = sand.u32 %s31, 1
        %s234 = scalar_lea.sflag [#allocation4], %s233
        %s235 = sand.u32 %s31, 1
        %s236 = smul.addr %s235, 176
        %s237 = scalar_lea.vmem [#allocation3], %s236
        // Predicated region
        $region41: #{tpu_custom_call.1} parent=39 // pred_check
          %p238 = pneg %p44
        $region42: #{tpu_custom_call.1} parent=39 // pred_check_branch
          %240 = sbr.rel (%p238) target = $region44
        $region43: #{tpu_custom_call.1} parent=39 // pred_region
          %241 = dma.done %s234, 2816
        $region44: #{tpu_custom_call.1} parent=39 // pred_fallthru
          _
        // Predicated region
        $region45: #{tpu_custom_call.1} parent=39 // pred_check
          %p242 = pneg %p65
        $region46: #{tpu_custom_call.1} parent=39 // pred_check_branch
          %244 = sbr.rel (%p242) target = $region48
        $region47: #{tpu_custom_call.1} parent=39 // pred_region
          %245 = dma.done [#allocation7], 18432
        $region48: #{tpu_custom_call.1} parent=39 // pred_fallthru
          _
        // Predicated region
        $region49: #{tpu_custom_call.1} parent=39 // pred_check
          %p246 = pneg %p107
        $region50: #{tpu_custom_call.1} parent=39 // pred_check_branch
          %248 = sbr.rel (%p246) target = $region52
        $region51: #{tpu_custom_call.1} parent=39 // pred_region
          %249 = dma.done [#allocation7], 18432
        $region52: #{tpu_custom_call.1} parent=39 // pred_fallthru
          _
        %s250 = sand.u32 %s31, 1
        %s251 = scalar_lea.sflag [#allocation4], %s250
        %s252 = sand.u32 %s31, 1
        %s253 = smul.addr %s252, 176
        %s254 = scalar_lea.vmem [#allocation3], %s253
        %p255 = pneg %p44
        %p256 = pneg %p41
        %p257 = pneg %p65
        %p258 = pneg %p62
        %p259 = pneg %p86
        %p260 = pneg %p83
        %p261 = pneg %p107
        %p262 = pneg %p104
        %p263 = pneg %p128
        %p264 = pneg %p125
        %p265 = pneg %p154
        %p266 = pneg %p151
        %s267 = sand.u32 %s141, 1
        %s268 = scalar_lea.sflag [#allocation5], %s267
        %s269 = sand.u32 %s141, 1
        %s270 = smul.addr %s269, 128
        %s271 = scalar_lea.vmem [#allocation9], %s270
        %v272 = vlaneseq
        %v273 = vshrl.u32 %v272, 7
        %v274 = vadd.s32 %v273, 8
        %v275 = vadd.s32 %v273, 16
        %v276 = vadd.s32 %v273, 24
        %v277 = vadd.s32 %v273, 32
        %v278 = vadd.s32 %v273, 40
        %v279 = vadd.s32 %v273, 48
        %v280 = vadd.s32 %v273, 56
        %v281 = vadd.s32 %v273, 64
        %v282 = vadd.s32 %v273, 72
        %v283 = vadd.s32 %v273, 80
        %v284 = vadd.s32 %v273, 88
        %v285 = vadd.s32 %v273, 96
        %v286 = vadd.s32 %v273, 104
        %v287 = vadd.s32 %v273, 112
        %v288 = vadd.s32 %v273, 120
        %vm289 = vcmp.lt.s32.totalorder %v273, 0
        %v290 = vsub.s32 0, %v273
        %v291 = vsel %vm289, %v290, %v273
        %v292 = vshrl.u32 %v291, 4
        %v293 = vand.u32 %v291, 15
        %v294 = vsub.s32 0, %v293
        %v295 = vsel %vm289, %v294, %v293
        %vm296 = vcmp.lt.s32.totalorder %v274, 0
        %v297 = vsub.s32 0, %v274
        %v298 = vsel %vm296, %v297, %v274
        %v299 = vshrl.u32 %v298, 4
        %v300 = vand.u32 %v298, 15
        %v301 = vsub.s32 0, %v300
        %v302 = vsel %vm296, %v301, %v300
        %vm303 = vcmp.lt.s32.totalorder %v275, 0
        %v304 = vsub.s32 0, %v275
        %v305 = vsel %vm303, %v304, %v275
        %v306 = vshrl.u32 %v305, 4
        %v307 = vand.u32 %v305, 15
        %v308 = vsub.s32 0, %v307
        %v309 = vsel %vm303, %v308, %v307
        %vm310 = vcmp.lt.s32.totalorder %v276, 0
        %v311 = vsub.s32 0, %v276
        %v312 = vsel %vm310, %v311, %v276
        %v313 = vshrl.u32 %v312, 4
        %v314 = vand.u32 %v312, 15
        %v315 = vsub.s32 0, %v314
        %v316 = vsel %vm310, %v315, %v314
        %vm317 = vcmp.lt.s32.totalorder %v277, 0
        %v318 = vsub.s32 0, %v277
        %v319 = vsel %vm317, %v318, %v277
        %v320 = vshrl.u32 %v319, 4
        %v321 = vand.u32 %v319, 15
        %v322 = vsub.s32 0, %v321
        %v323 = vsel %vm317, %v322, %v321
        %vm324 = vcmp.lt.s32.totalorder %v278, 0
        %v325 = vsub.s32 0, %v278
        %v326 = vsel %vm324, %v325, %v278
        %v327 = vshrl.u32 %v326, 4
        %v328 = vand.u32 %v326, 15
        %v329 = vsub.s32 0, %v328
        %v330 = vsel %vm324, %v329, %v328
        %vm331 = vcmp.lt.s32.totalorder %v279, 0
        %v332 = vsub.s32 0, %v279
        %v333 = vsel %vm331, %v332, %v279
        %v334 = vshrl.u32 %v333, 4
        %v335 = vand.u32 %v333, 15
        %v336 = vsub.s32 0, %v335
        %v337 = vsel %vm331, %v336, %v335
        %vm338 = vcmp.lt.s32.totalorder %v280, 0
        %v339 = vsub.s32 0, %v280
        %v340 = vsel %vm338, %v339, %v280
        %v341 = vshrl.u32 %v340, 4
        %v342 = vand.u32 %v340, 15
        %v343 = vsub.s32 0, %v342
        %v344 = vsel %vm338, %v343, %v342
        %vm345 = vcmp.lt.s32.totalorder %v281, 0
        %v346 = vsub.s32 0, %v281
        %v347 = vsel %vm345, %v346, %v281
        %v348 = vshrl.u32 %v347, 4
        %v349 = vand.u32 %v347, 15
        %v350 = vsub.s32 0, %v349
        %v351 = vsel %vm345, %v350, %v349
        %vm352 = vcmp.lt.s32.totalorder %v282, 0
        %v353 = vsub.s32 0, %v282
        %v354 = vsel %vm352, %v353, %v282
        %v355 = vshrl.u32 %v354, 4
        %v356 = vand.u32 %v354, 15
        %v357 = vsub.s32 0, %v356
        %v358 = vsel %vm352, %v357, %v356
        %vm359 = vcmp.lt.s32.totalorder %v283, 0
        %v360 = vsub.s32 0, %v283
        %v361 = vsel %vm359, %v360, %v283
        %v362 = vshrl.u32 %v361, 4
        %v363 = vand.u32 %v361, 15
        %v364 = vsub.s32 0, %v363
        %v365 = vsel %vm359, %v364, %v363
        %vm366 = vcmp.lt.s32.totalorder %v284, 0
        %v367 = vsub.s32 0, %v284
        %v368 = vsel %vm366, %v367, %v284
        %v369 = vshrl.u32 %v368, 4
        %v370 = vand.u32 %v368, 15
        %v371 = vsub.s32 0, %v370
        %v372 = vsel %vm366, %v371, %v370
        %vm373 = vcmp.lt.s32.totalorder %v285, 0
        %v374 = vsub.s32 0, %v285
        %v375 = vsel %vm373, %v374, %v285
        %v376 = vshrl.u32 %v375, 4
        %v377 = vand.u32 %v375, 15
        %v378 = vsub.s32 0, %v377
        %v379 = vsel %vm373, %v378, %v377
        %vm380 = vcmp.lt.s32.totalorder %v286, 0
        %v381 = vsub.s32 0, %v286
        %v382 = vsel %vm380, %v381, %v286
        %v383 = vshrl.u32 %v382, 4
        %v384 = vand.u32 %v382, 15
        %v385 = vsub.s32 0, %v384
        %v386 = vsel %vm380, %v385, %v384
        %vm387 = vcmp.lt.s32.totalorder %v287, 0
        %v388 = vsub.s32 0, %v287
        %v389 = vsel %vm387, %v388, %v287
        %v390 = vshrl.u32 %v389, 4
        %v391 = vand.u32 %v389, 15
        %v392 = vsub.s32 0, %v391
        %v393 = vsel %vm387, %v392, %v391
        %vm394 = vcmp.lt.s32.totalorder %v288, 0
        %v395 = vsub.s32 0, %v288
        %v396 = vsel %vm394, %v395, %v288
        %v397 = vshrl.u32 %v396, 4
        %v398 = vand.u32 %v396, 15
        %v399 = vsub.s32 0, %v398
        %v400 = vsel %vm394, %v399, %v398
        %vm401 = vcmp.ne.s32.totalorder %v295, 0
        %vm402 = vcmp.ne.s32.totalorder %v302, 0
        %vm403 = vcmp.ne.s32.totalorder %v309, 0
        %vm404 = vcmp.ne.s32.totalorder %v316, 0
        %vm405 = vcmp.ne.s32.totalorder %v323, 0
        %vm406 = vcmp.ne.s32.totalorder %v330, 0
        %vm407 = vcmp.ne.s32.totalorder %v337, 0
        %vm408 = vcmp.ne.s32.totalorder %v344, 0
        %vm409 = vcmp.ne.s32.totalorder %v351, 0
        %vm410 = vcmp.ne.s32.totalorder %v358, 0
        %vm411 = vcmp.ne.s32.totalorder %v365, 0
        %vm412 = vcmp.ne.s32.totalorder %v372, 0
        %vm413 = vcmp.ne.s32.totalorder %v379, 0
        %vm414 = vcmp.ne.s32.totalorder %v386, 0
        %vm415 = vcmp.ne.s32.totalorder %v393, 0
        %vm416 = vcmp.ne.s32.totalorder %v400, 0
        %vm417 = vcmp.lt.s32.totalorder %v295, 0
        %vm418 = vcmp.lt.s32.totalorder %v302, 0
        %vm419 = vcmp.lt.s32.totalorder %v309, 0
        %vm420 = vcmp.lt.s32.totalorder %v316, 0
        %vm421 = vcmp.lt.s32.totalorder %v323, 0
        %vm422 = vcmp.lt.s32.totalorder %v330, 0
        %vm423 = vcmp.lt.s32.totalorder %v337, 0
        %vm424 = vcmp.lt.s32.totalorder %v344, 0
        %vm425 = vcmp.lt.s32.totalorder %v351, 0
        %vm426 = vcmp.lt.s32.totalorder %v358, 0
        %vm427 = vcmp.lt.s32.totalorder %v365, 0
        %vm428 = vcmp.lt.s32.totalorder %v372, 0
        %vm429 = vcmp.lt.s32.totalorder %v379, 0
        %vm430 = vcmp.lt.s32.totalorder %v386, 0
        %vm431 = vcmp.lt.s32.totalorder %v393, 0
        %vm432 = vcmp.lt.s32.totalorder %v400, 0
        %vm433 = vmand %vm417, %vm401
        %vm434 = vmand %vm418, %vm402
        %vm435 = vmand %vm419, %vm403
        %vm436 = vmand %vm420, %vm404
        %vm437 = vmand %vm421, %vm405
        %vm438 = vmand %vm422, %vm406
        %vm439 = vmand %vm423, %vm407
        %vm440 = vmand %vm424, %vm408
        %vm441 = vmand %vm425, %vm409
        %vm442 = vmand %vm426, %vm410
        %vm443 = vmand %vm427, %vm411
        %vm444 = vmand %vm428, %vm412
        %vm445 = vmand %vm429, %vm413
        %vm446 = vmand %vm430, %vm414
        %vm447 = vmand %vm431, %vm415
        %vm448 = vmand %vm432, %vm416
        %v449 = vadd.s32 %v295, 16
        %v450 = vadd.s32 %v302, 16
        %v451 = vadd.s32 %v309, 16
        %v452 = vadd.s32 %v316, 16
        %v453 = vadd.s32 %v323, 16
        %v454 = vadd.s32 %v330, 16
        %v455 = vadd.s32 %v337, 16
        %v456 = vadd.s32 %v344, 16
        %v457 = vadd.s32 %v351, 16
        %v458 = vadd.s32 %v358, 16
        %v459 = vadd.s32 %v365, 16
        %v460 = vadd.s32 %v372, 16
        %v461 = vadd.s32 %v379, 16
        %v462 = vadd.s32 %v386, 16
        %v463 = vadd.s32 %v393, 16
        %v464 = vadd.s32 %v400, 16
        %v465 = vsel %vm433, %v449, %v295
        %v466 = vsel %vm434, %v450, %v302
        %v467 = vsel %vm435, %v451, %v309
        %v468 = vsel %vm436, %v452, %v316
        %v469 = vsel %vm437, %v453, %v323
        %v470 = vsel %vm438, %v454, %v330
        %v471 = vsel %vm439, %v455, %v337
        %v472 = vsel %vm440, %v456, %v344
        %v473 = vsel %vm441, %v457, %v351
        %v474 = vsel %vm442, %v458, %v358
        %v475 = vsel %vm443, %v459, %v365
        %v476 = vsel %vm444, %v460, %v372
        %v477 = vsel %vm445, %v461, %v379
        %v478 = vsel %vm446, %v462, %v386
        %v479 = vsel %vm447, %v463, %v393
        %v480 = vsel %vm448, %v464, %v400
        %vm481 = vcmp.lt.s32.totalorder %v465, 8
        %vm482 = vcmp.lt.s32.totalorder %v466, 8
        %vm483 = vcmp.lt.s32.totalorder %v467, 8
        %vm484 = vcmp.lt.s32.totalorder %v468, 8
        %vm485 = vcmp.lt.s32.totalorder %v469, 8
        %vm486 = vcmp.lt.s32.totalorder %v470, 8
        %vm487 = vcmp.lt.s32.totalorder %v471, 8
        %vm488 = vcmp.lt.s32.totalorder %v472, 8
        %vm489 = vcmp.lt.s32.totalorder %v473, 8
        %vm490 = vcmp.lt.s32.totalorder %v474, 8
        %vm491 = vcmp.lt.s32.totalorder %v475, 8
        %vm492 = vcmp.lt.s32.totalorder %v476, 8
        %vm493 = vcmp.lt.s32.totalorder %v477, 8
        %vm494 = vcmp.lt.s32.totalorder %v478, 8
        %vm495 = vcmp.lt.s32.totalorder %v479, 8
        %vm496 = vcmp.lt.s32.totalorder %v480, 8
        %497 = vst [vmem:[#allocation2] sm:$0xff] 0.0
        %498 = vst [vmem:[#allocation2 + $0x8] sm:$0xff] 0.0
        %499 = vst [vmem:[#allocation2 + $0x10] sm:$0xff] 0.0
        %500 = vst [vmem:[#allocation2 + $0x98] sm:$0xff] 0.0
        %501 = vst [vmem:[#allocation2 + $0xa0] sm:$0xff] 0.0
        %502 = vst [vmem:[#allocation2 + $0xa8] sm:$0xff] 0.0
        %v503 = vld [vmem:[%s237 + $0x7] sm:$0xff]
        %v504 = vld [vmem:[%s237 + $0xf] sm:$0xff]
        %v505 = vld [vmem:[%s237 + $0x17] sm:$0xff]
        %v506 = vld [vmem:[%s237 + $0x1f] sm:$0xff]
        %v507 = vld [vmem:[%s237 + $0x27] sm:$0xff]
        %v508 = vld [vmem:[%s237 + $0x2f] sm:$0xff]
        %v509 = vld [vmem:[%s237 + $0x37] sm:$0xff]
        %v510 = vld [vmem:[%s237 + $0x3f] sm:$0xff]
        %v511 = vld [vmem:[%s237 + $0x47] sm:$0xff]
        %v512 = vld [vmem:[%s237 + $0x4f] sm:$0xff]
        %v513 = vld [vmem:[%s237 + $0x57] sm:$0xff]
        %v514 = vld [vmem:[%s237 + $0x5f] sm:$0xff]
        %v515 = vld [vmem:[%s237 + $0x67] sm:$0xff]
        %v516 = vld [vmem:[%s237 + $0x6f] sm:$0xff]
        %v517 = vld [vmem:[%s237 + $0x77] sm:$0xff]
        %v518 = vld [vmem:[%s237 + $0x7f] sm:$0xff]
        %v519 = vld [vmem:[#allocation6] sm:$0xff]
        %v520 = vld [vmem:[#allocation6 + $0x8] sm:$0xff]
        %v521 = vld [vmem:[#allocation6 + $0x10] sm:$0xff]
        %v522 = vld [vmem:[#allocation6 + $0x18] sm:$0xff]
        %v523 = vld [vmem:[#allocation6 + $0x20] sm:$0xff]
        %v524 = vld [vmem:[#allocation6 + $0x28] sm:$0xff]
        %v525 = vld [vmem:[#allocation6 + $0x30] sm:$0xff]
        %v526 = vld [vmem:[#allocation6 + $0x38] sm:$0xff]
        %v527 = vld [vmem:[#allocation6 + $0x40] sm:$0xff]
        %v528 = vld [vmem:[#allocation6 + $0x48] sm:$0xff]
        %v529 = vld [vmem:[#allocation6 + $0x50] sm:$0xff]
        %v530 = vld [vmem:[#allocation6 + $0x58] sm:$0xff]
        %v531 = vld [vmem:[#allocation6 + $0x60] sm:$0xff]
        %v532 = vld [vmem:[#allocation6 + $0x68] sm:$0xff]
        %v533 = vld [vmem:[#allocation6 + $0x70] sm:$0xff]
        %v534 = vld [vmem:[#allocation6 + $0x78] sm:$0xff]
        %v535 = vld [vmem:[%s237 + $0x8] sm:$0xff]
        %v536 = vld [vmem:[%s237 + $0x10] sm:$0xff]
        %v537 = vld [vmem:[%s237 + $0x18] sm:$0xff]
        %v538 = vld [vmem:[%s237 + $0x20] sm:$0xff]
        %v539 = vld [vmem:[%s237 + $0x28] sm:$0xff]
        %v540 = vld [vmem:[%s237 + $0x30] sm:$0xff]
        %v541 = vld [vmem:[%s237 + $0x38] sm:$0xff]
        %v542 = vld [vmem:[%s237 + $0x40] sm:$0xff]
        %v543 = vld [vmem:[%s237 + $0x48] sm:$0xff]
        %v544 = vld [vmem:[%s237 + $0x50] sm:$0xff]
        %v545 = vld [vmem:[%s237 + $0x58] sm:$0xff]
        %v546 = vld [vmem:[%s237 + $0x60] sm:$0xff]
        %v547 = vld [vmem:[%s237 + $0x68] sm:$0xff]
        %v548 = vld [vmem:[%s237 + $0x70] sm:$0xff]
        %v549 = vld [vmem:[%s237 + $0x78] sm:$0xff]
        %v550 = vld [vmem:[%s237 + $0x80] sm:$0xff]
        %s551 = scalar_lea.vmem [#allocation6], 128
        %v552 = vld [vmem:[%s551] sm:$0xff]
        %v553 = vld [vmem:[%s551 + $0x8] sm:$0xff]
        %v554 = vld [vmem:[%s551 + $0x10] sm:$0xff]
        %v555 = vld [vmem:[%s551 + $0x18] sm:$0xff]
        %v556 = vld [vmem:[%s551 + $0x20] sm:$0xff]
        %v557 = vld [vmem:[%s551 + $0x28] sm:$0xff]
        %v558 = vld [vmem:[%s551 + $0x30] sm:$0xff]
        %v559 = vld [vmem:[%s551 + $0x38] sm:$0xff]
        %v560 = vld [vmem:[%s551 + $0x40] sm:$0xff]
        %v561 = vld [vmem:[%s551 + $0x48] sm:$0xff]
        %v562 = vld [vmem:[%s551 + $0x50] sm:$0xff]
        %v563 = vld [vmem:[%s551 + $0x58] sm:$0xff]
        %v564 = vld [vmem:[%s551 + $0x60] sm:$0xff]
        %v565 = vld [vmem:[%s551 + $0x68] sm:$0xff]
        %v566 = vld [vmem:[%s551 + $0x70] sm:$0xff]
        %v567 = vld [vmem:[%s551 + $0x78] sm:$0xff]
        %568 = vmatprep.subr.mxu0 0.0
        %569 = vmatpush1.msra.mxu0 %v552
        %570 = vmatprep.subr.mxu0 0.0
        %571 = vmatpush1.msra.mxu0 %v553
        %572 = vmatprep.subr.mxu0 0.0
        %573 = vmatpush1.msra.mxu0 %v554
        %574 = vmatprep.subr.mxu0 0.0
        %575 = vmatpush1.msra.mxu0 %v555
        %576 = vmatprep.subr.mxu0 0.0
        %577 = vmatpush1.msra.mxu0 %v556
        %578 = vmatprep.subr.mxu0 0.0
        %579 = vmatpush1.msra.mxu0 %v557
        %580 = vmatprep.subr.mxu0 0.0
        %581 = vmatpush1.msra.mxu0 %v558
        %582 = vmatprep.subr.mxu0 0.0
        %583 = vmatpush1.msra.mxu0 %v559
        %584 = vmatprep.subr.mxu0 0.0
        %585 = vmatpush1.msra.mxu0 %v560
        %586 = vmatprep.subr.mxu0 0.0
        %587 = vmatpush1.msra.mxu0 %v561
        %588 = vmatprep.subr.mxu0 0.0
        %589 = vmatpush1.msra.mxu0 %v562
        %590 = vmatprep.subr.mxu0 0.0
        %591 = vmatpush1.msra.mxu0 %v563
        %592 = vmatprep.subr.mxu0 0.0
        %593 = vmatpush1.msra.mxu0 %v564
        %594 = vmatprep.subr.mxu0 0.0
        %595 = vmatpush1.msra.mxu0 %v565
        %596 = vmatprep.subr.mxu0 0.0
        %597 = vmatpush1.msra.mxu0 %v566
        %598 = vmatprep.subr.mxu0 0.0
        %599 = vmatpush1.msra.mxu0 %v567
        %600 = vmatprep.subr.mxu0 0.0
        %601 = vmatpush1.msra.mxu0 0.0
        %602 = vmatprep.subr.mxu0 0.0
        %603 = vmatpush1.msra.mxu0 0.0
        %604 = vmatprep.subr.mxu0 0.0
        %605 = vmatpush1.msra.mxu0 0.0
        %606 = vmatprep.subr.mxu0 0.0
        %607 = vmatpush1.msra.mxu0 0.0
        %608 = vmatprep.subr.mxu0 0.0
        %609 = vmatpush1.msra.mxu0 0.0
        %610 = vmatprep.subr.mxu0 0.0
        %611 = vmatpush1.msra.mxu0 0.0
        %612 = vmatprep.subr.mxu0 0.0
        %613 = vmatpush1.msra.mxu0 0.0
        %614 = vmatprep.subr.mxu0 0.0
        %615 = vmatpush1.msra.mxu0 0.0
        %616 = vmatprep.subr.mxu0 0.0
        %617 = vmatpush1.msra.mxu0 0.0
        %618 = vmatprep.subr.mxu0 0.0
        %619 = vmatpush1.msra.mxu0 0.0
        %620 = vmatprep.subr.mxu0 0.0
        %621 = vmatpush1.msra.mxu0 0.0
        %622 = vmatprep.subr.mxu0 0.0
        %623 = vmatpush1.msra.mxu0 0.0
        %624 = vmatprep.subr.mxu0 0.0
        %625 = vmatpush1.msra.mxu0 0.0
        %626 = vmatprep.subr.mxu0 0.0
        %627 = vmatpush1.msra.mxu0 0.0
        %628 = vmatprep.subr.mxu0 0.0
        %629 = vmatpush1.msra.mxu0 0.0
        %630 = vmatprep.subr.mxu0 0.0
        %631 = vmatpush1.msra.mxu0 0.0
        %632 = vmatprep.mubr.f32.mxu0 0.0
        %633 = vmatmul.mubr.f32.gmra.mrb[0].mxu0 %v535
        %v634 = vpop.f32.mrb[0].mxu0
        %v635 = vadd.f32 0.0, %v634
        %v636 = vpop.f32.mrb[0].mxu0
        %637 = vmatprep.mubr.f32.mxu0 0.0
        %638 = vmatmul.mubr.f32.gmra.mrb[0].mxu0 %v536
        %v639 = vpop.f32.mrb[0].mxu0
        %v640 = vadd.f32 0.0, %v639
        %v641 = vpop.f32.mrb[0].mxu0
        %642 = vmatprep.mubr.f32.mxu0 0.0
        %643 = vmatmul.mubr.f32.gmra.mrb[0].mxu0 %v537
        %v644 = vpop.f32.mrb[0].mxu0
        %v645 = vadd.f32 0.0, %v644
        %v646 = vpop.f32.mrb[0].mxu0
        %647 = vmatprep.mubr.f32.mxu0 0.0
        %648 = vmatmul.mubr.f32.gmra.mrb[0].mxu0 %v538
        %v649 = vpop.f32.mrb[0].mxu0
        %v650 = vadd.f32 0.0, %v649
        %v651 = vpop.f32.mrb[0].mxu0
        %652 = vmatprep.mubr.f32.mxu0 0.0
        %653 = vmatmul.mubr.f32.gmra.mrb[0].mxu0 %v539
        %v654 = vpop.f32.mrb[0].mxu0
        %v655 = vadd.f32 0.0, %v654
        %v656 = vpop.f32.mrb[0].mxu0
        %657 = vmatprep.mubr.f32.mxu0 0.0
        %658 = vmatmul.mubr.f32.gmra.mrb[0].mxu0 %v540
        %v659 = vpop.f32.mrb[0].mxu0
        %v660 = vadd.f32 0.0, %v659
        %v661 = vpop.f32.mrb[0].mxu0
        %662 = vmatprep.mubr.f32.mxu0 0.0
        %663 = vmatmul.mubr.f32.gmra.mrb[0].mxu0 %v541
        %v664 = vpop.f32.mrb[0].mxu0
        %v665 = vadd.f32 0.0, %v664
        %v666 = vpop.f32.mrb[0].mxu0
        %667 = vmatprep.mubr.f32.mxu0 0.0
        %668 = vmatmul.mubr.f32.gmra.mrb[0].mxu0 %v542
        %v669 = vpop.f32.mrb[0].mxu0
        %v670 = vadd.f32 0.0, %v669
        %v671 = vpop.f32.mrb[0].mxu0
        %672 = vmatprep.mubr.f32.mxu0 0.0
        %673 = vmatmul.mubr.f32.gmra.mrb[0].mxu0 %v543
        %v674 = vpop.f32.mrb[0].mxu0
        %v675 = vadd.f32 0.0, %v674
        %v676 = vpop.f32.mrb[0].mxu0
        %677 = vmatprep.mubr.f32.mxu0 0.0
        %678 = vmatmul.mubr.f32.gmra.mrb[0].mxu0 %v544
        %v679 = vpop.f32.mrb[0].mxu0
        %v680 = vadd.f32 0.0, %v679
        %v681 = vpop.f32.mrb[0].mxu0
        %682 = vmatprep.mubr.f32.mxu0 0.0
        %683 = vmatmul.mubr.f32.gmra.mrb[0].mxu0 %v545
        %v684 = vpop.f32.mrb[0].mxu0
        %v685 = vadd.f32 0.0, %v684
        %v686 = vpop.f32.mrb[0].mxu0
        %687 = vmatprep.mubr.f32.mxu0 0.0
        %688 = vmatmul.mubr.f32.gmra.mrb[0].mxu0 %v546
        %v689 = vpop.f32.mrb[0].mxu0
        %v690 = vadd.f32 0.0, %v689
        %v691 = vpop.f32.mrb[0].mxu0
        %692 = vmatprep.mubr.f32.mxu0 0.0
        %693 = vmatmul.mubr.f32.gmra.mrb[0].mxu0 %v547
        %v694 = vpop.f32.mrb[0].mxu0
        %v695 = vadd.f32 0.0, %v694
        %v696 = vpop.f32.mrb[0].mxu0
        %697 = vmatprep.mubr.f32.mxu0 0.0
        %698 = vmatmul.mubr.f32.gmra.mrb[0].mxu0 %v548
        %v699 = vpop.f32.mrb[0].mxu0
        %v700 = vadd.f32 0.0, %v699
        %v701 = vpop.f32.mrb[0].mxu0
        %702 = vmatprep.mubr.f32.mxu0 0.0
        %703 = vmatmul.mubr.f32.gmra.mrb[0].mxu0 %v549
        %v704 = vpop.f32.mrb[0].mxu0
        %v705 = vadd.f32 0.0, %v704
        %v706 = vpop.f32.mrb[0].mxu0
        %707 = vmatprep.mubr.f32.mxu0 0.0
        %708 = vmatmul.mubr.f32.gmra.mrb[0].mxu0 %v550
        %v709 = vpop.f32.mrb[0].mxu0
        %v710 = vadd.f32 0.0, %v709
        %v711 = vpop.f32.mrb[0].mxu0
        %712 = vdwg.mxu0
        %713 = vmatprep.subr.mxu0 0.0
        %714 = vmatpush1.msra.mxu0 %v519
        %715 = vmatprep.subr.mxu0 0.0
        %716 = vmatpush1.msra.mxu0 %v520
        %717 = vmatprep.subr.mxu0 0.0
        %718 = vmatpush1.msra.mxu0 %v521
        %719 = vmatprep.subr.mxu0 0.0
        %720 = vmatpush1.msra.mxu0 %v522
        %721 = vmatprep.subr.mxu0 0.0
        %722 = vmatpush1.msra.mxu0 %v523
        %723 = vmatprep.subr.mxu0 0.0
        %724 = vmatpush1.msra.mxu0 %v524
        %725 = vmatprep.subr.mxu0 0.0
        %726 = vmatpush1.msra.mxu0 %v525
        %727 = vmatprep.subr.mxu0 0.0
        %728 = vmatpush1.msra.mxu0 %v526
        %729 = vmatprep.subr.mxu0 0.0
        %730 = vmatpush1.msra.mxu0 %v527
        %731 = vmatprep.subr.mxu0 0.0
        %732 = vmatpush1.msra.mxu0 %v528
        %733 = vmatprep.subr.mxu0 0.0
        %734 = vmatpush1.msra.mxu0 %v529
        %735 = vmatprep.subr.mxu0 0.0
        %736 = vmatpush1.msra.mxu0 %v530
        %737 = vmatprep.subr.mxu0 0.0
        %738 = vmatpush1.msra.mxu0 %v531
        %739 = vmatprep.subr.mxu0 0.0
        %740 = vmatpush1.msra.mxu0 %v532
        %741 = vmatprep.subr.mxu0 0.0
        %742 = vmatpush1.msra.mxu0 %v533
        %743 = vmatprep.subr.mxu0 0.0
        %744 = vmatpush1.msra.mxu0 %v534
        %745 = vmatprep.subr.mxu0 0.0
        %746 = vmatpush1.msra.mxu0 0.0
        %747 = vmatprep.subr.mxu0 0.0
        %748 = vmatpush1.msra.mxu0 0.0
        %749 = vmatprep.subr.mxu0 0.0
        %750 = vmatpush1.msra.mxu0 0.0
        %751 = vmatprep.subr.mxu0 0.0
        %752 = vmatpush1.msra.mxu0 0.0
        %753 = vmatprep.subr.mxu0 0.0
        %754 = vmatpush1.msra.mxu0 0.0
        %755 = vmatprep.subr.mxu0 0.0
        %756 = vmatpush1.msra.mxu0 0.0
        %757 = vmatprep.subr.mxu0 0.0
        %758 = vmatpush1.msra.mxu0 0.0
        %759 = vmatprep.subr.mxu0 0.0
        %760 = vmatpush1.msra.mxu0 0.0
        %761 = vmatprep.subr.mxu0 0.0
        %762 = vmatpush1.msra.mxu0 0.0
        %763 = vmatprep.subr.mxu0 0.0
        %764 = vmatpush1.msra.mxu0 0.0
        %765 = vmatprep.subr.mxu0 0.0
        %766 = vmatpush1.msra.mxu0 0.0
        %767 = vmatprep.subr.mxu0 0.0
        %768 = vmatpush1.msra.mxu0 0.0
        %769 = vmatprep.subr.mxu0 0.0
        %770 = vmatpush1.msra.mxu0 0.0
        %771 = vmatprep.subr.mxu0 0.0
        %772 = vmatpush1.msra.mxu0 0.0
        %773 = vmatprep.subr.mxu0 0.0
        %774 = vmatpush1.msra.mxu0 0.0
        %775 = vmatprep.subr.mxu0 0.0
        %776 = vmatpush1.msra.mxu0 0.0
        %777 = vmatprep.mubr.f32.mxu0 0.0
        %778 = vmatmul.mubr.f32.gmra.mrb[0].mxu0 %v503
        %v779 = vpop.f32.mrb[0].mxu0
        %v780 = vadd.f32 %v635, %v779
        %v781 = vpop.f32.mrb[0].mxu0
        %782 = vmatprep.mubr.f32.mxu0 0.0
        %783 = vmatmul.mubr.f32.gmra.mrb[0].mxu0 %v504
        %v784 = vpop.f32.mrb[0].mxu0
        %v785 = vadd.f32 %v640, %v784
        %v786 = vpop.f32.mrb[0].mxu0
        %787 = vmatprep.mubr.f32.mxu0 0.0
        %788 = vmatmul.mubr.f32.gmra.mrb[0].mxu0 %v505
        %v789 = vpop.f32.mrb[0].mxu0
        %v790 = vadd.f32 %v645, %v789
        %v791 = vpop.f32.mrb[0].mxu0
        %792 = vmatprep.mubr.f32.mxu0 0.0
        %793 = vmatmul.mubr.f32.gmra.mrb[0].mxu0 %v506
        %v794 = vpop.f32.mrb[0].mxu0
        %v795 = vadd.f32 %v650, %v794
        %v796 = vpop.f32.mrb[0].mxu0
        %797 = vmatprep.mubr.f32.mxu0 0.0
        %798 = vmatmul.mubr.f32.gmra.mrb[0].mxu0 %v507
        %v799 = vpop.f32.mrb[0].mxu0
        %v800 = vadd.f32 %v655, %v799
        %v801 = vpop.f32.mrb[0].mxu0
        %802 = vmatprep.mubr.f32.mxu0 0.0
        %803 = vmatmul.mubr.f32.gmra.mrb[0].mxu0 %v508
        %v804 = vpop.f32.mrb[0].mxu0
        %v805 = vadd.f32 %v660, %v804
        %v806 = vpop.f32.mrb[0].mxu0
        %807 = vmatprep.mubr.f32.mxu0 0.0
        %808 = vmatmul.mubr.f32.gmra.mrb[0].mxu0 %v509
        %v809 = vpop.f32.mrb[0].mxu0
        %v810 = vadd.f32 %v665, %v809
        %v811 = vpop.f32.mrb[0].mxu0
        %812 = vmatprep.mubr.f32.mxu0 0.0
        %813 = vmatmul.mubr.f32.gmra.mrb[0].mxu0 %v510
        %v814 = vpop.f32.mrb[0].mxu0
        %v815 = vadd.f32 %v670, %v814
        %v816 = vpop.f32.mrb[0].mxu0
        %817 = vmatprep.mubr.f32.mxu0 0.0
        %818 = vmatmul.mubr.f32.gmra.mrb[0].mxu0 %v511
        %v819 = vpop.f32.mrb[0].mxu0
        %v820 = vadd.f32 %v675, %v819
        %v821 = vpop.f32.mrb[0].mxu0
        %822 = vmatprep.mubr.f32.mxu0 0.0
        %823 = vmatmul.mubr.f32.gmra.mrb[0].mxu0 %v512
        %v824 = vpop.f32.mrb[0].mxu0
        %v825 = vadd.f32 %v680, %v824
        %v826 = vpop.f32.mrb[0].mxu0
        %827 = vmatprep.mubr.f32.mxu0 0.0
        %828 = vmatmul.mubr.f32.gmra.mrb[0].mxu0 %v513
        %v829 = vpop.f32.mrb[0].mxu0
        %v830 = vadd.f32 %v685, %v829
        %v831 = vpop.f32.mrb[0].mxu0
        %832 = vmatprep.mubr.f32.mxu0 0.0
        %833 = vmatmul.mubr.f32.gmra.mrb[0].mxu0 %v514
        %v834 = vpop.f32.mrb[0].mxu0
        %v835 = vadd.f32 %v690, %v834
        %v836 = vpop.f32.mrb[0].mxu0
        %837 = vmatprep.mubr.f32.mxu0 0.0
        %838 = vmatmul.mubr.f32.gmra.mrb[0].mxu0 %v515
        %v839 = vpop.f32.mrb[0].mxu0
        %v840 = vadd.f32 %v695, %v839
        %v841 = vpop.f32.mrb[0].mxu0
        %842 = vmatprep.mubr.f32.mxu0 0.0
        %843 = vmatmul.mubr.f32.gmra.mrb[0].mxu0 %v516
        %v844 = vpop.f32.mrb[0].mxu0
        %v845 = vadd.f32 %v700, %v844
        %v846 = vpop.f32.mrb[0].mxu0
        %847 = vmatprep.mubr.f32.mxu0 0.0
        %848 = vmatmul.mubr.f32.gmra.mrb[0].mxu0 %v517
        %v849 = vpop.f32.mrb[0].mxu0
        %v850 = vadd.f32 %v705, %v849
        %v851 = vpop.f32.mrb[0].mxu0
        %852 = vmatprep.mubr.f32.mxu0 0.0
        %853 = vmatmul.mubr.f32.gmra.mrb[0].mxu0 %v518
        %v854 = vpop.f32.mrb[0].mxu0
        %v855 = vadd.f32 %v710, %v854
        %v856 = vpop.f32.mrb[0].mxu0
        %857 = vdwg.mxu0
        %v858 = vld [vmem:[%s237 + $0x9] sm:$0xff]
        %v859 = vld [vmem:[%s237 + $0x11] sm:$0xff]
        %v860 = vld [vmem:[%s237 + $0x19] sm:$0xff]
        %v861 = vld [vmem:[%s237 + $0x21] sm:$0xff]
        %v862 = vld [vmem:[%s237 + $0x29] sm:$0xff]
        %v863 = vld [vmem:[%s237 + $0x31] sm:$0xff]
        %v864 = vld [vmem:[%s237 + $0x39] sm:$0xff]
        %v865 = vld [vmem:[%s237 + $0x41] sm:$0xff]
        %v866 = vld [vmem:[%s237 + $0x49] sm:$0xff]
        %v867 = vld [vmem:[%s237 + $0x51] sm:$0xff]
        %v868 = vld [vmem:[%s237 + $0x59] sm:$0xff]
        %v869 = vld [vmem:[%s237 + $0x61] sm:$0xff]
        %v870 = vld [vmem:[%s237 + $0x69] sm:$0xff]
        %v871 = vld [vmem:[%s237 + $0x71] sm:$0xff]
        %v872 = vld [vmem:[%s237 + $0x79] sm:$0xff]
        %v873 = vld [vmem:[%s237 + $0x81] sm:$0xff]
        %s874 = scalar_lea.vmem [#allocation6], 256
        %v875 = vld [vmem:[%s874] sm:$0xff]
        %v876 = vld [vmem:[%s874 + $0x8] sm:$0xff]
        %v877 = vld [vmem:[%s874 + $0x10] sm:$0xff]
        %v878 = vld [vmem:[%s874 + $0x18] sm:$0xff]
        %v879 = vld [vmem:[%s874 + $0x20] sm:$0xff]
        %v880 = vld [vmem:[%s874 + $0x28] sm:$0xff]
        %v881 = vld [vmem:[%s874 + $0x30] sm:$0xff]
        %v882 = vld [vmem:[%s874 + $0x38] sm:$0xff]
        %v883 = vld [vmem:[%s874 + $0x40] sm:$0xff]
        %v884 = vld [vmem:[%s874 + $0x48] sm:$0xff]
        %v885 = vld [vmem:[%s874 + $0x50] sm:$0xff]
        %v886 = vld [vmem:[%s874 + $0x58] sm:$0xff]
        %v887 = vld [vmem:[%s874 + $0x60] sm:$0xff]
        %v888 = vld [vmem:[%s874 + $0x68] sm:$0xff]
        %v889 = vld [vmem:[%s874 + $0x70] sm:$0xff]
        %v890 = vld [vmem:[%s874 + $0x78] sm:$0xff]
        %891 = vmatprep.subr.mxu0 0.0
        %892 = vmatpush1.msra.mxu0 %v875
        %893 = vmatprep.subr.mxu0 0.0
        %894 = vmatpush1.msra.mxu0 %v876
        %895 = vmatprep.subr.mxu0 0.0
        %896 = vmatpush1.msra.mxu0 %v877
        %897 = vmatprep.subr.mxu0 0.0
        %898 = vmatpush1.msra.mxu0 %v878
        %899 = vmatprep.subr.mxu0 0.0
        %900 = vmatpush1.msra.mxu0 %v879
        %901 = vmatprep.subr.mxu0 0.0
        %902 = vmatpush1.msra.mxu0 %v880
        %903 = vmatprep.subr.mxu0 0.0
        %904 = vmatpush1.msra.mxu0 %v881
        %905 = vmatprep.subr.mxu0 0.0
        %906 = vmatpush1.msra.mxu0 %v882
        %907 = vmatprep.subr.mxu0 0.0
        %908 = vmatpush1.msra.mxu0 %v883
        %909 = vmatprep.subr.mxu0 0.0
        %910 = vmatpush1.msra.mxu0 %v884
        %911 = vmatprep.subr.mxu0 0.0
        %912 = vmatpush1.msra.mxu0 %v885
        %913 = vmatprep.subr.mxu0 0.0
        %914 = vmatpush1.msra.mxu0 %v886
        %915 = vmatprep.subr.mxu0 0.0
        %916 = vmatpush1.msra.mxu0 %v887
        %917 = vmatprep.subr.mxu0 0.0
        %918 = vmatpush1.msra.mxu0 %v888
        %919 = vmatprep.subr.mxu0 0.0
        %920 = vmatpush1.msra.mxu0 %v889
        %921 = vmatprep.subr.mxu0 0.0
        %922 = vmatpush1.msra.mxu0 %v890
        %923 = vmatprep.subr.mxu0 0.0
        %924 = vmatpush1.msra.mxu0 0.0
        %925 = vmatprep.subr.mxu0 0.0
        %926 = vmatpush1.msra.mxu0 0.0
        %927 = vmatprep.subr.mxu0 0.0
        %928 = vmatpush1.msra.mxu0 0.0
        %929 = vmatprep.subr.mxu0 0.0
        %930 = vmatpush1.msra.mxu0 0.0
        %931 = vmatprep.subr.mxu0 0.0
        %932 = vmatpush1.msra.mxu0 0.0
        %933 = vmatprep.subr.mxu0 0.0
        %934 = vmatpush1.msra.mxu0 0.0
        %935 = vmatprep.subr.mxu0 0.0
        %936 = vmatpush1.msra.mxu0 0.0
        %937 = vmatprep.subr.mxu0 0.0
        %938 = vmatpush1.msra.mxu0 0.0
        %939 = vmatprep.subr.mxu0 0.0
        %940 = vmatpush1.msra.mxu0 0.0
        %941 = vmatprep.subr.mxu0 0.0
        %942 = vmatpush1.msra.mxu0 0.0
        %943 = vmatprep.subr.mxu0 0.0
        %944 = vmatpush1.msra.mxu0 0.0
        %945 = vmatprep.subr.mxu0 0.0
        %946 = vmatpush1.msra.mxu0 0.0
        %947 = vmatprep.subr.mxu0 0.0
        %948 = vmatpush1.msra.mxu0 0.0
        %949 = vmatprep.subr.mxu0 0.0
        %950 = vmatpush1.msra.mxu0 0.0
        %951 = vmatprep.subr.mxu0 0.0
        %952 = vmatpush1.msra.mxu0 0.0
        %953 = vmatprep.subr.mxu0 0.0
        %954 = vmatpush1.msra.mxu0 0.0
        %955 = vmatprep.mubr.f32.mxu0 0.0
        %956 = vmatmul.mubr.f32.gmra.mrb[0].mxu0 %v858
        %v957 = vpop.f32.mrb[0].mxu0
        %v958 = vadd.f32 0.0, %v957
        %v959 = vpop.f32.mrb[0].mxu0
        %960 = vmatprep.mubr.f32.mxu0 0.0
        %961 = vmatmul.mubr.f32.gmra.mrb[0].mxu0 %v859
        %v962 = vpop.f32.mrb[0].mxu0
        %v963 = vadd.f32 0.0, %v962
        %v964 = vpop.f32.mrb[0].mxu0
        %965 = vmatprep.mubr.f32.mxu0 0.0
        %966 = vmatmul.mubr.f32.gmra.mrb[0].mxu0 %v860
        %v967 = vpop.f32.mrb[0].mxu0
        %v968 = vadd.f32 0.0, %v967
        %v969 = vpop.f32.mrb[0].mxu0
        %970 = vmatprep.mubr.f32.mxu0 0.0
        %971 = vmatmul.mubr.f32.gmra.mrb[0].mxu0 %v861
        %v972 = vpop.f32.mrb[0].mxu0
        %v973 = vadd.f32 0.0, %v972
        %v974 = vpop.f32.mrb[0].mxu0
        %975 = vmatprep.mubr.f32.mxu0 0.0
        %976 = vmatmul.mubr.f32.gmra.mrb[0].mxu0 %v862
        %v977 = vpop.f32.mrb[0].mxu0
        %v978 = vadd.f32 0.0, %v977
        %v979 = vpop.f32.mrb[0].mxu0
        %980 = vmatprep.mubr.f32.mxu0 0.0
        %981 = vmatmul.mubr.f32.gmra.mrb[0].mxu0 %v863
        %v982 = vpop.f32.mrb[0].mxu0
        %v983 = vadd.f32 0.0, %v982
        %v984 = vpop.f32.mrb[0].mxu0
        %985 = vmatprep.mubr.f32.mxu0 0.0
        %986 = vmatmul.mubr.f32.gmra.mrb[0].mxu0 %v864
        %v987 = vpop.f32.mrb[0].mxu0
        %v988 = vadd.f32 0.0, %v987
        %v989 = vpop.f32.mrb[0].mxu0
        %990 = vmatprep.mubr.f32.mxu0 0.0
        %991 = vmatmul.mubr.f32.gmra.mrb[0].mxu0 %v865
        %v992 = vpop.f32.mrb[0].mxu0
        %v993 = vadd.f32 0.0, %v992
        %v994 = vpop.f32.mrb[0].mxu0
        %995 = vmatprep.mubr.f32.mxu0 0.0
        %996 = vmatmul.mubr.f32.gmra.mrb[0].mxu0 %v866
        %v997 = vpop.f32.mrb[0].mxu0
        %v998 = vadd.f32 0.0, %v997
        %v999 = vpop.f32.mrb[0].mxu0
        %1000 = vmatprep.mubr.f32.mxu0 0.0
        %1001 = vmatmul.mubr.f32.gmra.mrb[0].mxu0 %v867
        %v1002 = vpop.f32.mrb[0].mxu0
        %v1003 = vadd.f32 0.0, %v1002
        %v1004 = vpop.f32.mrb[0].mxu0
        %1005 = vmatprep.mubr.f32.mxu0 0.0
        %1006 = vmatmul.mubr.f32.gmra.mrb[0].mxu0 %v868
        %v1007 = vpop.f32.mrb[0].mxu0
        %v1008 = vadd.f32 0.0, %v1007
        %v1009 = vpop.f32.mrb[0].mxu0
        %1010 = vmatprep.mubr.f32.mxu0 0.0
        %1011 = vmatmul.mubr.f32.gmra.mrb[0].mxu0 %v869
        %v1012 = vpop.f32.mrb[0].mxu0
        %v1013 = vadd.f32 0.0, %v1012
        %v1014 = vpop.f32.mrb[0].mxu0
        %1015 = vmatprep.mubr.f32.mxu0 0.0
        %1016 = vmatmul.mubr.f32.gmra.mrb[0].mxu0 %v870
        %v1017 = vpop.f32.mrb[0].mxu0
        %v1018 = vadd.f32 0.0, %v1017
        %v1019 = vpop.f32.mrb[0].mxu0
        %1020 = vmatprep.mubr.f32.mxu0 0.0
        %1021 = vmatmul.mubr.f32.gmra.mrb[0].mxu0 %v871
        %v1022 = vpop.f32.mrb[0].mxu0
        %v1023 = vadd.f32 0.0, %v1022
        %v1024 = vpop.f32.mrb[0].mxu0
        %1025 = vmatprep.mubr.f32.mxu0 0.0
        %1026 = vmatmul.mubr.f32.gmra.mrb[0].mxu0 %v872
        %v1027 = vpop.f32.mrb[0].mxu0
        %v1028 = vadd.f32 0.0, %v1027
        %v1029 = vpop.f32.mrb[0].mxu0
        %1030 = vmatprep.mubr.f32.mxu0 0.0
        %1031 = vmatmul.mubr.f32.gmra.mrb[0].mxu0 %v873
        %v1032 = vpop.f32.mrb[0].mxu0
        %v1033 = vadd.f32 0.0, %v1032
        %v1034 = vpop.f32.mrb[0].mxu0
        %1035 = vdwg.mxu0
        %v1036 = vadd.f32 %v780, %v958
        %v1037 = vadd.f32 %v785, %v963
        %v1038 = vadd.f32 %v790, %v968
        %v1039 = vadd.f32 %v795, %v973
        %v1040 = vadd.f32 %v800, %v978
        %v1041 = vadd.f32 %v805, %v983
        %v1042 = vadd.f32 %v810, %v988
        %v1043 = vadd.f32 %v815, %v993
        %v1044 = vadd.f32 %v820, %v998
        %v1045 = vadd.f32 %v825, %v1003
        %v1046 = vadd.f32 %v830, %v1008
        %v1047 = vadd.f32 %v835, %v1013
        %v1048 = vadd.f32 %v840, %v1018
        %v1049 = vadd.f32 %v845, %v1023
        %v1050 = vadd.f32 %v850, %v1028
        %v1051 = vadd.f32 %v855, %v1033
        %v1052 = vld [vmem:[%s237 + $0x17] sm:$0xff]
        %v1053 = vld [vmem:[%s237 + $0x1f] sm:$0xff]
        %v1054 = vld [vmem:[%s237 + $0x27] sm:$0xff]
        %v1055 = vld [vmem:[%s237 + $0x2f] sm:$0xff]
        %v1056 = vld [vmem:[%s237 + $0x37] sm:$0xff]
        %v1057 = vld [vmem:[%s237 + $0x3f] sm:$0xff]
        %v1058 = vld [vmem:[%s237 + $0x47] sm:$0xff]
        %v1059 = vld [vmem:[%s237 + $0x4f] sm:$0xff]
        %v1060 = vld [vmem:[%s237 + $0x57] sm:$0xff]
        %v1061 = vld [vmem:[%s237 + $0x5f] sm:$0xff]
        %v1062 = vld [vmem:[%s237 + $0x67] sm:$0xff]
        %v1063 = vld [vmem:[%s237 + $0x6f] sm:$0xff]
        %v1064 = vld [vmem:[%s237 + $0x77] sm:$0xff]
        %v1065 = vld [vmem:[%s237 + $0x7f] sm:$0xff]
        %v1066 = vld [vmem:[%s237 + $0x87] sm:$0xff]
        %v1067 = vld [vmem:[%s237 + $0x8f] sm:$0xff]
        %s1068 = scalar_lea.vmem [#allocation6], 384
        %v1069 = vld [vmem:[%s1068] sm:$0xff]
        %v1070 = vld [vmem:[%s1068 + $0x8] sm:$0xff]
        %v1071 = vld [vmem:[%s1068 + $0x10] sm:$0xff]
        %v1072 = vld [vmem:[%s1068 + $0x18] sm:$0xff]
        %v1073 = vld [vmem:[%s1068 + $0x20] sm:$0xff]
        %v1074 = vld [vmem:[%s1068 + $0x28] sm:$0xff]
        %v1075 = vld [vmem:[%s1068 + $0x30] sm:$0xff]
        %v1076 = vld [vmem:[%s1068 + $0x38] sm:$0xff]
        %v1077 = vld [vmem:[%s1068 + $0x40] sm:$0xff]
        %v1078 = vld [vmem:[%s1068 + $0x48] sm:$0xff]
        %v1079 = vld [vmem:[%s1068 + $0x50] sm:$0xff]
        %v1080 = vld [vmem:[%s1068 + $0x58] sm:$0xff]
        %v1081 = vld [vmem:[%s1068 + $0x60] sm:$0xff]
        %v1082 = vld [vmem:[%s1068 + $0x68] sm:$0xff]
        %v1083 = vld [vmem:[%s1068 + $0x70] sm:$0xff]
        %v1084 = vld [vmem:[%s1068 + $0x78] sm:$0xff]
        %1085 = vmatprep.subr.mxu0 0.0
        %1086 = vmatpush1.msra.mxu0 %v1069
        %1087 = vmatprep.subr.mxu0 0.0
        %1088 = vmatpush1.msra.mxu0 %v1070
        %1089 = vmatprep.subr.mxu0 0.0
        %1090 = vmatpush1.msra.mxu0 %v1071
        %1091 = vmatprep.subr.mxu0 0.0
        %1092 = vmatpush1.msra.mxu0 %v1072
        %1093 = vmatprep.subr.mxu0 0.0
        %1094 = vmatpush1.msra.mxu0 %v1073
        %1095 = vmatprep.subr.mxu0 0.0
        %1096 = vmatpush1.msra.mxu0 %v1074
        %1097 = vmatprep.subr.mxu0 0.0
        %1098 = vmatpush1.msra.mxu0 %v1075
        %1099 = vmatprep.subr.mxu0 0.0
        %1100 = vmatpush1.msra.mxu0 %v1076
        %1101 = vmatprep.subr.mxu0 0.0
        %1102 = vmatpush1.msra.mxu0 %v1077
        %1103 = vmatprep.subr.mxu0 0.0
        %1104 = vmatpush1.msra.mxu0 %v1078
        %1105 = vmatprep.subr.mxu0 0.0
        %1106 = vmatpush1.msra.mxu0 %v1079
        %1107 = vmatprep.subr.mxu0 0.0
        %1108 = vmatpush1.msra.mxu0 %v1080
        %1109 = vmatprep.subr.mxu0 0.0
        %1110 = vmatpush1.msra.mxu0 %v1081
        %1111 = vmatprep.subr.mxu0 0.0
        %1112 = vmatpush1.msra.mxu0 %v1082
        %1113 = vmatprep.subr.mxu0 0.0
        %1114 = vmatpush1.msra.mxu0 %v1083
        %1115 = vmatprep.subr.mxu0 0.0
        %1116 = vmatpush1.msra.mxu0 %v1084
        %1117 = vmatprep.subr.mxu0 0.0
        %1118 = vmatpush1.msra.mxu0 0.0
        %1119 = vmatprep.subr.mxu0 0.0
        %1120 = vmatpush1.msra.mxu0 0.0
        %1121 = vmatprep.subr.mxu0 0.0
        %1122 = vmatpush1.msra.mxu0 0.0
        %1123 = vmatprep.subr.mxu0 0.0
        %1124 = vmatpush1.msra.mxu0 0.0
        %1125 = vmatprep.subr.mxu0 0.0
        %1126 = vmatpush1.msra.mxu0 0.0
        %1127 = vmatprep.subr.mxu0 0.0
        %1128 = vmatpush1.msra.mxu0 0.0
        %1129 = vmatprep.subr.mxu0 0.0
        %1130 = vmatpush1.msra.mxu0 0.0
        %1131 = vmatprep.subr.mxu0 0.0
        %1132 = vmatpush1.msra.mxu0 0.0
        %1133 = vmatprep.subr.mxu0 0.0
        %1134 = vmatpush1.msra.mxu0 0.0
        %1135 = vmatprep.subr.mxu0 0.0
        %1136 = vmatpush1.msra.mxu0 0.0
        %1137 = vmatprep.subr.mxu0 0.0
        %1138 = vmatpush1.msra.mxu0 0.0
        %1139 = vmatprep.subr.mxu0 0.0
        %1140 = vmatpush1.msra.mxu0 0.0
        %1141 = vmatprep.subr.mxu0 0.0
        %1142 = vmatpush1.msra.mxu0 0.0
        %1143 = vmatprep.subr.mxu0 0.0
        %1144 = vmatpush1.msra.mxu0 0.0
        %1145 = vmatprep.subr.mxu0 0.0
        %1146 = vmatpush1.msra.mxu0 0.0
        %1147 = vmatprep.subr.mxu0 0.0
        %1148 = vmatpush1.msra.mxu0 0.0
        %1149 = vmatprep.mubr.f32.mxu0 0.0
        %1150 = vmatmul.mubr.f32.gmra.mrb[0].mxu0 %v1052
        %v1151 = vpop.f32.mrb[0].mxu0
        %v1152 = vadd.f32 0.0, %v1151
        %v1153 = vpop.f32.mrb[0].mxu0
        %1154 = vmatprep.mubr.f32.mxu0 0.0
        %1155 = vmatmul.mubr.f32.gmra.mrb[0].mxu0 %v1053
        %v1156 = vpop.f32.mrb[0].mxu0
        %v1157 = vadd.f32 0.0, %v1156
        %v1158 = vpop.f32.mrb[0].mxu0
        %1159 = vmatprep.mubr.f32.mxu0 0.0
        %1160 = vmatmul.mubr.f32.gmra.mrb[0].mxu0 %v1054
        %v1161 = vpop.f32.mrb[0].mxu0
        %v1162 = vadd.f32 0.0, %v1161
        %v1163 = vpop.f32.mrb[0].mxu0
        %1164 = vmatprep.mubr.f32.mxu0 0.0
        %1165 = vmatmul.mubr.f32.gmra.mrb[0].mxu0 %v1055
        %v1166 = vpop.f32.mrb[0].mxu0
        %v1167 = vadd.f32 0.0, %v1166
        %v1168 = vpop.f32.mrb[0].mxu0
        %1169 = vmatprep.mubr.f32.mxu0 0.0
        %1170 = vmatmul.mubr.f32.gmra.mrb[0].mxu0 %v1056
        %v1171 = vpop.f32.mrb[0].mxu0
        %v1172 = vadd.f32 0.0, %v1171
        %v1173 = vpop.f32.mrb[0].mxu0
        %1174 = vmatprep.mubr.f32.mxu0 0.0
        %1175 = vmatmul.mubr.f32.gmra.mrb[0].mxu0 %v1057
        %v1176 = vpop.f32.mrb[0].mxu0
        %v1177 = vadd.f32 0.0, %v1176
        %v1178 = vpop.f32.mrb[0].mxu0
        %1179 = vmatprep.mubr.f32.mxu0 0.0
        %1180 = vmatmul.mubr.f32.gmra.mrb[0].mxu0 %v1058
        %v1181 = vpop.f32.mrb[0].mxu0
        %v1182 = vadd.f32 0.0, %v1181
        %v1183 = vpop.f32.mrb[0].mxu0
        %1184 = vmatprep.mubr.f32.mxu0 0.0
        %1185 = vmatmul.mubr.f32.gmra.mrb[0].mxu0 %v1059
        %v1186 = vpop.f32.mrb[0].mxu0
        %v1187 = vadd.f32 0.0, %v1186
        %v1188 = vpop.f32.mrb[0].mxu0
        %1189 = vmatprep.mubr.f32.mxu0 0.0
        %1190 = vmatmul.mubr.f32.gmra.mrb[0].mxu0 %v1060
        %v1191 = vpop.f32.mrb[0].mxu0
        %v1192 = vadd.f32 0.0, %v1191
        %v1193 = vpop.f32.mrb[0].mxu0
        %1194 = vmatprep.mubr.f32.mxu0 0.0
        %1195 = vmatmul.mubr.f32.gmra.mrb[0].mxu0 %v1061
        %v1196 = vpop.f32.mrb[0].mxu0
        %v1197 = vadd.f32 0.0, %v1196
        %v1198 = vpop.f32.mrb[0].mxu0
        %1199 = vmatprep.mubr.f32.mxu0 0.0
        %1200 = vmatmul.mubr.f32.gmra.mrb[0].mxu0 %v1062
        %v1201 = vpop.f32.mrb[0].mxu0
        %v1202 = vadd.f32 0.0, %v1201
        %v1203 = vpop.f32.mrb[0].mxu0
        %1204 = vmatprep.mubr.f32.mxu0 0.0
        %1205 = vmatmul.mubr.f32.gmra.mrb[0].mxu0 %v1063
        %v1206 = vpop.f32.mrb[0].mxu0
        %v1207 = vadd.f32 0.0, %v1206
        %v1208 = vpop.f32.mrb[0].mxu0
        %1209 = vmatprep.mubr.f32.mxu0 0.0
        %1210 = vmatmul.mubr.f32.gmra.mrb[0].mxu0 %v1064
        %v1211 = vpop.f32.mrb[0].mxu0
        %v1212 = vadd.f32 0.0, %v1211
        %v1213 = vpop.f32.mrb[0].mxu0
        %1214 = vmatprep.mubr.f32.mxu0 0.0
        %1215 = vmatmul.mubr.f32.gmra.mrb[0].mxu0 %v1065
        %v1216 = vpop.f32.mrb[0].mxu0
        %v1217 = vadd.f32 0.0, %v1216
        %v1218 = vpop.f32.mrb[0].mxu0
        %1219 = vmatprep.mubr.f32.mxu0 0.0
        %1220 = vmatmul.mubr.f32.gmra.mrb[0].mxu0 %v1066
        %v1221 = vpop.f32.mrb[0].mxu0
        %v1222 = vadd.f32 0.0, %v1221
        %v1223 = vpop.f32.mrb[0].mxu0
        %1224 = vmatprep.mubr.f32.mxu0 0.0
        %1225 = vmatmul.mubr.f32.gmra.mrb[0].mxu0 %v1067
        %v1226 = vpop.f32.mrb[0].mxu0
        %v1227 = vadd.f32 0.0, %v1226
        %v1228 = vpop.f32.mrb[0].mxu0
        %1229 = vdwg.mxu0
        %v1230 = vadd.f32 %v1036, %v1152
        %v1231 = vadd.f32 %v1037, %v1157
        %v1232 = vadd.f32 %v1038, %v1162
        %v1233 = vadd.f32 %v1039, %v1167
        %v1234 = vadd.f32 %v1040, %v1172
        %v1235 = vadd.f32 %v1041, %v1177
        %v1236 = vadd.f32 %v1042, %v1182
        %v1237 = vadd.f32 %v1043, %v1187
        %v1238 = vadd.f32 %v1044, %v1192
        %v1239 = vadd.f32 %v1045, %v1197
        %v1240 = vadd.f32 %v1046, %v1202
        %v1241 = vadd.f32 %v1047, %v1207
        %v1242 = vadd.f32 %v1048, %v1212
        %v1243 = vadd.f32 %v1049, %v1217
        %v1244 = vadd.f32 %v1050, %v1222
        %v1245 = vadd.f32 %v1051, %v1227
        %v1246 = vld [vmem:[%s237 + $0x18] sm:$0xff]
        %v1247 = vld [vmem:[%s237 + $0x20] sm:$0xff]
        %v1248 = vld [vmem:[%s237 + $0x28] sm:$0xff]
        %v1249 = vld [vmem:[%s237 + $0x30] sm:$0xff]
        %v1250 = vld [vmem:[%s237 + $0x38] sm:$0xff]
        %v1251 = vld [vmem:[%s237 + $0x40] sm:$0xff]
        %v1252 = vld [vmem:[%s237 + $0x48] sm:$0xff]
        %v1253 = vld [vmem:[%s237 + $0x50] sm:$0xff]
        %v1254 = vld [vmem:[%s237 + $0x58] sm:$0xff]
        %v1255 = vld [vmem:[%s237 + $0x60] sm:$0xff]
        %v1256 = vld [vmem:[%s237 + $0x68] sm:$0xff]
        %v1257 = vld [vmem:[%s237 + $0x70] sm:$0xff]
        %v1258 = vld [vmem:[%s237 + $0x78] sm:$0xff]
        %v1259 = vld [vmem:[%s237 + $0x80] sm:$0xff]
        %v1260 = vld [vmem:[%s237 + $0x88] sm:$0xff]
        %v1261 = vld [vmem:[%s237 + $0x90] sm:$0xff]
        %s1262 = scalar_lea.vmem [#allocation6], 512
        %v1263 = vld [vmem:[%s1262] sm:$0xff]
        %v1264 = vld [vmem:[%s1262 + $0x8] sm:$0xff]
        %v1265 = vld [vmem:[%s1262 + $0x10] sm:$0xff]
        %v1266 = vld [vmem:[%s1262 + $0x18] sm:$0xff]
        %v1267 = vld [vmem:[%s1262 + $0x20] sm:$0xff]
        %v1268 = vld [vmem:[%s1262 + $0x28] sm:$0xff]
        %v1269 = vld [vmem:[%s1262 + $0x30] sm:$0xff]
        %v1270 = vld [vmem:[%s1262 + $0x38] sm:$0xff]
        %v1271 = vld [vmem:[%s1262 + $0x40] sm:$0xff]
        %v1272 = vld [vmem:[%s1262 + $0x48] sm:$0xff]
        %v1273 = vld [vmem:[%s1262 + $0x50] sm:$0xff]
        %v1274 = vld [vmem:[%s1262 + $0x58] sm:$0xff]
        %v1275 = vld [vmem:[%s1262 + $0x60] sm:$0xff]
        %v1276 = vld [vmem:[%s1262 + $0x68] sm:$0xff]
        %v1277 = vld [vmem:[%s1262 + $0x70] sm:$0xff]
        %v1278 = vld [vmem:[%s1262 + $0x78] sm:$0xff]
        %1279 = vmatprep.subr.mxu0 0.0
        %1280 = vmatpush1.msra.mxu0 %v1263
        %1281 = vmatprep.subr.mxu0 0.0
        %1282 = vmatpush1.msra.mxu0 %v1264
        %1283 = vmatprep.subr.mxu0 0.0
        %1284 = vmatpush1.msra.mxu0 %v1265
        %1285 = vmatprep.subr.mxu0 0.0
        %1286 = vmatpush1.msra.mxu0 %v1266
        %1287 = vmatprep.subr.mxu0 0.0
        %1288 = vmatpush1.msra.mxu0 %v1267
        %1289 = vmatprep.subr.mxu0 0.0
        %1290 = vmatpush1.msra.mxu0 %v1268
        %1291 = vmatprep.subr.mxu0 0.0
        %1292 = vmatpush1.msra.mxu0 %v1269
        %1293 = vmatprep.subr.mxu0 0.0
        %1294 = vmatpush1.msra.mxu0 %v1270
        %1295 = vmatprep.subr.mxu0 0.0
        %1296 = vmatpush1.msra.mxu0 %v1271
        %1297 = vmatprep.subr.mxu0 0.0
        %1298 = vmatpush1.msra.mxu0 %v1272
        %1299 = vmatprep.subr.mxu0 0.0
        %1300 = vmatpush1.msra.mxu0 %v1273
        %1301 = vmatprep.subr.mxu0 0.0
        %1302 = vmatpush1.msra.mxu0 %v1274
        %1303 = vmatprep.subr.mxu0 0.0
        %1304 = vmatpush1.msra.mxu0 %v1275
        %1305 = vmatprep.subr.mxu0 0.0
        %1306 = vmatpush1.msra.mxu0 %v1276
        %1307 = vmatprep.subr.mxu0 0.0
        %1308 = vmatpush1.msra.mxu0 %v1277
        %1309 = vmatprep.subr.mxu0 0.0
        %1310 = vmatpush1.msra.mxu0 %v1278
        %1311 = vmatprep.subr.mxu0 0.0
        %1312 = vmatpush1.msra.mxu0 0.0
        %1313 = vmatprep.subr.mxu0 0.0
        %1314 = vmatpush1.msra.mxu0 0.0
        %1315 = vmatprep.subr.mxu0 0.0
        %1316 = vmatpush1.msra.mxu0 0.0
        %1317 = vmatprep.subr.mxu0 0.0
        %1318 = vmatpush1.msra.mxu0 0.0
        %1319 = vmatprep.subr.mxu0 0.0
        %1320 = vmatpush1.msra.mxu0 0.0
        %1321 = vmatprep.subr.mxu0 0.0
        %1322 = vmatpush1.msra.mxu0 0.0
        %1323 = vmatprep.subr.mxu0 0.0
        %1324 = vmatpush1.msra.mxu0 0.0
        %1325 = vmatprep.subr.mxu0 0.0
        %1326 = vmatpush1.msra.mxu0 0.0
        %1327 = vmatprep.subr.mxu0 0.0
        %1328 = vmatpush1.msra.mxu0 0.0
        %1329 = vmatprep.subr.mxu0 0.0
        %1330 = vmatpush1.msra.mxu0 0.0
        %1331 = vmatprep.subr.mxu0 0.0
        %1332 = vmatpush1.msra.mxu0 0.0
        %1333 = vmatprep.subr.mxu0 0.0
        %1334 = vmatpush1.msra.mxu0 0.0
        %1335 = vmatprep.subr.mxu0 0.0
        %1336 = vmatpush1.msra.mxu0 0.0
        %1337 = vmatprep.subr.mxu0 0.0
        %1338 = vmatpush1.msra.mxu0 0.0
        %1339 = vmatprep.subr.mxu0 0.0
        %1340 = vmatpush1.msra.mxu0 0.0
        %1341 = vmatprep.subr.mxu0 0.0
        %1342 = vmatpush1.msra.mxu0 0.0
        %1343 = vmatprep.mubr.f32.mxu0 0.0
        %1344 = vmatmul.mubr.f32.gmra.mrb[0].mxu0 %v1246
        %v1345 = vpop.f32.mrb[0].mxu0
        %v1346 = vadd.f32 0.0, %v1345
        %v1347 = vpop.f32.mrb[0].mxu0
        %1348 = vmatprep.mubr.f32.mxu0 0.0
        %1349 = vmatmul.mubr.f32.gmra.mrb[0].mxu0 %v1247
        %v1350 = vpop.f32.mrb[0].mxu0
        %v1351 = vadd.f32 0.0, %v1350
        %v1352 = vpop.f32.mrb[0].mxu0
        %1353 = vmatprep.mubr.f32.mxu0 0.0
        %1354 = vmatmul.mubr.f32.gmra.mrb[0].mxu0 %v1248
        %v1355 = vpop.f32.mrb[0].mxu0
        %v1356 = vadd.f32 0.0, %v1355
        %v1357 = vpop.f32.mrb[0].mxu0
        %1358 = vmatprep.mubr.f32.mxu0 0.0
        %1359 = vmatmul.mubr.f32.gmra.mrb[0].mxu0 %v1249
        %v1360 = vpop.f32.mrb[0].mxu0
        %v1361 = vadd.f32 0.0, %v1360
        %v1362 = vpop.f32.mrb[0].mxu0
        %1363 = vmatprep.mubr.f32.mxu0 0.0
        %1364 = vmatmul.mubr.f32.gmra.mrb[0].mxu0 %v1250
        %v1365 = vpop.f32.mrb[0].mxu0
        %v1366 = vadd.f32 0.0, %v1365
        %v1367 = vpop.f32.mrb[0].mxu0
        %1368 = vmatprep.mubr.f32.mxu0 0.0
        %1369 = vmatmul.mubr.f32.gmra.mrb[0].mxu0 %v1251
        %v1370 = vpop.f32.mrb[0].mxu0
        %v1371 = vadd.f32 0.0, %v1370
        %v1372 = vpop.f32.mrb[0].mxu0
        %1373 = vmatprep.mubr.f32.mxu0 0.0
        %1374 = vmatmul.mubr.f32.gmra.mrb[0].mxu0 %v1252
        %v1375 = vpop.f32.mrb[0].mxu0
        %v1376 = vadd.f32 0.0, %v1375
        %v1377 = vpop.f32.mrb[0].mxu0
        %1378 = vmatprep.mubr.f32.mxu0 0.0
        %1379 = vmatmul.mubr.f32.gmra.mrb[0].mxu0 %v1253
        %v1380 = vpop.f32.mrb[0].mxu0
        %v1381 = vadd.f32 0.0, %v1380
        %v1382 = vpop.f32.mrb[0].mxu0
        %1383 = vmatprep.mubr.f32.mxu0 0.0
        %1384 = vmatmul.mubr.f32.gmra.mrb[0].mxu0 %v1254
        %v1385 = vpop.f32.mrb[0].mxu0
        %v1386 = vadd.f32 0.0, %v1385
        %v1387 = vpop.f32.mrb[0].mxu0
        %1388 = vmatprep.mubr.f32.mxu0 0.0
        %1389 = vmatmul.mubr.f32.gmra.mrb[0].mxu0 %v1255
        %v1390 = vpop.f32.mrb[0].mxu0
        %v1391 = vadd.f32 0.0, %v1390
        %v1392 = vpop.f32.mrb[0].mxu0
        %1393 = vmatprep.mubr.f32.mxu0 0.0
        %1394 = vmatmul.mubr.f32.gmra.mrb[0].mxu0 %v1256
        %v1395 = vpop.f32.mrb[0].mxu0
        %v1396 = vadd.f32 0.0, %v1395
        %v1397 = vpop.f32.mrb[0].mxu0
        %1398 = vmatprep.mubr.f32.mxu0 0.0
        %1399 = vmatmul.mubr.f32.gmra.mrb[0].mxu0 %v1257
        %v1400 = vpop.f32.mrb[0].mxu0
        %v1401 = vadd.f32 0.0, %v1400
        %v1402 = vpop.f32.mrb[0].mxu0
        %1403 = vmatprep.mubr.f32.mxu0 0.0
        %1404 = vmatmul.mubr.f32.gmra.mrb[0].mxu0 %v1258
        %v1405 = vpop.f32.mrb[0].mxu0
        %v1406 = vadd.f32 0.0, %v1405
        %v1407 = vpop.f32.mrb[0].mxu0
        %1408 = vmatprep.mubr.f32.mxu0 0.0
        %1409 = vmatmul.mubr.f32.gmra.mrb[0].mxu0 %v1259
        %v1410 = vpop.f32.mrb[0].mxu0
        %v1411 = vadd.f32 0.0, %v1410
        %v1412 = vpop.f32.mrb[0].mxu0
        %1413 = vmatprep.mubr.f32.mxu0 0.0
        %1414 = vmatmul.mubr.f32.gmra.mrb[0].mxu0 %v1260
        %v1415 = vpop.f32.mrb[0].mxu0
        %v1416 = vadd.f32 0.0, %v1415
        %v1417 = vpop.f32.mrb[0].mxu0
        %1418 = vmatprep.mubr.f32.mxu0 0.0
        %1419 = vmatmul.mubr.f32.gmra.mrb[0].mxu0 %v1261
        %v1420 = vpop.f32.mrb[0].mxu0
        %v1421 = vadd.f32 0.0, %v1420
        %v1422 = vpop.f32.mrb[0].mxu0
        %1423 = vdwg.mxu0
        %v1424 = vadd.f32 %v1230, %v1346
        %v1425 = vadd.f32 %v1231, %v1351
        %v1426 = vadd.f32 %v1232, %v1356
        %v1427 = vadd.f32 %v1233, %v1361
        %v1428 = vadd.f32 %v1234, %v1366
        %v1429 = vadd.f32 %v1235, %v1371
        %v1430 = vadd.f32 %v1236, %v1376
        %v1431 = vadd.f32 %v1237, %v1381
        %v1432 = vadd.f32 %v1238, %v1386
        %v1433 = vadd.f32 %v1239, %v1391
        %v1434 = vadd.f32 %v1240, %v1396
        %v1435 = vadd.f32 %v1241, %v1401
        %v1436 = vadd.f32 %v1242, %v1406
        %v1437 = vadd.f32 %v1243, %v1411
        %v1438 = vadd.f32 %v1244, %v1416
        %v1439 = vadd.f32 %v1245, %v1421
        %v1440 = vld [vmem:[%s237 + $0x19] sm:$0xff]
        %v1441 = vld [vmem:[%s237 + $0x21] sm:$0xff]
        %v1442 = vld [vmem:[%s237 + $0x29] sm:$0xff]
        %v1443 = vld [vmem:[%s237 + $0x31] sm:$0xff]
        %v1444 = vld [vmem:[%s237 + $0x39] sm:$0xff]
        %v1445 = vld [vmem:[%s237 + $0x41] sm:$0xff]
        %v1446 = vld [vmem:[%s237 + $0x49] sm:$0xff]
        %v1447 = vld [vmem:[%s237 + $0x51] sm:$0xff]
        %v1448 = vld [vmem:[%s237 + $0x59] sm:$0xff]
        %v1449 = vld [vmem:[%s237 + $0x61] sm:$0xff]
        %v1450 = vld [vmem:[%s237 + $0x69] sm:$0xff]
        %v1451 = vld [vmem:[%s237 + $0x71] sm:$0xff]
        %v1452 = vld [vmem:[%s237 + $0x79] sm:$0xff]
        %v1453 = vld [vmem:[%s237 + $0x81] sm:$0xff]
        %v1454 = vld [vmem:[%s237 + $0x89] sm:$0xff]
        %v1455 = vld [vmem:[%s237 + $0x91] sm:$0xff]
        %s1456 = scalar_lea.vmem [#allocation6], 640
        %v1457 = vld [vmem:[%s1456] sm:$0xff]
        %v1458 = vld [vmem:[%s1456 + $0x8] sm:$0xff]
        %v1459 = vld [vmem:[%s1456 + $0x10] sm:$0xff]
        %v1460 = vld [vmem:[%s1456 + $0x18] sm:$0xff]
        %v1461 = vld [vmem:[%s1456 + $0x20] sm:$0xff]
        %v1462 = vld [vmem:[%s1456 + $0x28] sm:$0xff]
        %v1463 = vld [vmem:[%s1456 + $0x30] sm:$0xff]
        %v1464 = vld [vmem:[%s1456 + $0x38] sm:$0xff]
        %v1465 = vld [vmem:[%s1456 + $0x40] sm:$0xff]
        %v1466 = vld [vmem:[%s1456 + $0x48] sm:$0xff]
        %v1467 = vld [vmem:[%s1456 + $0x50] sm:$0xff]
        %v1468 = vld [vmem:[%s1456 + $0x58] sm:$0xff]
        %v1469 = vld [vmem:[%s1456 + $0x60] sm:$0xff]
        %v1470 = vld [vmem:[%s1456 + $0x68] sm:$0xff]
        %v1471 = vld [vmem:[%s1456 + $0x70] sm:$0xff]
        %v1472 = vld [vmem:[%s1456 + $0x78] sm:$0xff]
        %1473 = vmatprep.subr.mxu0 0.0
        %1474 = vmatpush1.msra.mxu0 %v1457
        %1475 = vmatprep.subr.mxu0 0.0
        %1476 = vmatpush1.msra.mxu0 %v1458
        %1477 = vmatprep.subr.mxu0 0.0
        %1478 = vmatpush1.msra.mxu0 %v1459
        %1479 = vmatprep.subr.mxu0 0.0
        %1480 = vmatpush1.msra.mxu0 %v1460
        %1481 = vmatprep.subr.mxu0 0.0
        %1482 = vmatpush1.msra.mxu0 %v1461
        %1483 = vmatprep.subr.mxu0 0.0
        %1484 = vmatpush1.msra.mxu0 %v1462
        %1485 = vmatprep.subr.mxu0 0.0
        %1486 = vmatpush1.msra.mxu0 %v1463
        %1487 = vmatprep.subr.mxu0 0.0
        %1488 = vmatpush1.msra.mxu0 %v1464
        %1489 = vmatprep.subr.mxu0 0.0
        %1490 = vmatpush1.msra.mxu0 %v1465
        %1491 = vmatprep.subr.mxu0 0.0
        %1492 = vmatpush1.msra.mxu0 %v1466
        %1493 = vmatprep.subr.mxu0 0.0
        %1494 = vmatpush1.msra.mxu0 %v1467
        %1495 = vmatprep.subr.mxu0 0.0
        %1496 = vmatpush1.msra.mxu0 %v1468
        %1497 = vmatprep.subr.mxu0 0.0
        %1498 = vmatpush1.msra.mxu0 %v1469
        %1499 = vmatprep.subr.mxu0 0.0
        %1500 = vmatpush1.msra.mxu0 %v1470
        %1501 = vmatprep.subr.mxu0 0.0
        %1502 = vmatpush1.msra.mxu0 %v1471
        %1503 = vmatprep.subr.mxu0 0.0
        %1504 = vmatpush1.msra.mxu0 %v1472
        %1505 = vmatprep.subr.mxu0 0.0
        %1506 = vmatpush1.msra.mxu0 0.0
        %1507 = vmatprep.subr.mxu0 0.0
        %1508 = vmatpush1.msra.mxu0 0.0
        %1509 = vmatprep.subr.mxu0 0.0
        %1510 = vmatpush1.msra.mxu0 0.0
        %1511 = vmatprep.subr.mxu0 0.0
        %1512 = vmatpush1.msra.mxu0 0.0
        %1513 = vmatprep.subr.mxu0 0.0
        %1514 = vmatpush1.msra.mxu0 0.0
        %1515 = vmatprep.subr.mxu0 0.0
        %1516 = vmatpush1.msra.mxu0 0.0
        %1517 = vmatprep.subr.mxu0 0.0
        %1518 = vmatpush1.msra.mxu0 0.0
        %1519 = vmatprep.subr.mxu0 0.0
        %1520 = vmatpush1.msra.mxu0 0.0
        %1521 = vmatprep.subr.mxu0 0.0
        %1522 = vmatpush1.msra.mxu0 0.0
        %1523 = vmatprep.subr.mxu0 0.0
        %1524 = vmatpush1.msra.mxu0 0.0
        %1525 = vmatprep.subr.mxu0 0.0
        %1526 = vmatpush1.msra.mxu0 0.0
        %1527 = vmatprep.subr.mxu0 0.0
        %1528 = vmatpush1.msra.mxu0 0.0
        %1529 = vmatprep.subr.mxu0 0.0
        %1530 = vmatpush1.msra.mxu0 0.0
        %1531 = vmatprep.subr.mxu0 0.0
        %1532 = vmatpush1.msra.mxu0 0.0
        %1533 = vmatprep.subr.mxu0 0.0
        %1534 = vmatpush1.msra.mxu0 0.0
        %1535 = vmatprep.subr.mxu0 0.0
        %1536 = vmatpush1.msra.mxu0 0.0
        %1537 = vmatprep.mubr.f32.mxu0 0.0
        %1538 = vmatmul.mubr.f32.gmra.mrb[0].mxu0 %v1440
        %v1539 = vpop.f32.mrb[0].mxu0
        %v1540 = vadd.f32 0.0, %v1539
        %v1541 = vpop.f32.mrb[0].mxu0
        %1542 = vmatprep.mubr.f32.mxu0 0.0
        %1543 = vmatmul.mubr.f32.gmra.mrb[0].mxu0 %v1441
        %v1544 = vpop.f32.mrb[0].mxu0
        %v1545 = vadd.f32 0.0, %v1544
        %v1546 = vpop.f32.mrb[0].mxu0
        %1547 = vmatprep.mubr.f32.mxu0 0.0
        %1548 = vmatmul.mubr.f32.gmra.mrb[0].mxu0 %v1442
        %v1549 = vpop.f32.mrb[0].mxu0
        %v1550 = vadd.f32 0.0, %v1549
        %v1551 = vpop.f32.mrb[0].mxu0
        %1552 = vmatprep.mubr.f32.mxu0 0.0
        %1553 = vmatmul.mubr.f32.gmra.mrb[0].mxu0 %v1443
        %v1554 = vpop.f32.mrb[0].mxu0
        %v1555 = vadd.f32 0.0, %v1554
        %v1556 = vpop.f32.mrb[0].mxu0
        %1557 = vmatprep.mubr.f32.mxu0 0.0
        %1558 = vmatmul.mubr.f32.gmra.mrb[0].mxu0 %v1444
        %v1559 = vpop.f32.mrb[0].mxu0
        %v1560 = vadd.f32 0.0, %v1559
        %v1561 = vpop.f32.mrb[0].mxu0
        %1562 = vmatprep.mubr.f32.mxu0 0.0
        %1563 = vmatmul.mubr.f32.gmra.mrb[0].mxu0 %v1445
        %v1564 = vpop.f32.mrb[0].mxu0
        %v1565 = vadd.f32 0.0, %v1564
        %v1566 = vpop.f32.mrb[0].mxu0
        %1567 = vmatprep.mubr.f32.mxu0 0.0
        %1568 = vmatmul.mubr.f32.gmra.mrb[0].mxu0 %v1446
        %v1569 = vpop.f32.mrb[0].mxu0
        %v1570 = vadd.f32 0.0, %v1569
        %v1571 = vpop.f32.mrb[0].mxu0
        %1572 = vmatprep.mubr.f32.mxu0 0.0
        %1573 = vmatmul.mubr.f32.gmra.mrb[0].mxu0 %v1447
        %v1574 = vpop.f32.mrb[0].mxu0
        %v1575 = vadd.f32 0.0, %v1574
        %v1576 = vpop.f32.mrb[0].mxu0
        %1577 = vmatprep.mubr.f32.mxu0 0.0
        %1578 = vmatmul.mubr.f32.gmra.mrb[0].mxu0 %v1448
        %v1579 = vpop.f32.mrb[0].mxu0
        %v1580 = vadd.f32 0.0, %v1579
        %v1581 = vpop.f32.mrb[0].mxu0
        %1582 = vmatprep.mubr.f32.mxu0 0.0
        %1583 = vmatmul.mubr.f32.gmra.mrb[0].mxu0 %v1449
        %v1584 = vpop.f32.mrb[0].mxu0
        %v1585 = vadd.f32 0.0, %v1584
        %v1586 = vpop.f32.mrb[0].mxu0
        %1587 = vmatprep.mubr.f32.mxu0 0.0
        %1588 = vmatmul.mubr.f32.gmra.mrb[0].mxu0 %v1450
        %v1589 = vpop.f32.mrb[0].mxu0
        %v1590 = vadd.f32 0.0, %v1589
        %v1591 = vpop.f32.mrb[0].mxu0
        %1592 = vmatprep.mubr.f32.mxu0 0.0
        %1593 = vmatmul.mubr.f32.gmra.mrb[0].mxu0 %v1451
        %v1594 = vpop.f32.mrb[0].mxu0
        %v1595 = vadd.f32 0.0, %v1594
        %v1596 = vpop.f32.mrb[0].mxu0
        %1597 = vmatprep.mubr.f32.mxu0 0.0
        %1598 = vmatmul.mubr.f32.gmra.mrb[0].mxu0 %v1452
        %v1599 = vpop.f32.mrb[0].mxu0
        %v1600 = vadd.f32 0.0, %v1599
        %v1601 = vpop.f32.mrb[0].mxu0
        %1602 = vmatprep.mubr.f32.mxu0 0.0
        %1603 = vmatmul.mubr.f32.gmra.mrb[0].mxu0 %v1453
        %v1604 = vpop.f32.mrb[0].mxu0
        %v1605 = vadd.f32 0.0, %v1604
        %v1606 = vpop.f32.mrb[0].mxu0
        %1607 = vmatprep.mubr.f32.mxu0 0.0
        %1608 = vmatmul.mubr.f32.gmra.mrb[0].mxu0 %v1454
        %v1609 = vpop.f32.mrb[0].mxu0
        %v1610 = vadd.f32 0.0, %v1609
        %v1611 = vpop.f32.mrb[0].mxu0
        %1612 = vmatprep.mubr.f32.mxu0 0.0
        %1613 = vmatmul.mubr.f32.gmra.mrb[0].mxu0 %v1455
        %v1614 = vpop.f32.mrb[0].mxu0
        %v1615 = vadd.f32 0.0, %v1614
        %v1616 = vpop.f32.mrb[0].mxu0
        %1617 = vdwg.mxu0
        %v1618 = vadd.f32 %v1424, %v1540
        %v1619 = vadd.f32 %v1425, %v1545
        %v1620 = vadd.f32 %v1426, %v1550
        %v1621 = vadd.f32 %v1427, %v1555
        %v1622 = vadd.f32 %v1428, %v1560
        %v1623 = vadd.f32 %v1429, %v1565
        %v1624 = vadd.f32 %v1430, %v1570
        %v1625 = vadd.f32 %v1431, %v1575
        %v1626 = vadd.f32 %v1432, %v1580
        %v1627 = vadd.f32 %v1433, %v1585
        %v1628 = vadd.f32 %v1434, %v1590
        %v1629 = vadd.f32 %v1435, %v1595
        %v1630 = vadd.f32 %v1436, %v1600
        %v1631 = vadd.f32 %v1437, %v1605
        %v1632 = vadd.f32 %v1438, %v1610
        %v1633 = vadd.f32 %v1439, %v1615
        %v1634 = vld [vmem:[%s237 + $0x27] sm:$0xff]
        %v1635 = vld [vmem:[%s237 + $0x2f] sm:$0xff]
        %v1636 = vld [vmem:[%s237 + $0x37] sm:$0xff]
        %v1637 = vld [vmem:[%s237 + $0x3f] sm:$0xff]
        %v1638 = vld [vmem:[%s237 + $0x47] sm:$0xff]
        %v1639 = vld [vmem:[%s237 + $0x4f] sm:$0xff]
        %v1640 = vld [vmem:[%s237 + $0x57] sm:$0xff]
        %v1641 = vld [vmem:[%s237 + $0x5f] sm:$0xff]
        %v1642 = vld [vmem:[%s237 + $0x67] sm:$0xff]
        %v1643 = vld [vmem:[%s237 + $0x6f] sm:$0xff]
        %v1644 = vld [vmem:[%s237 + $0x77] sm:$0xff]
        %v1645 = vld [vmem:[%s237 + $0x7f] sm:$0xff]
        %v1646 = vld [vmem:[%s237 + $0x87] sm:$0xff]
        %v1647 = vld [vmem:[%s237 + $0x8f] sm:$0xff]
        %v1648 = vld [vmem:[%s237 + $0x97] sm:$0xff]
        %v1649 = vld [vmem:[%s237 + $0x9f] sm:$0xff]
        %s1650 = scalar_lea.vmem [#allocation6], 768
        %v1651 = vld [vmem:[%s1650] sm:$0xff]
        %v1652 = vld [vmem:[%s1650 + $0x8] sm:$0xff]
        %v1653 = vld [vmem:[%s1650 + $0x10] sm:$0xff]
        %v1654 = vld [vmem:[%s1650 + $0x18] sm:$0xff]
        %v1655 = vld [vmem:[%s1650 + $0x20] sm:$0xff]
        %v1656 = vld [vmem:[%s1650 + $0x28] sm:$0xff]
        %v1657 = vld [vmem:[%s1650 + $0x30] sm:$0xff]
        %v1658 = vld [vmem:[%s1650 + $0x38] sm:$0xff]
        %v1659 = vld [vmem:[%s1650 + $0x40] sm:$0xff]
        %v1660 = vld [vmem:[%s1650 + $0x48] sm:$0xff]
        %v1661 = vld [vmem:[%s1650 + $0x50] sm:$0xff]
        %v1662 = vld [vmem:[%s1650 + $0x58] sm:$0xff]
        %v1663 = vld [vmem:[%s1650 + $0x60] sm:$0xff]
        %v1664 = vld [vmem:[%s1650 + $0x68] sm:$0xff]
        %v1665 = vld [vmem:[%s1650 + $0x70] sm:$0xff]
        %v1666 = vld [vmem:[%s1650 + $0x78] sm:$0xff]
        %1667 = vmatprep.subr.mxu0 0.0
        %1668 = vmatpush1.msra.mxu0 %v1651
        %1669 = vmatprep.subr.mxu0 0.0
        %1670 = vmatpush1.msra.mxu0 %v1652
        %1671 = vmatprep.subr.mxu0 0.0
        %1672 = vmatpush1.msra.mxu0 %v1653
        %1673 = vmatprep.subr.mxu0 0.0
        %1674 = vmatpush1.msra.mxu0 %v1654
        %1675 = vmatprep.subr.mxu0 0.0
        %1676 = vmatpush1.msra.mxu0 %v1655
        %1677 = vmatprep.subr.mxu0 0.0
        %1678 = vmatpush1.msra.mxu0 %v1656
        %1679 = vmatprep.subr.mxu0 0.0
        %1680 = vmatpush1.msra.mxu0 %v1657
        %1681 = vmatprep.subr.mxu0 0.0
        %1682 = vmatpush1.msra.mxu0 %v1658
        %1683 = vmatprep.subr.mxu0 0.0
        %1684 = vmatpush1.msra.mxu0 %v1659
        %1685 = vmatprep.subr.mxu0 0.0
        %1686 = vmatpush1.msra.mxu0 %v1660
        %1687 = vmatprep.subr.mxu0 0.0
        %1688 = vmatpush1.msra.mxu0 %v1661
        %1689 = vmatprep.subr.mxu0 0.0
        %1690 = vmatpush1.msra.mxu0 %v1662
        %1691 = vmatprep.subr.mxu0 0.0
        %1692 = vmatpush1.msra.mxu0 %v1663
        %1693 = vmatprep.subr.mxu0 0.0
        %1694 = vmatpush1.msra.mxu0 %v1664
        %1695 = vmatprep.subr.mxu0 0.0
        %1696 = vmatpush1.msra.mxu0 %v1665
        %1697 = vmatprep.subr.mxu0 0.0
        %1698 = vmatpush1.msra.mxu0 %v1666
        %1699 = vmatprep.subr.mxu0 0.0
        %1700 = vmatpush1.msra.mxu0 0.0
        %1701 = vmatprep.subr.mxu0 0.0
        %1702 = vmatpush1.msra.mxu0 0.0
        %1703 = vmatprep.subr.mxu0 0.0
        %1704 = vmatpush1.msra.mxu0 0.0
        %1705 = vmatprep.subr.mxu0 0.0
        %1706 = vmatpush1.msra.mxu0 0.0
        %1707 = vmatprep.subr.mxu0 0.0
        %1708 = vmatpush1.msra.mxu0 0.0
        %1709 = vmatprep.subr.mxu0 0.0
        %1710 = vmatpush1.msra.mxu0 0.0
        %1711 = vmatprep.subr.mxu0 0.0
        %1712 = vmatpush1.msra.mxu0 0.0
        %1713 = vmatprep.subr.mxu0 0.0
        %1714 = vmatpush1.msra.mxu0 0.0
        %1715 = vmatprep.subr.mxu0 0.0
        %1716 = vmatpush1.msra.mxu0 0.0
        %1717 = vmatprep.subr.mxu0 0.0
        %1718 = vmatpush1.msra.mxu0 0.0
        %1719 = vmatprep.subr.mxu0 0.0
        %1720 = vmatpush1.msra.mxu0 0.0
        %1721 = vmatprep.subr.mxu0 0.0
        %1722 = vmatpush1.msra.mxu0 0.0
        %1723 = vmatprep.subr.mxu0 0.0
        %1724 = vmatpush1.msra.mxu0 0.0
        %1725 = vmatprep.subr.mxu0 0.0
        %1726 = vmatpush1.msra.mxu0 0.0
        %1727 = vmatprep.subr.mxu0 0.0
        %1728 = vmatpush1.msra.mxu0 0.0
        %1729 = vmatprep.subr.mxu0 0.0
        %1730 = vmatpush1.msra.mxu0 0.0
        %1731 = vmatprep.mubr.f32.mxu0 0.0
        %1732 = vmatmul.mubr.f32.gmra.mrb[0].mxu0 %v1634
        %v1733 = vpop.f32.mrb[0].mxu0
        %v1734 = vadd.f32 0.0, %v1733
        %v1735 = vpop.f32.mrb[0].mxu0
        %1736 = vmatprep.mubr.f32.mxu0 0.0
        %1737 = vmatmul.mubr.f32.gmra.mrb[0].mxu0 %v1635
        %v1738 = vpop.f32.mrb[0].mxu0
        %v1739 = vadd.f32 0.0, %v1738
        %v1740 = vpop.f32.mrb[0].mxu0
        %1741 = vmatprep.mubr.f32.mxu0 0.0
        %1742 = vmatmul.mubr.f32.gmra.mrb[0].mxu0 %v1636
        %v1743 = vpop.f32.mrb[0].mxu0
        %v1744 = vadd.f32 0.0, %v1743
        %v1745 = vpop.f32.mrb[0].mxu0
        %1746 = vmatprep.mubr.f32.mxu0 0.0
        %1747 = vmatmul.mubr.f32.gmra.mrb[0].mxu0 %v1637
        %v1748 = vpop.f32.mrb[0].mxu0
        %v1749 = vadd.f32 0.0, %v1748
        %v1750 = vpop.f32.mrb[0].mxu0
        %1751 = vmatprep.mubr.f32.mxu0 0.0
        %1752 = vmatmul.mubr.f32.gmra.mrb[0].mxu0 %v1638
        %v1753 = vpop.f32.mrb[0].mxu0
        %v1754 = vadd.f32 0.0, %v1753
        %v1755 = vpop.f32.mrb[0].mxu0
        %1756 = vmatprep.mubr.f32.mxu0 0.0
        %1757 = vmatmul.mubr.f32.gmra.mrb[0].mxu0 %v1639
        %v1758 = vpop.f32.mrb[0].mxu0
        %v1759 = vadd.f32 0.0, %v1758
        %v1760 = vpop.f32.mrb[0].mxu0
        %1761 = vmatprep.mubr.f32.mxu0 0.0
        %1762 = vmatmul.mubr.f32.gmra.mrb[0].mxu0 %v1640
        %v1763 = vpop.f32.mrb[0].mxu0
        %v1764 = vadd.f32 0.0, %v1763
        %v1765 = vpop.f32.mrb[0].mxu0
        %1766 = vmatprep.mubr.f32.mxu0 0.0
        %1767 = vmatmul.mubr.f32.gmra.mrb[0].mxu0 %v1641
        %v1768 = vpop.f32.mrb[0].mxu0
        %v1769 = vadd.f32 0.0, %v1768
        %v1770 = vpop.f32.mrb[0].mxu0
        %1771 = vmatprep.mubr.f32.mxu0 0.0
        %1772 = vmatmul.mubr.f32.gmra.mrb[0].mxu0 %v1642
        %v1773 = vpop.f32.mrb[0].mxu0
        %v1774 = vadd.f32 0.0, %v1773
        %v1775 = vpop.f32.mrb[0].mxu0
        %1776 = vmatprep.mubr.f32.mxu0 0.0
        %1777 = vmatmul.mubr.f32.gmra.mrb[0].mxu0 %v1643
        %v1778 = vpop.f32.mrb[0].mxu0
        %v1779 = vadd.f32 0.0, %v1778
        %v1780 = vpop.f32.mrb[0].mxu0
        %1781 = vmatprep.mubr.f32.mxu0 0.0
        %1782 = vmatmul.mubr.f32.gmra.mrb[0].mxu0 %v1644
        %v1783 = vpop.f32.mrb[0].mxu0
        %v1784 = vadd.f32 0.0, %v1783
        %v1785 = vpop.f32.mrb[0].mxu0
        %1786 = vmatprep.mubr.f32.mxu0 0.0
        %1787 = vmatmul.mubr.f32.gmra.mrb[0].mxu0 %v1645
        %v1788 = vpop.f32.mrb[0].mxu0
        %v1789 = vadd.f32 0.0, %v1788
        %v1790 = vpop.f32.mrb[0].mxu0
        %1791 = vmatprep.mubr.f32.mxu0 0.0
        %1792 = vmatmul.mubr.f32.gmra.mrb[0].mxu0 %v1646
        %v1793 = vpop.f32.mrb[0].mxu0
        %v1794 = vadd.f32 0.0, %v1793
        %v1795 = vpop.f32.mrb[0].mxu0
        %1796 = vmatprep.mubr.f32.mxu0 0.0
        %1797 = vmatmul.mubr.f32.gmra.mrb[0].mxu0 %v1647
        %v1798 = vpop.f32.mrb[0].mxu0
        %v1799 = vadd.f32 0.0, %v1798
        %v1800 = vpop.f32.mrb[0].mxu0
        %1801 = vmatprep.mubr.f32.mxu0 0.0
        %1802 = vmatmul.mubr.f32.gmra.mrb[0].mxu0 %v1648
        %v1803 = vpop.f32.mrb[0].mxu0
        %v1804 = vadd.f32 0.0, %v1803
        %v1805 = vpop.f32.mrb[0].mxu0
        %1806 = vmatprep.mubr.f32.mxu0 0.0
        %1807 = vmatmul.mubr.f32.gmra.mrb[0].mxu0 %v1649
        %v1808 = vpop.f32.mrb[0].mxu0
        %v1809 = vadd.f32 0.0, %v1808
        %v1810 = vpop.f32.mrb[0].mxu0
        %1811 = vdwg.mxu0
        %v1812 = vadd.f32 %v1618, %v1734
        %v1813 = vadd.f32 %v1619, %v1739
        %v1814 = vadd.f32 %v1620, %v1744
        %v1815 = vadd.f32 %v1621, %v1749
        %v1816 = vadd.f32 %v1622, %v1754
        %v1817 = vadd.f32 %v1623, %v1759
        %v1818 = vadd.f32 %v1624, %v1764
        %v1819 = vadd.f32 %v1625, %v1769
        %v1820 = vadd.f32 %v1626, %v1774
        %v1821 = vadd.f32 %v1627, %v1779
        %v1822 = vadd.f32 %v1628, %v1784
        %v1823 = vadd.f32 %v1629, %v1789
        %v1824 = vadd.f32 %v1630, %v1794
        %v1825 = vadd.f32 %v1631, %v1799
        %v1826 = vadd.f32 %v1632, %v1804
        %v1827 = vadd.f32 %v1633, %v1809
        %v1828 = vld [vmem:[%s237 + $0x28] sm:$0xff]
        %v1829 = vld [vmem:[%s237 + $0x30] sm:$0xff]
        %v1830 = vld [vmem:[%s237 + $0x38] sm:$0xff]
        %v1831 = vld [vmem:[%s237 + $0x40] sm:$0xff]
        %v1832 = vld [vmem:[%s237 + $0x48] sm:$0xff]
        %v1833 = vld [vmem:[%s237 + $0x50] sm:$0xff]
        %v1834 = vld [vmem:[%s237 + $0x58] sm:$0xff]
        %v1835 = vld [vmem:[%s237 + $0x60] sm:$0xff]
        %v1836 = vld [vmem:[%s237 + $0x68] sm:$0xff]
        %v1837 = vld [vmem:[%s237 + $0x70] sm:$0xff]
        %v1838 = vld [vmem:[%s237 + $0x78] sm:$0xff]
        %v1839 = vld [vmem:[%s237 + $0x80] sm:$0xff]
        %v1840 = vld [vmem:[%s237 + $0x88] sm:$0xff]
        %v1841 = vld [vmem:[%s237 + $0x90] sm:$0xff]
        %v1842 = vld [vmem:[%s237 + $0x98] sm:$0xff]
        %v1843 = vld [vmem:[%s237 + $0xa0] sm:$0xff]
        %s1844 = scalar_lea.vmem [#allocation6], 896
        %v1845 = vld [vmem:[%s1844] sm:$0xff]
        %v1846 = vld [vmem:[%s1844 + $0x8] sm:$0xff]
        %v1847 = vld [vmem:[%s1844 + $0x10] sm:$0xff]
        %v1848 = vld [vmem:[%s1844 + $0x18] sm:$0xff]
        %v1849 = vld [vmem:[%s1844 + $0x20] sm:$0xff]
        %v1850 = vld [vmem:[%s1844 + $0x28] sm:$0xff]
        %v1851 = vld [vmem:[%s1844 + $0x30] sm:$0xff]
        %v1852 = vld [vmem:[%s1844 + $0x38] sm:$0xff]
        %v1853 = vld [vmem:[%s1844 + $0x40] sm:$0xff]
        %v1854 = vld [vmem:[%s1844 + $0x48] sm:$0xff]
        %v1855 = vld [vmem:[%s1844 + $0x50] sm:$0xff]
        %v1856 = vld [vmem:[%s1844 + $0x58] sm:$0xff]
        %v1857 = vld [vmem:[%s1844 + $0x60] sm:$0xff]
        %v1858 = vld [vmem:[%s1844 + $0x68] sm:$0xff]
        %v1859 = vld [vmem:[%s1844 + $0x70] sm:$0xff]
        %v1860 = vld [vmem:[%s1844 + $0x78] sm:$0xff]
        %1861 = vmatprep.subr.mxu0 0.0
        %1862 = vmatpush1.msra.mxu0 %v1845
        %1863 = vmatprep.subr.mxu0 0.0
        %1864 = vmatpush1.msra.mxu0 %v1846
        %1865 = vmatprep.subr.mxu0 0.0
        %1866 = vmatpush1.msra.mxu0 %v1847
        %1867 = vmatprep.subr.mxu0 0.0
        %1868 = vmatpush1.msra.mxu0 %v1848
        %1869 = vmatprep.subr.mxu0 0.0
        %1870 = vmatpush1.msra.mxu0 %v1849
        %1871 = vmatprep.subr.mxu0 0.0
        %1872 = vmatpush1.msra.mxu0 %v1850
        %1873 = vmatprep.subr.mxu0 0.0
        %1874 = vmatpush1.msra.mxu0 %v1851
        %1875 = vmatprep.subr.mxu0 0.0
        %1876 = vmatpush1.msra.mxu0 %v1852
        %1877 = vmatprep.subr.mxu0 0.0
        %1878 = vmatpush1.msra.mxu0 %v1853
        %1879 = vmatprep.subr.mxu0 0.0
        %1880 = vmatpush1.msra.mxu0 %v1854
        %1881 = vmatprep.subr.mxu0 0.0
        %1882 = vmatpush1.msra.mxu0 %v1855
        %1883 = vmatprep.subr.mxu0 0.0
        %1884 = vmatpush1.msra.mxu0 %v1856
        %1885 = vmatprep.subr.mxu0 0.0
        %1886 = vmatpush1.msra.mxu0 %v1857
        %1887 = vmatprep.subr.mxu0 0.0
        %1888 = vmatpush1.msra.mxu0 %v1858
        %1889 = vmatprep.subr.mxu0 0.0
        %1890 = vmatpush1.msra.mxu0 %v1859
        %1891 = vmatprep.subr.mxu0 0.0
        %1892 = vmatpush1.msra.mxu0 %v1860
        %1893 = vmatprep.subr.mxu0 0.0
        %1894 = vmatpush1.msra.mxu0 0.0
        %1895 = vmatprep.subr.mxu0 0.0
        %1896 = vmatpush1.msra.mxu0 0.0
        %1897 = vmatprep.subr.mxu0 0.0
        %1898 = vmatpush1.msra.mxu0 0.0
        %1899 = vmatprep.subr.mxu0 0.0
        %1900 = vmatpush1.msra.mxu0 0.0
        %1901 = vmatprep.subr.mxu0 0.0
        %1902 = vmatpush1.msra.mxu0 0.0
        %1903 = vmatprep.subr.mxu0 0.0
        %1904 = vmatpush1.msra.mxu0 0.0
        %1905 = vmatprep.subr.mxu0 0.0
        %1906 = vmatpush1.msra.mxu0 0.0
        %1907 = vmatprep.subr.mxu0 0.0
        %1908 = vmatpush1.msra.mxu0 0.0
        %1909 = vmatprep.subr.mxu0 0.0
        %1910 = vmatpush1.msra.mxu0 0.0
        %1911 = vmatprep.subr.mxu0 0.0
        %1912 = vmatpush1.msra.mxu0 0.0
        %1913 = vmatprep.subr.mxu0 0.0
        %1914 = vmatpush1.msra.mxu0 0.0
        %1915 = vmatprep.subr.mxu0 0.0
        %1916 = vmatpush1.msra.mxu0 0.0
        %1917 = vmatprep.subr.mxu0 0.0
        %1918 = vmatpush1.msra.mxu0 0.0
        %1919 = vmatprep.subr.mxu0 0.0
        %1920 = vmatpush1.msra.mxu0 0.0
        %1921 = vmatprep.subr.mxu0 0.0
        %1922 = vmatpush1.msra.mxu0 0.0
        %1923 = vmatprep.subr.mxu0 0.0
        %1924 = vmatpush1.msra.mxu0 0.0
        %1925 = vmatprep.mubr.f32.mxu0 0.0
        %1926 = vmatmul.mubr.f32.gmra.mrb[0].mxu0 %v1828
        %v1927 = vpop.f32.mrb[0].mxu0
        %v1928 = vadd.f32 0.0, %v1927
        %v1929 = vpop.f32.mrb[0].mxu0
        %1930 = vmatprep.mubr.f32.mxu0 0.0
        %1931 = vmatmul.mubr.f32.gmra.mrb[0].mxu0 %v1829
        %v1932 = vpop.f32.mrb[0].mxu0
        %v1933 = vadd.f32 0.0, %v1932
        %v1934 = vpop.f32.mrb[0].mxu0
        %1935 = vmatprep.mubr.f32.mxu0 0.0
        %1936 = vmatmul.mubr.f32.gmra.mrb[0].mxu0 %v1830
        %v1937 = vpop.f32.mrb[0].mxu0
        %v1938 = vadd.f32 0.0, %v1937
        %v1939 = vpop.f32.mrb[0].mxu0
        %1940 = vmatprep.mubr.f32.mxu0 0.0
        %1941 = vmatmul.mubr.f32.gmra.mrb[0].mxu0 %v1831
        %v1942 = vpop.f32.mrb[0].mxu0
        %v1943 = vadd.f32 0.0, %v1942
        %v1944 = vpop.f32.mrb[0].mxu0
        %1945 = vmatprep.mubr.f32.mxu0 0.0
        %1946 = vmatmul.mubr.f32.gmra.mrb[0].mxu0 %v1832
        %v1947 = vpop.f32.mrb[0].mxu0
        %v1948 = vadd.f32 0.0, %v1947
        %v1949 = vpop.f32.mrb[0].mxu0
        %1950 = vmatprep.mubr.f32.mxu0 0.0
        %1951 = vmatmul.mubr.f32.gmra.mrb[0].mxu0 %v1833
        %v1952 = vpop.f32.mrb[0].mxu0
        %v1953 = vadd.f32 0.0, %v1952
        %v1954 = vpop.f32.mrb[0].mxu0
        %1955 = vmatprep.mubr.f32.mxu0 0.0
        %1956 = vmatmul.mubr.f32.gmra.mrb[0].mxu0 %v1834
        %v1957 = vpop.f32.mrb[0].mxu0
        %v1958 = vadd.f32 0.0, %v1957
        %v1959 = vpop.f32.mrb[0].mxu0
        %1960 = vmatprep.mubr.f32.mxu0 0.0
        %1961 = vmatmul.mubr.f32.gmra.mrb[0].mxu0 %v1835
        %v1962 = vpop.f32.mrb[0].mxu0
        %v1963 = vadd.f32 0.0, %v1962
        %v1964 = vpop.f32.mrb[0].mxu0
        %1965 = vmatprep.mubr.f32.mxu0 0.0
        %1966 = vmatmul.mubr.f32.gmra.mrb[0].mxu0 %v1836
        %v1967 = vpop.f32.mrb[0].mxu0
        %v1968 = vadd.f32 0.0, %v1967
        %v1969 = vpop.f32.mrb[0].mxu0
        %1970 = vmatprep.mubr.f32.mxu0 0.0
        %1971 = vmatmul.mubr.f32.gmra.mrb[0].mxu0 %v1837
        %v1972 = vpop.f32.mrb[0].mxu0
        %v1973 = vadd.f32 0.0, %v1972
        %v1974 = vpop.f32.mrb[0].mxu0
        %1975 = vmatprep.mubr.f32.mxu0 0.0
        %1976 = vmatmul.mubr.f32.gmra.mrb[0].mxu0 %v1838
        %v1977 = vpop.f32.mrb[0].mxu0
        %v1978 = vadd.f32 0.0, %v1977
        %v1979 = vpop.f32.mrb[0].mxu0
        %1980 = vmatprep.mubr.f32.mxu0 0.0
        %1981 = vmatmul.mubr.f32.gmra.mrb[0].mxu0 %v1839
        %v1982 = vpop.f32.mrb[0].mxu0
        %v1983 = vadd.f32 0.0, %v1982
        %v1984 = vpop.f32.mrb[0].mxu0
        %1985 = vmatprep.mubr.f32.mxu0 0.0
        %1986 = vmatmul.mubr.f32.gmra.mrb[0].mxu0 %v1840
        %v1987 = vpop.f32.mrb[0].mxu0
        %v1988 = vadd.f32 0.0, %v1987
        %v1989 = vpop.f32.mrb[0].mxu0
        %1990 = vmatprep.mubr.f32.mxu0 0.0
        %1991 = vmatmul.mubr.f32.gmra.mrb[0].mxu0 %v1841
        %v1992 = vpop.f32.mrb[0].mxu0
        %v1993 = vadd.f32 0.0, %v1992
        %v1994 = vpop.f32.mrb[0].mxu0
        %1995 = vmatprep.mubr.f32.mxu0 0.0
        %1996 = vmatmul.mubr.f32.gmra.mrb[0].mxu0 %v1842
        %v1997 = vpop.f32.mrb[0].mxu0
        %v1998 = vadd.f32 0.0, %v1997
        %v1999 = vpop.f32.mrb[0].mxu0
        %2000 = vmatprep.mubr.f32.mxu0 0.0
        %2001 = vmatmul.mubr.f32.gmra.mrb[0].mxu0 %v1843
        %v2002 = vpop.f32.mrb[0].mxu0
        %v2003 = vadd.f32 0.0, %v2002
        %v2004 = vpop.f32.mrb[0].mxu0
        %2005 = vdwg.mxu0
        %v2006 = vadd.f32 %v1812, %v1928
        %v2007 = vadd.f32 %v1813, %v1933
        %v2008 = vadd.f32 %v1814, %v1938
        %v2009 = vadd.f32 %v1815, %v1943
        %v2010 = vadd.f32 %v1816, %v1948
        %v2011 = vadd.f32 %v1817, %v1953
        %v2012 = vadd.f32 %v1818, %v1958
        %v2013 = vadd.f32 %v1819, %v1963
        %v2014 = vadd.f32 %v1820, %v1968
        %v2015 = vadd.f32 %v1821, %v1973
        %v2016 = vadd.f32 %v1822, %v1978
        %v2017 = vadd.f32 %v1823, %v1983
        %v2018 = vadd.f32 %v1824, %v1988
        %v2019 = vadd.f32 %v1825, %v1993
        %v2020 = vadd.f32 %v1826, %v1998
        %v2021 = vadd.f32 %v1827, %v2003
        %v2022 = vld [vmem:[%s237 + $0x29] sm:$0xff]
        %v2023 = vld [vmem:[%s237 + $0x31] sm:$0xff]
        %v2024 = vld [vmem:[%s237 + $0x39] sm:$0xff]
        %v2025 = vld [vmem:[%s237 + $0x41] sm:$0xff]
        %v2026 = vld [vmem:[%s237 + $0x49] sm:$0xff]
        %v2027 = vld [vmem:[%s237 + $0x51] sm:$0xff]
        %v2028 = vld [vmem:[%s237 + $0x59] sm:$0xff]
        %v2029 = vld [vmem:[%s237 + $0x61] sm:$0xff]
        %v2030 = vld [vmem:[%s237 + $0x69] sm:$0xff]
        %v2031 = vld [vmem:[%s237 + $0x71] sm:$0xff]
        %v2032 = vld [vmem:[%s237 + $0x79] sm:$0xff]
        %v2033 = vld [vmem:[%s237 + $0x81] sm:$0xff]
        %v2034 = vld [vmem:[%s237 + $0x89] sm:$0xff]
        %v2035 = vld [vmem:[%s237 + $0x91] sm:$0xff]
        %v2036 = vld [vmem:[%s237 + $0x99] sm:$0xff]
        %v2037 = vld [vmem:[%s237 + $0xa1] sm:$0xff]
        %s2038 = scalar_lea.vmem [#allocation6], 1024
        %v2039 = vld [vmem:[%s2038] sm:$0xff]
        %v2040 = vld [vmem:[%s2038 + $0x8] sm:$0xff]
        %v2041 = vld [vmem:[%s2038 + $0x10] sm:$0xff]
        %v2042 = vld [vmem:[%s2038 + $0x18] sm:$0xff]
        %v2043 = vld [vmem:[%s2038 + $0x20] sm:$0xff]
        %v2044 = vld [vmem:[%s2038 + $0x28] sm:$0xff]
        %v2045 = vld [vmem:[%s2038 + $0x30] sm:$0xff]
        %v2046 = vld [vmem:[%s2038 + $0x38] sm:$0xff]
        %v2047 = vld [vmem:[%s2038 + $0x40] sm:$0xff]
        %v2048 = vld [vmem:[%s2038 + $0x48] sm:$0xff]
        %v2049 = vld [vmem:[%s2038 + $0x50] sm:$0xff]
        %v2050 = vld [vmem:[%s2038 + $0x58] sm:$0xff]
        %v2051 = vld [vmem:[%s2038 + $0x60] sm:$0xff]
        %v2052 = vld [vmem:[%s2038 + $0x68] sm:$0xff]
        %v2053 = vld [vmem:[%s2038 + $0x70] sm:$0xff]
        %v2054 = vld [vmem:[%s2038 + $0x78] sm:$0xff]
        %2055 = vmatprep.subr.mxu0 0.0
        %2056 = vmatpush1.msra.mxu0 %v2039
        %2057 = vmatprep.subr.mxu0 0.0
        %2058 = vmatpush1.msra.mxu0 %v2040
        %2059 = vmatprep.subr.mxu0 0.0
        %2060 = vmatpush1.msra.mxu0 %v2041
        %2061 = vmatprep.subr.mxu0 0.0
        %2062 = vmatpush1.msra.mxu0 %v2042
        %2063 = vmatprep.subr.mxu0 0.0
        %2064 = vmatpush1.msra.mxu0 %v2043
        %2065 = vmatprep.subr.mxu0 0.0
        %2066 = vmatpush1.msra.mxu0 %v2044
        %2067 = vmatprep.subr.mxu0 0.0
        %2068 = vmatpush1.msra.mxu0 %v2045
        %2069 = vmatprep.subr.mxu0 0.0
        %2070 = vmatpush1.msra.mxu0 %v2046
        %2071 = vmatprep.subr.mxu0 0.0
        %2072 = vmatpush1.msra.mxu0 %v2047
        %2073 = vmatprep.subr.mxu0 0.0
        %2074 = vmatpush1.msra.mxu0 %v2048
        %2075 = vmatprep.subr.mxu0 0.0
        %2076 = vmatpush1.msra.mxu0 %v2049
        %2077 = vmatprep.subr.mxu0 0.0
        %2078 = vmatpush1.msra.mxu0 %v2050
        %2079 = vmatprep.subr.mxu0 0.0
        %2080 = vmatpush1.msra.mxu0 %v2051
        %2081 = vmatprep.subr.mxu0 0.0
        %2082 = vmatpush1.msra.mxu0 %v2052
        %2083 = vmatprep.subr.mxu0 0.0
        %2084 = vmatpush1.msra.mxu0 %v2053
        %2085 = vmatprep.subr.mxu0 0.0
        %2086 = vmatpush1.msra.mxu0 %v2054
        %2087 = vmatprep.subr.mxu0 0.0
        %2088 = vmatpush1.msra.mxu0 0.0
        %2089 = vmatprep.subr.mxu0 0.0
        %2090 = vmatpush1.msra.mxu0 0.0
        %2091 = vmatprep.subr.mxu0 0.0
        %2092 = vmatpush1.msra.mxu0 0.0
        %2093 = vmatprep.subr.mxu0 0.0
        %2094 = vmatpush1.msra.mxu0 0.0
        %2095 = vmatprep.subr.mxu0 0.0
        %2096 = vmatpush1.msra.mxu0 0.0
        %2097 = vmatprep.subr.mxu0 0.0
        %2098 = vmatpush1.msra.mxu0 0.0
        %2099 = vmatprep.subr.mxu0 0.0
        %2100 = vmatpush1.msra.mxu0 0.0
        %2101 = vmatprep.subr.mxu0 0.0
        %2102 = vmatpush1.msra.mxu0 0.0
        %2103 = vmatprep.subr.mxu0 0.0
        %2104 = vmatpush1.msra.mxu0 0.0
        %2105 = vmatprep.subr.mxu0 0.0
        %2106 = vmatpush1.msra.mxu0 0.0
        %2107 = vmatprep.subr.mxu0 0.0
        %2108 = vmatpush1.msra.mxu0 0.0
        %2109 = vmatprep.subr.mxu0 0.0
        %2110 = vmatpush1.msra.mxu0 0.0
        %2111 = vmatprep.subr.mxu0 0.0
        %2112 = vmatpush1.msra.mxu0 0.0
        %2113 = vmatprep.subr.mxu0 0.0
        %2114 = vmatpush1.msra.mxu0 0.0
        %2115 = vmatprep.subr.mxu0 0.0
        %2116 = vmatpush1.msra.mxu0 0.0
        %2117 = vmatprep.subr.mxu0 0.0
        %2118 = vmatpush1.msra.mxu0 0.0
        %2119 = vmatprep.mubr.f32.mxu0 0.0
        %2120 = vmatmul.mubr.f32.gmra.mrb[0].mxu0 %v2022
        %v2121 = vpop.f32.mrb[0].mxu0
        %v2122 = vadd.f32 0.0, %v2121
        %v2123 = vpop.f32.mrb[0].mxu0
        %2124 = vmatprep.mubr.f32.mxu0 0.0
        %2125 = vmatmul.mubr.f32.gmra.mrb[0].mxu0 %v2023
        %v2126 = vpop.f32.mrb[0].mxu0
        %v2127 = vadd.f32 0.0, %v2126
        %v2128 = vpop.f32.mrb[0].mxu0
        %2129 = vmatprep.mubr.f32.mxu0 0.0
        %2130 = vmatmul.mubr.f32.gmra.mrb[0].mxu0 %v2024
        %v2131 = vpop.f32.mrb[0].mxu0
        %v2132 = vadd.f32 0.0, %v2131
        %v2133 = vpop.f32.mrb[0].mxu0
        %2134 = vmatprep.mubr.f32.mxu0 0.0
        %2135 = vmatmul.mubr.f32.gmra.mrb[0].mxu0 %v2025
        %v2136 = vpop.f32.mrb[0].mxu0
        %v2137 = vadd.f32 0.0, %v2136
        %v2138 = vpop.f32.mrb[0].mxu0
        %2139 = vmatprep.mubr.f32.mxu0 0.0
        %2140 = vmatmul.mubr.f32.gmra.mrb[0].mxu0 %v2026
        %v2141 = vpop.f32.mrb[0].mxu0
        %v2142 = vadd.f32 0.0, %v2141
        %v2143 = vpop.f32.mrb[0].mxu0
        %2144 = vmatprep.mubr.f32.mxu0 0.0
        %2145 = vmatmul.mubr.f32.gmra.mrb[0].mxu0 %v2027
        %v2146 = vpop.f32.mrb[0].mxu0
        %v2147 = vadd.f32 0.0, %v2146
        %v2148 = vpop.f32.mrb[0].mxu0
        %2149 = vmatprep.mubr.f32.mxu0 0.0
        %2150 = vmatmul.mubr.f32.gmra.mrb[0].mxu0 %v2028
        %v2151 = vpop.f32.mrb[0].mxu0
        %v2152 = vadd.f32 0.0, %v2151
        %v2153 = vpop.f32.mrb[0].mxu0
        %2154 = vmatprep.mubr.f32.mxu0 0.0
        %2155 = vmatmul.mubr.f32.gmra.mrb[0].mxu0 %v2029
        %v2156 = vpop.f32.mrb[0].mxu0
        %v2157 = vadd.f32 0.0, %v2156
        %v2158 = vpop.f32.mrb[0].mxu0
        %2159 = vmatprep.mubr.f32.mxu0 0.0
        %2160 = vmatmul.mubr.f32.gmra.mrb[0].mxu0 %v2030
        %v2161 = vpop.f32.mrb[0].mxu0
        %v2162 = vadd.f32 0.0, %v2161
        %v2163 = vpop.f32.mrb[0].mxu0
        %2164 = vmatprep.mubr.f32.mxu0 0.0
        %2165 = vmatmul.mubr.f32.gmra.mrb[0].mxu0 %v2031
        %v2166 = vpop.f32.mrb[0].mxu0
        %v2167 = vadd.f32 0.0, %v2166
        %v2168 = vpop.f32.mrb[0].mxu0
        %2169 = vmatprep.mubr.f32.mxu0 0.0
        %2170 = vmatmul.mubr.f32.gmra.mrb[0].mxu0 %v2032
        %v2171 = vpop.f32.mrb[0].mxu0
        %v2172 = vadd.f32 0.0, %v2171
        %v2173 = vpop.f32.mrb[0].mxu0
        %2174 = vmatprep.mubr.f32.mxu0 0.0
        %2175 = vmatmul.mubr.f32.gmra.mrb[0].mxu0 %v2033
        %v2176 = vpop.f32.mrb[0].mxu0
        %v2177 = vadd.f32 0.0, %v2176
        %v2178 = vpop.f32.mrb[0].mxu0
        %2179 = vmatprep.mubr.f32.mxu0 0.0
        %2180 = vmatmul.mubr.f32.gmra.mrb[0].mxu0 %v2034
        %v2181 = vpop.f32.mrb[0].mxu0
        %v2182 = vadd.f32 0.0, %v2181
        %v2183 = vpop.f32.mrb[0].mxu0
        %2184 = vmatprep.mubr.f32.mxu0 0.0
        %2185 = vmatmul.mubr.f32.gmra.mrb[0].mxu0 %v2035
        %v2186 = vpop.f32.mrb[0].mxu0
        %v2187 = vadd.f32 0.0, %v2186
        %v2188 = vpop.f32.mrb[0].mxu0
        %2189 = vmatprep.mubr.f32.mxu0 0.0
        %2190 = vmatmul.mubr.f32.gmra.mrb[0].mxu0 %v2036
        %v2191 = vpop.f32.mrb[0].mxu0
        %v2192 = vadd.f32 0.0, %v2191
        %v2193 = vpop.f32.mrb[0].mxu0
        %2194 = vmatprep.mubr.f32.mxu0 0.0
        %2195 = vmatmul.mubr.f32.gmra.mrb[0].mxu0 %v2037
        %v2196 = vpop.f32.mrb[0].mxu0
        %v2197 = vadd.f32 0.0, %v2196
        %v2198 = vpop.f32.mrb[0].mxu0
        %2199 = vdwg.mxu0
        %v2200 = vadd.f32 %v2006, %v2122
        %v2201 = vadd.f32 %v2007, %v2127
        %v2202 = vadd.f32 %v2008, %v2132
        %v2203 = vadd.f32 %v2009, %v2137
        %v2204 = vadd.f32 %v2010, %v2142
        %v2205 = vadd.f32 %v2011, %v2147
        %v2206 = vadd.f32 %v2012, %v2152
        %v2207 = vadd.f32 %v2013, %v2157
        %v2208 = vadd.f32 %v2014, %v2162
        %v2209 = vadd.f32 %v2015, %v2167
        %v2210 = vadd.f32 %v2016, %v2172
        %v2211 = vadd.f32 %v2017, %v2177
        %v2212 = vadd.f32 %v2018, %v2182
        %v2213 = vadd.f32 %v2019, %v2187
        %v2214 = vadd.f32 %v2020, %v2192
        %v2215 = vadd.f32 %v2021, %v2197
        %v2216 = vld [vmem:[%s2] sm:$0x1]
        %v2218 = vlaneseq
        %v2219 = vshrl.u32 %v2218, 7
        %v2220 = vsub.s32 0, %v2219
        %v2221 = vrot.slane %v2216, %v2220
        %v2223 = vadd.f32 %v2200, %v2221
        %v2224 = vadd.f32 %v2201, %v2221
        %v2225 = vadd.f32 %v2202, %v2221
        %v2226 = vadd.f32 %v2203, %v2221
        %v2227 = vadd.f32 %v2204, %v2221
        %v2228 = vadd.f32 %v2205, %v2221
        %v2229 = vadd.f32 %v2206, %v2221
        %v2230 = vadd.f32 %v2207, %v2221
        %v2231 = vadd.f32 %v2208, %v2221
        %v2232 = vadd.f32 %v2209, %v2221
        %v2233 = vadd.f32 %v2210, %v2221
        %v2234 = vadd.f32 %v2211, %v2221
        %v2235 = vadd.f32 %v2212, %v2221
        %v2236 = vadd.f32 %v2213, %v2221
        %v2237 = vadd.f32 %v2214, %v2221
        %v2238 = vadd.f32 %v2215, %v2221
        %v2239 = vmax.f32 %v2223, 0.0
        %v2240 = vmax.f32 %v2224, 0.0
        %v2241 = vmax.f32 %v2225, 0.0
        %v2242 = vmax.f32 %v2226, 0.0
        %v2243 = vmax.f32 %v2227, 0.0
        %v2244 = vmax.f32 %v2228, 0.0
        %v2245 = vmax.f32 %v2229, 0.0
        %v2246 = vmax.f32 %v2230, 0.0
        %v2247 = vmax.f32 %v2231, 0.0
        %v2248 = vmax.f32 %v2232, 0.0
        %v2249 = vmax.f32 %v2233, 0.0
        %v2250 = vmax.f32 %v2234, 0.0
        %v2251 = vmax.f32 %v2235, 0.0
        %v2252 = vmax.f32 %v2236, 0.0
        %v2253 = vmax.f32 %v2237, 0.0
        %v2254 = vmax.f32 %v2238, 0.0
        %v2255 = vsel %vm481, 1, 0
        %v2256 = vsel %vm482, 1, 0
        %v2257 = vsel %vm483, 1, 0
        %v2258 = vsel %vm484, 1, 0
        %v2259 = vsel %vm485, 1, 0
        %v2260 = vsel %vm486, 1, 0
        %v2261 = vsel %vm487, 1, 0
        %v2262 = vsel %vm488, 1, 0
        %v2263 = vsel %vm489, 1, 0
        %v2264 = vsel %vm490, 1, 0
        %v2265 = vsel %vm491, 1, 0
        %v2266 = vsel %vm492, 1, 0
        %v2267 = vsel %vm493, 1, 0
        %v2268 = vsel %vm494, 1, 0
        %v2269 = vsel %vm495, 1, 0
        %v2270 = vsel %vm496, 1, 0
        %vm2271 = vcmp.eq.s32.totalorder %v2255, 1
        %vm2272 = vcmp.eq.s32.totalorder %v2256, 1
        %vm2273 = vcmp.eq.s32.totalorder %v2257, 1
        %vm2274 = vcmp.eq.s32.totalorder %v2258, 1
        %vm2275 = vcmp.eq.s32.totalorder %v2259, 1
        %vm2276 = vcmp.eq.s32.totalorder %v2260, 1
        %vm2277 = vcmp.eq.s32.totalorder %v2261, 1
        %vm2278 = vcmp.eq.s32.totalorder %v2262, 1
        %vm2279 = vcmp.eq.s32.totalorder %v2263, 1
        %vm2280 = vcmp.eq.s32.totalorder %v2264, 1
        %vm2281 = vcmp.eq.s32.totalorder %v2265, 1
        %vm2282 = vcmp.eq.s32.totalorder %v2266, 1
        %vm2283 = vcmp.eq.s32.totalorder %v2267, 1
        %vm2284 = vcmp.eq.s32.totalorder %v2268, 1
        %vm2285 = vcmp.eq.s32.totalorder %v2269, 1
        %vm2286 = vcmp.eq.s32.totalorder %v2270, 1
        %v2287 = vsel %vm2271, %v2239, 0.0
        %v2288 = vsel %vm2272, %v2240, 0.0
        %v2289 = vsel %vm2273, %v2241, 0.0
        %v2290 = vsel %vm2274, %v2242, 0.0
        %v2291 = vsel %vm2275, %v2243, 0.0
        %v2292 = vsel %vm2276, %v2244, 0.0
        %v2293 = vsel %vm2277, %v2245, 0.0
        %v2294 = vsel %vm2278, %v2246, 0.0
        %v2295 = vsel %vm2279, %v2247, 0.0
        %v2296 = vsel %vm2280, %v2248, 0.0
        %v2297 = vsel %vm2281, %v2249, 0.0
        %v2298 = vsel %vm2282, %v2250, 0.0
        %v2299 = vsel %vm2283, %v2251, 0.0
        %v2300 = vsel %vm2284, %v2252, 0.0
        %v2301 = vsel %vm2285, %v2253, 0.0
        %v2302 = vsel %vm2286, %v2254, 0.0
        %2303 = vst [vmem:[#allocation2 + $0x18] sm:$0xff] %v2287
        %2304 = vst [vmem:[#allocation2 + $0x20] sm:$0xff] %v2288
        %2305 = vst [vmem:[#allocation2 + $0x28] sm:$0xff] %v2289
        %2306 = vst [vmem:[#allocation2 + $0x30] sm:$0xff] %v2290
        %2307 = vst [vmem:[#allocation2 + $0x38] sm:$0xff] %v2291
        %2308 = vst [vmem:[#allocation2 + $0x40] sm:$0xff] %v2292
        %2309 = vst [vmem:[#allocation2 + $0x48] sm:$0xff] %v2293
        %2310 = vst [vmem:[#allocation2 + $0x50] sm:$0xff] %v2294
        %2311 = vst [vmem:[#allocation2 + $0x58] sm:$0xff] %v2295
        %2312 = vst [vmem:[#allocation2 + $0x60] sm:$0xff] %v2296
        %2313 = vst [vmem:[#allocation2 + $0x68] sm:$0xff] %v2297
        %2314 = vst [vmem:[#allocation2 + $0x70] sm:$0xff] %v2298
        %2315 = vst [vmem:[#allocation2 + $0x78] sm:$0xff] %v2299
        %2316 = vst [vmem:[#allocation2 + $0x80] sm:$0xff] %v2300
        %2317 = vst [vmem:[#allocation2 + $0x88] sm:$0xff] %v2301
        %2318 = vst [vmem:[#allocation2 + $0x90] sm:$0xff] %v2302
        %v2319 = vld [vmem:[#allocation2 + $0x7] sm:$0xff]
        %v2320 = vld [vmem:[#allocation2 + $0xf] sm:$0xff]
        %v2321 = vld [vmem:[#allocation2 + $0x17] sm:$0xff]
        %v2322 = vld [vmem:[#allocation2 + $0x1f] sm:$0xff]
        %v2323 = vld [vmem:[#allocation2 + $0x27] sm:$0xff]
        %v2324 = vld [vmem:[#allocation2 + $0x2f] sm:$0xff]
        %v2325 = vld [vmem:[#allocation2 + $0x37] sm:$0xff]
        %v2326 = vld [vmem:[#allocation2 + $0x3f] sm:$0xff]
        %v2327 = vld [vmem:[#allocation2 + $0x47] sm:$0xff]
        %v2328 = vld [vmem:[#allocation2 + $0x4f] sm:$0xff]
        %v2329 = vld [vmem:[#allocation2 + $0x57] sm:$0xff]
        %v2330 = vld [vmem:[#allocation2 + $0x5f] sm:$0xff]
        %v2331 = vld [vmem:[#allocation2 + $0x67] sm:$0xff]
        %v2332 = vld [vmem:[#allocation2 + $0x6f] sm:$0xff]
        %v2333 = vld [vmem:[#allocation2 + $0x77] sm:$0xff]
        %v2334 = vld [vmem:[#allocation2 + $0x7f] sm:$0xff]
        %v2335 = vld [vmem:[#allocation8] sm:$0xff]
        %v2336 = vld [vmem:[#allocation8 + $0x8] sm:$0xff]
        %v2337 = vld [vmem:[#allocation8 + $0x10] sm:$0xff]
        %v2338 = vld [vmem:[#allocation8 + $0x18] sm:$0xff]
        %v2339 = vld [vmem:[#allocation8 + $0x20] sm:$0xff]
        %v2340 = vld [vmem:[#allocation8 + $0x28] sm:$0xff]
        %v2341 = vld [vmem:[#allocation8 + $0x30] sm:$0xff]
        %v2342 = vld [vmem:[#allocation8 + $0x38] sm:$0xff]
        %v2343 = vld [vmem:[#allocation8 + $0x40] sm:$0xff]
        %v2344 = vld [vmem:[#allocation8 + $0x48] sm:$0xff]
        %v2345 = vld [vmem:[#allocation8 + $0x50] sm:$0xff]
        %v2346 = vld [vmem:[#allocation8 + $0x58] sm:$0xff]
        %v2347 = vld [vmem:[#allocation8 + $0x60] sm:$0xff]
        %v2348 = vld [vmem:[#allocation8 + $0x68] sm:$0xff]
        %v2349 = vld [vmem:[#allocation8 + $0x70] sm:$0xff]
        %v2350 = vld [vmem:[#allocation8 + $0x78] sm:$0xff]
        %v2351 = vld [vmem:[#allocation2 + $0x8] sm:$0xff]
        %v2352 = vld [vmem:[#allocation2 + $0x10] sm:$0xff]
        %v2353 = vld [vmem:[#allocation2 + $0x18] sm:$0xff]
        %v2354 = vld [vmem:[#allocation2 + $0x20] sm:$0xff]
        %v2355 = vld [vmem:[#allocation2 + $0x28] sm:$0xff]
        %v2356 = vld [vmem:[#allocation2 + $0x30] sm:$0xff]
        %v2357 = vld [vmem:[#allocation2 + $0x38] sm:$0xff]
        %v2358 = vld [vmem:[#allocation2 + $0x40] sm:$0xff]
        %v2359 = vld [vmem:[#allocation2 + $0x48] sm:$0xff]
        %v2360 = vld [vmem:[#allocation2 + $0x50] sm:$0xff]
        %v2361 = vld [vmem:[#allocation2 + $0x58] sm:$0xff]
        %v2362 = vld [vmem:[#allocation2 + $0x60] sm:$0xff]
        %v2363 = vld [vmem:[#allocation2 + $0x68] sm:$0xff]
        %v2364 = vld [vmem:[#allocation2 + $0x70] sm:$0xff]
        %v2365 = vld [vmem:[#allocation2 + $0x78] sm:$0xff]
        %v2366 = vld [vmem:[#allocation2 + $0x80] sm:$0xff]
        %s2367 = scalar_lea.vmem [#allocation8], 128
        %v2368 = vld [vmem:[%s2367] sm:$0xff]
        %v2369 = vld [vmem:[%s2367 + $0x8] sm:$0xff]
        %v2370 = vld [vmem:[%s2367 + $0x10] sm:$0xff]
        %v2371 = vld [vmem:[%s2367 + $0x18] sm:$0xff]
        %v2372 = vld [vmem:[%s2367 + $0x20] sm:$0xff]
        %v2373 = vld [vmem:[%s2367 + $0x28] sm:$0xff]
        %v2374 = vld [vmem:[%s2367 + $0x30] sm:$0xff]
        %v2375 = vld [vmem:[%s2367 + $0x38] sm:$0xff]
        %v2376 = vld [vmem:[%s2367 + $0x40] sm:$0xff]
        %v2377 = vld [vmem:[%s2367 + $0x48] sm:$0xff]
        %v2378 = vld [vmem:[%s2367 + $0x50] sm:$0xff]
        %v2379 = vld [vmem:[%s2367 + $0x58] sm:$0xff]
        %v2380 = vld [vmem:[%s2367 + $0x60] sm:$0xff]
        %v2381 = vld [vmem:[%s2367 + $0x68] sm:$0xff]
        %v2382 = vld [vmem:[%s2367 + $0x70] sm:$0xff]
        %v2383 = vld [vmem:[%s2367 + $0x78] sm:$0xff]
        %2384 = vmatprep.subr.mxu0 0.0
        %2385 = vmatpush1.msra.mxu0 %v2368
        %2386 = vmatprep.subr.mxu0 0.0
        %2387 = vmatpush1.msra.mxu0 %v2369
        %2388 = vmatprep.subr.mxu0 0.0
        %2389 = vmatpush1.msra.mxu0 %v2370
        %2390 = vmatprep.subr.mxu0 0.0
        %2391 = vmatpush1.msra.mxu0 %v2371
        %2392 = vmatprep.subr.mxu0 0.0
        %2393 = vmatpush1.msra.mxu0 %v2372
        %2394 = vmatprep.subr.mxu0 0.0
        %2395 = vmatpush1.msra.mxu0 %v2373
        %2396 = vmatprep.subr.mxu0 0.0
        %2397 = vmatpush1.msra.mxu0 %v2374
        %2398 = vmatprep.subr.mxu0 0.0
        %2399 = vmatpush1.msra.mxu0 %v2375
        %2400 = vmatprep.subr.mxu0 0.0
        %2401 = vmatpush1.msra.mxu0 %v2376
        %2402 = vmatprep.subr.mxu0 0.0
        %2403 = vmatpush1.msra.mxu0 %v2377
        %2404 = vmatprep.subr.mxu0 0.0
        %2405 = vmatpush1.msra.mxu0 %v2378
        %2406 = vmatprep.subr.mxu0 0.0
        %2407 = vmatpush1.msra.mxu0 %v2379
        %2408 = vmatprep.subr.mxu0 0.0
        %2409 = vmatpush1.msra.mxu0 %v2380
        %2410 = vmatprep.subr.mxu0 0.0
        %2411 = vmatpush1.msra.mxu0 %v2381
        %2412 = vmatprep.subr.mxu0 0.0
        %2413 = vmatpush1.msra.mxu0 %v2382
        %2414 = vmatprep.subr.mxu0 0.0
        %2415 = vmatpush1.msra.mxu0 %v2383
        %2416 = vmatprep.subr.mxu0 0.0
        %2417 = vmatpush1.msra.mxu0 0.0
        %2418 = vmatprep.subr.mxu0 0.0
        %2419 = vmatpush1.msra.mxu0 0.0
        %2420 = vmatprep.subr.mxu0 0.0
        %2421 = vmatpush1.msra.mxu0 0.0
        %2422 = vmatprep.subr.mxu0 0.0
        %2423 = vmatpush1.msra.mxu0 0.0
        %2424 = vmatprep.subr.mxu0 0.0
        %2425 = vmatpush1.msra.mxu0 0.0
        %2426 = vmatprep.subr.mxu0 0.0
        %2427 = vmatpush1.msra.mxu0 0.0
        %2428 = vmatprep.subr.mxu0 0.0
        %2429 = vmatpush1.msra.mxu0 0.0
        %2430 = vmatprep.subr.mxu0 0.0
        %2431 = vmatpush1.msra.mxu0 0.0
        %2432 = vmatprep.subr.mxu0 0.0
        %2433 = vmatpush1.msra.mxu0 0.0
        %2434 = vmatprep.subr.mxu0 0.0
        %2435 = vmatpush1.msra.mxu0 0.0
        %2436 = vmatprep.subr.mxu0 0.0
        %2437 = vmatpush1.msra.mxu0 0.0
        %2438 = vmatprep.subr.mxu0 0.0
        %2439 = vmatpush1.msra.mxu0 0.0
        %2440 = vmatprep.subr.mxu0 0.0
        %2441 = vmatpush1.msra.mxu0 0.0
        %2442 = vmatprep.subr.mxu0 0.0
        %2443 = vmatpush1.msra.mxu0 0.0
        %2444 = vmatprep.subr.mxu0 0.0
        %2445 = vmatpush1.msra.mxu0 0.0
        %2446 = vmatprep.subr.mxu0 0.0
        %2447 = vmatpush1.msra.mxu0 0.0
        %2448 = vmatprep.mubr.f32.mxu0 0.0
        %2449 = vmatmul.mubr.f32.gmra.mrb[0].mxu0 %v2351
        %v2450 = vpop.f32.mrb[0].mxu0
        %v2451 = vadd.f32 0.0, %v2450
        %v2452 = vpop.f32.mrb[0].mxu0
        %2453 = vmatprep.mubr.f32.mxu0 0.0
        %2454 = vmatmul.mubr.f32.gmra.mrb[0].mxu0 %v2352
        %v2455 = vpop.f32.mrb[0].mxu0
        %v2456 = vadd.f32 0.0, %v2455
        %v2457 = vpop.f32.mrb[0].mxu0
        %2458 = vmatprep.mubr.f32.mxu0 0.0
        %2459 = vmatmul.mubr.f32.gmra.mrb[0].mxu0 %v2353
        %v2460 = vpop.f32.mrb[0].mxu0
        %v2461 = vadd.f32 0.0, %v2460
        %v2462 = vpop.f32.mrb[0].mxu0
        %2463 = vmatprep.mubr.f32.mxu0 0.0
        %2464 = vmatmul.mubr.f32.gmra.mrb[0].mxu0 %v2354
        %v2465 = vpop.f32.mrb[0].mxu0
        %v2466 = vadd.f32 0.0, %v2465
        %v2467 = vpop.f32.mrb[0].mxu0
        %2468 = vmatprep.mubr.f32.mxu0 0.0
        %2469 = vmatmul.mubr.f32.gmra.mrb[0].mxu0 %v2355
        %v2470 = vpop.f32.mrb[0].mxu0
        %v2471 = vadd.f32 0.0, %v2470
        %v2472 = vpop.f32.mrb[0].mxu0
        %2473 = vmatprep.mubr.f32.mxu0 0.0
        %2474 = vmatmul.mubr.f32.gmra.mrb[0].mxu0 %v2356
        %v2475 = vpop.f32.mrb[0].mxu0
        %v2476 = vadd.f32 0.0, %v2475
        %v2477 = vpop.f32.mrb[0].mxu0
        %2478 = vmatprep.mubr.f32.mxu0 0.0
        %2479 = vmatmul.mubr.f32.gmra.mrb[0].mxu0 %v2357
        %v2480 = vpop.f32.mrb[0].mxu0
        %v2481 = vadd.f32 0.0, %v2480
        %v2482 = vpop.f32.mrb[0].mxu0
        %2483 = vmatprep.mubr.f32.mxu0 0.0
        %2484 = vmatmul.mubr.f32.gmra.mrb[0].mxu0 %v2358
        %v2485 = vpop.f32.mrb[0].mxu0
        %v2486 = vadd.f32 0.0, %v2485
        %v2487 = vpop.f32.mrb[0].mxu0
        %2488 = vmatprep.mubr.f32.mxu0 0.0
        %2489 = vmatmul.mubr.f32.gmra.mrb[0].mxu0 %v2359
        %v2490 = vpop.f32.mrb[0].mxu0
        %v2491 = vadd.f32 0.0, %v2490
        %v2492 = vpop.f32.mrb[0].mxu0
        %2493 = vmatprep.mubr.f32.mxu0 0.0
        %2494 = vmatmul.mubr.f32.gmra.mrb[0].mxu0 %v2360
        %v2495 = vpop.f32.mrb[0].mxu0
        %v2496 = vadd.f32 0.0, %v2495
        %v2497 = vpop.f32.mrb[0].mxu0
        %2498 = vmatprep.mubr.f32.mxu0 0.0
        %2499 = vmatmul.mubr.f32.gmra.mrb[0].mxu0 %v2361
        %v2500 = vpop.f32.mrb[0].mxu0
        %v2501 = vadd.f32 0.0, %v2500
        %v2502 = vpop.f32.mrb[0].mxu0
        %2503 = vmatprep.mubr.f32.mxu0 0.0
        %2504 = vmatmul.mubr.f32.gmra.mrb[0].mxu0 %v2362
        %v2505 = vpop.f32.mrb[0].mxu0
        %v2506 = vadd.f32 0.0, %v2505
        %v2507 = vpop.f32.mrb[0].mxu0
        %2508 = vmatprep.mubr.f32.mxu0 0.0
        %2509 = vmatmul.mubr.f32.gmra.mrb[0].mxu0 %v2363
        %v2510 = vpop.f32.mrb[0].mxu0
        %v2511 = vadd.f32 0.0, %v2510
        %v2512 = vpop.f32.mrb[0].mxu0
        %2513 = vmatprep.mubr.f32.mxu0 0.0
        %2514 = vmatmul.mubr.f32.gmra.mrb[0].mxu0 %v2364
        %v2515 = vpop.f32.mrb[0].mxu0
        %v2516 = vadd.f32 0.0, %v2515
        %v2517 = vpop.f32.mrb[0].mxu0
        %2518 = vmatprep.mubr.f32.mxu0 0.0
        %2519 = vmatmul.mubr.f32.gmra.mrb[0].mxu0 %v2365
        %v2520 = vpop.f32.mrb[0].mxu0
        %v2521 = vadd.f32 0.0, %v2520
        %v2522 = vpop.f32.mrb[0].mxu0
        %2523 = vmatprep.mubr.f32.mxu0 0.0
        %2524 = vmatmul.mubr.f32.gmra.mrb[0].mxu0 %v2366
        %v2525 = vpop.f32.mrb[0].mxu0
        %v2526 = vadd.f32 0.0, %v2525
        %v2527 = vpop.f32.mrb[0].mxu0
        %2528 = vdwg.mxu0
        %2529 = vmatprep.subr.mxu0 0.0
        %2530 = vmatpush1.msra.mxu0 %v2335
        %2531 = vmatprep.subr.mxu0 0.0
        %2532 = vmatpush1.msra.mxu0 %v2336
        %2533 = vmatprep.subr.mxu0 0.0
        %2534 = vmatpush1.msra.mxu0 %v2337
        %2535 = vmatprep.subr.mxu0 0.0
        %2536 = vmatpush1.msra.mxu0 %v2338
        %2537 = vmatprep.subr.mxu0 0.0
        %2538 = vmatpush1.msra.mxu0 %v2339
        %2539 = vmatprep.subr.mxu0 0.0
        %2540 = vmatpush1.msra.mxu0 %v2340
        %2541 = vmatprep.subr.mxu0 0.0
        %2542 = vmatpush1.msra.mxu0 %v2341
        %2543 = vmatprep.subr.mxu0 0.0
        %2544 = vmatpush1.msra.mxu0 %v2342
        %2545 = vmatprep.subr.mxu0 0.0
        %2546 = vmatpush1.msra.mxu0 %v2343
        %2547 = vmatprep.subr.mxu0 0.0
        %2548 = vmatpush1.msra.mxu0 %v2344
        %2549 = vmatprep.subr.mxu0 0.0
        %2550 = vmatpush1.msra.mxu0 %v2345
        %2551 = vmatprep.subr.mxu0 0.0
        %2552 = vmatpush1.msra.mxu0 %v2346
        %2553 = vmatprep.subr.mxu0 0.0
        %2554 = vmatpush1.msra.mxu0 %v2347
        %2555 = vmatprep.subr.mxu0 0.0
        %2556 = vmatpush1.msra.mxu0 %v2348
        %2557 = vmatprep.subr.mxu0 0.0
        %2558 = vmatpush1.msra.mxu0 %v2349
        %2559 = vmatprep.subr.mxu0 0.0
        %2560 = vmatpush1.msra.mxu0 %v2350
        %2561 = vmatprep.subr.mxu0 0.0
        %2562 = vmatpush1.msra.mxu0 0.0
        %2563 = vmatprep.subr.mxu0 0.0
        %2564 = vmatpush1.msra.mxu0 0.0
        %2565 = vmatprep.subr.mxu0 0.0
        %2566 = vmatpush1.msra.mxu0 0.0
        %2567 = vmatprep.subr.mxu0 0.0
        %2568 = vmatpush1.msra.mxu0 0.0
        %2569 = vmatprep.subr.mxu0 0.0
        %2570 = vmatpush1.msra.mxu0 0.0
        %2571 = vmatprep.subr.mxu0 0.0
        %2572 = vmatpush1.msra.mxu0 0.0
        %2573 = vmatprep.subr.mxu0 0.0
        %2574 = vmatpush1.msra.mxu0 0.0
        %2575 = vmatprep.subr.mxu0 0.0
        %2576 = vmatpush1.msra.mxu0 0.0
        %2577 = vmatprep.subr.mxu0 0.0
        %2578 = vmatpush1.msra.mxu0 0.0
        %2579 = vmatprep.subr.mxu0 0.0
        %2580 = vmatpush1.msra.mxu0 0.0
        %2581 = vmatprep.subr.mxu0 0.0
        %2582 = vmatpush1.msra.mxu0 0.0
        %2583 = vmatprep.subr.mxu0 0.0
        %2584 = vmatpush1.msra.mxu0 0.0
        %2585 = vmatprep.subr.mxu0 0.0
        %2586 = vmatpush1.msra.mxu0 0.0
        %2587 = vmatprep.subr.mxu0 0.0
        %2588 = vmatpush1.msra.mxu0 0.0
        %2589 = vmatprep.subr.mxu0 0.0
        %2590 = vmatpush1.msra.mxu0 0.0
        %2591 = vmatprep.subr.mxu0 0.0
        %2592 = vmatpush1.msra.mxu0 0.0
        %2593 = vmatprep.mubr.f32.mxu0 0.0
        %2594 = vmatmul.mubr.f32.gmra.mrb[0].mxu0 %v2319
        %v2595 = vpop.f32.mrb[0].mxu0
        %v2596 = vadd.f32 %v2451, %v2595
        %v2597 = vpop.f32.mrb[0].mxu0
        %2598 = vmatprep.mubr.f32.mxu0 0.0
        %2599 = vmatmul.mubr.f32.gmra.mrb[0].mxu0 %v2320
        %v2600 = vpop.f32.mrb[0].mxu0
        %v2601 = vadd.f32 %v2456, %v2600
        %v2602 = vpop.f32.mrb[0].mxu0
        %2603 = vmatprep.mubr.f32.mxu0 0.0
        %2604 = vmatmul.mubr.f32.gmra.mrb[0].mxu0 %v2321
        %v2605 = vpop.f32.mrb[0].mxu0
        %v2606 = vadd.f32 %v2461, %v2605
        %v2607 = vpop.f32.mrb[0].mxu0
        %2608 = vmatprep.mubr.f32.mxu0 0.0
        %2609 = vmatmul.mubr.f32.gmra.mrb[0].mxu0 %v2322
        %v2610 = vpop.f32.mrb[0].mxu0
        %v2611 = vadd.f32 %v2466, %v2610
        %v2612 = vpop.f32.mrb[0].mxu0
        %2613 = vmatprep.mubr.f32.mxu0 0.0
        %2614 = vmatmul.mubr.f32.gmra.mrb[0].mxu0 %v2323
        %v2615 = vpop.f32.mrb[0].mxu0
        %v2616 = vadd.f32 %v2471, %v2615
        %v2617 = vpop.f32.mrb[0].mxu0
        %2618 = vmatprep.mubr.f32.mxu0 0.0
        %2619 = vmatmul.mubr.f32.gmra.mrb[0].mxu0 %v2324
        %v2620 = vpop.f32.mrb[0].mxu0
        %v2621 = vadd.f32 %v2476, %v2620
        %v2622 = vpop.f32.mrb[0].mxu0
        %2623 = vmatprep.mubr.f32.mxu0 0.0
        %2624 = vmatmul.mubr.f32.gmra.mrb[0].mxu0 %v2325
        %v2625 = vpop.f32.mrb[0].mxu0
        %v2626 = vadd.f32 %v2481, %v2625
        %v2627 = vpop.f32.mrb[0].mxu0
        %2628 = vmatprep.mubr.f32.mxu0 0.0
        %2629 = vmatmul.mubr.f32.gmra.mrb[0].mxu0 %v2326
        %v2630 = vpop.f32.mrb[0].mxu0
        %v2631 = vadd.f32 %v2486, %v2630
        %v2632 = vpop.f32.mrb[0].mxu0
        %2633 = vmatprep.mubr.f32.mxu0 0.0
        %2634 = vmatmul.mubr.f32.gmra.mrb[0].mxu0 %v2327
        %v2635 = vpop.f32.mrb[0].mxu0
        %v2636 = vadd.f32 %v2491, %v2635
        %v2637 = vpop.f32.mrb[0].mxu0
        %2638 = vmatprep.mubr.f32.mxu0 0.0
        %2639 = vmatmul.mubr.f32.gmra.mrb[0].mxu0 %v2328
        %v2640 = vpop.f32.mrb[0].mxu0
        %v2641 = vadd.f32 %v2496, %v2640
        %v2642 = vpop.f32.mrb[0].mxu0
        %2643 = vmatprep.mubr.f32.mxu0 0.0
        %2644 = vmatmul.mubr.f32.gmra.mrb[0].mxu0 %v2329
        %v2645 = vpop.f32.mrb[0].mxu0
        %v2646 = vadd.f32 %v2501, %v2645
        %v2647 = vpop.f32.mrb[0].mxu0
        %2648 = vmatprep.mubr.f32.mxu0 0.0
        %2649 = vmatmul.mubr.f32.gmra.mrb[0].mxu0 %v2330
        %v2650 = vpop.f32.mrb[0].mxu0
        %v2651 = vadd.f32 %v2506, %v2650
        %v2652 = vpop.f32.mrb[0].mxu0
        %2653 = vmatprep.mubr.f32.mxu0 0.0
        %2654 = vmatmul.mubr.f32.gmra.mrb[0].mxu0 %v2331
        %v2655 = vpop.f32.mrb[0].mxu0
        %v2656 = vadd.f32 %v2511, %v2655
        %v2657 = vpop.f32.mrb[0].mxu0
        %2658 = vmatprep.mubr.f32.mxu0 0.0
        %2659 = vmatmul.mubr.f32.gmra.mrb[0].mxu0 %v2332
        %v2660 = vpop.f32.mrb[0].mxu0
        %v2661 = vadd.f32 %v2516, %v2660
        %v2662 = vpop.f32.mrb[0].mxu0
        %2663 = vmatprep.mubr.f32.mxu0 0.0
        %2664 = vmatmul.mubr.f32.gmra.mrb[0].mxu0 %v2333
        %v2665 = vpop.f32.mrb[0].mxu0
        %v2666 = vadd.f32 %v2521, %v2665
        %v2667 = vpop.f32.mrb[0].mxu0
        %2668 = vmatprep.mubr.f32.mxu0 0.0
        %2669 = vmatmul.mubr.f32.gmra.mrb[0].mxu0 %v2334
        %v2670 = vpop.f32.mrb[0].mxu0
        %v2671 = vadd.f32 %v2526, %v2670
        %v2672 = vpop.f32.mrb[0].mxu0
        %2673 = vdwg.mxu0
        %v2674 = vld [vmem:[#allocation2 + $0x9] sm:$0xff]
        %v2675 = vld [vmem:[#allocation2 + $0x11] sm:$0xff]
        %v2676 = vld [vmem:[#allocation2 + $0x19] sm:$0xff]
        %v2677 = vld [vmem:[#allocation2 + $0x21] sm:$0xff]
        %v2678 = vld [vmem:[#allocation2 + $0x29] sm:$0xff]
        %v2679 = vld [vmem:[#allocation2 + $0x31] sm:$0xff]
        %v2680 = vld [vmem:[#allocation2 + $0x39] sm:$0xff]
        %v2681 = vld [vmem:[#allocation2 + $0x41] sm:$0xff]
        %v2682 = vld [vmem:[#allocation2 + $0x49] sm:$0xff]
        %v2683 = vld [vmem:[#allocation2 + $0x51] sm:$0xff]
        %v2684 = vld [vmem:[#allocation2 + $0x59] sm:$0xff]
        %v2685 = vld [vmem:[#allocation2 + $0x61] sm:$0xff]
        %v2686 = vld [vmem:[#allocation2 + $0x69] sm:$0xff]
        %v2687 = vld [vmem:[#allocation2 + $0x71] sm:$0xff]
        %v2688 = vld [vmem:[#allocation2 + $0x79] sm:$0xff]
        %v2689 = vld [vmem:[#allocation2 + $0x81] sm:$0xff]
        %s2690 = scalar_lea.vmem [#allocation8], 256
        %v2691 = vld [vmem:[%s2690] sm:$0xff]
        %v2692 = vld [vmem:[%s2690 + $0x8] sm:$0xff]
        %v2693 = vld [vmem:[%s2690 + $0x10] sm:$0xff]
        %v2694 = vld [vmem:[%s2690 + $0x18] sm:$0xff]
        %v2695 = vld [vmem:[%s2690 + $0x20] sm:$0xff]
        %v2696 = vld [vmem:[%s2690 + $0x28] sm:$0xff]
        %v2697 = vld [vmem:[%s2690 + $0x30] sm:$0xff]
        %v2698 = vld [vmem:[%s2690 + $0x38] sm:$0xff]
        %v2699 = vld [vmem:[%s2690 + $0x40] sm:$0xff]
        %v2700 = vld [vmem:[%s2690 + $0x48] sm:$0xff]
        %v2701 = vld [vmem:[%s2690 + $0x50] sm:$0xff]
        %v2702 = vld [vmem:[%s2690 + $0x58] sm:$0xff]
        %v2703 = vld [vmem:[%s2690 + $0x60] sm:$0xff]
        %v2704 = vld [vmem:[%s2690 + $0x68] sm:$0xff]
        %v2705 = vld [vmem:[%s2690 + $0x70] sm:$0xff]
        %v2706 = vld [vmem:[%s2690 + $0x78] sm:$0xff]
        %2707 = vmatprep.subr.mxu0 0.0
        %2708 = vmatpush1.msra.mxu0 %v2691
        %2709 = vmatprep.subr.mxu0 0.0
        %2710 = vmatpush1.msra.mxu0 %v2692
        %2711 = vmatprep.subr.mxu0 0.0
        %2712 = vmatpush1.msra.mxu0 %v2693
        %2713 = vmatprep.subr.mxu0 0.0
        %2714 = vmatpush1.msra.mxu0 %v2694
        %2715 = vmatprep.subr.mxu0 0.0
        %2716 = vmatpush1.msra.mxu0 %v2695
        %2717 = vmatprep.subr.mxu0 0.0
        %2718 = vmatpush1.msra.mxu0 %v2696
        %2719 = vmatprep.subr.mxu0 0.0
        %2720 = vmatpush1.msra.mxu0 %v2697
        %2721 = vmatprep.subr.mxu0 0.0
        %2722 = vmatpush1.msra.mxu0 %v2698
        %2723 = vmatprep.subr.mxu0 0.0
        %2724 = vmatpush1.msra.mxu0 %v2699
        %2725 = vmatprep.subr.mxu0 0.0
        %2726 = vmatpush1.msra.mxu0 %v2700
        %2727 = vmatprep.subr.mxu0 0.0
        %2728 = vmatpush1.msra.mxu0 %v2701
        %2729 = vmatprep.subr.mxu0 0.0
        %2730 = vmatpush1.msra.mxu0 %v2702
        %2731 = vmatprep.subr.mxu0 0.0
        %2732 = vmatpush1.msra.mxu0 %v2703
        %2733 = vmatprep.subr.mxu0 0.0
        %2734 = vmatpush1.msra.mxu0 %v2704
        %2735 = vmatprep.subr.mxu0 0.0
        %2736 = vmatpush1.msra.mxu0 %v2705
        %2737 = vmatprep.subr.mxu0 0.0
        %2738 = vmatpush1.msra.mxu0 %v2706
        %2739 = vmatprep.subr.mxu0 0.0
        %2740 = vmatpush1.msra.mxu0 0.0
        %2741 = vmatprep.subr.mxu0 0.0
        %2742 = vmatpush1.msra.mxu0 0.0
        %2743 = vmatprep.subr.mxu0 0.0
        %2744 = vmatpush1.msra.mxu0 0.0
        %2745 = vmatprep.subr.mxu0 0.0
        %2746 = vmatpush1.msra.mxu0 0.0
        %2747 = vmatprep.subr.mxu0 0.0
        %2748 = vmatpush1.msra.mxu0 0.0
        %2749 = vmatprep.subr.mxu0 0.0
        %2750 = vmatpush1.msra.mxu0 0.0
        %2751 = vmatprep.subr.mxu0 0.0
        %2752 = vmatpush1.msra.mxu0 0.0
        %2753 = vmatprep.subr.mxu0 0.0
        %2754 = vmatpush1.msra.mxu0 0.0
        %2755 = vmatprep.subr.mxu0 0.0
        %2756 = vmatpush1.msra.mxu0 0.0
        %2757 = vmatprep.subr.mxu0 0.0
        %2758 = vmatpush1.msra.mxu0 0.0
        %2759 = vmatprep.subr.mxu0 0.0
        %2760 = vmatpush1.msra.mxu0 0.0
        %2761 = vmatprep.subr.mxu0 0.0
        %2762 = vmatpush1.msra.mxu0 0.0
        %2763 = vmatprep.subr.mxu0 0.0
        %2764 = vmatpush1.msra.mxu0 0.0
        %2765 = vmatprep.subr.mxu0 0.0
        %2766 = vmatpush1.msra.mxu0 0.0
        %2767 = vmatprep.subr.mxu0 0.0
        %2768 = vmatpush1.msra.mxu0 0.0
        %2769 = vmatprep.subr.mxu0 0.0
        %2770 = vmatpush1.msra.mxu0 0.0
        %2771 = vmatprep.mubr.f32.mxu0 0.0
        %2772 = vmatmul.mubr.f32.gmra.mrb[0].mxu0 %v2674
        %v2773 = vpop.f32.mrb[0].mxu0
        %v2774 = vadd.f32 0.0, %v2773
        %v2775 = vpop.f32.mrb[0].mxu0
        %2776 = vmatprep.mubr.f32.mxu0 0.0
        %2777 = vmatmul.mubr.f32.gmra.mrb[0].mxu0 %v2675
        %v2778 = vpop.f32.mrb[0].mxu0
        %v2779 = vadd.f32 0.0, %v2778
        %v2780 = vpop.f32.mrb[0].mxu0
        %2781 = vmatprep.mubr.f32.mxu0 0.0
        %2782 = vmatmul.mubr.f32.gmra.mrb[0].mxu0 %v2676
        %v2783 = vpop.f32.mrb[0].mxu0
        %v2784 = vadd.f32 0.0, %v2783
        %v2785 = vpop.f32.mrb[0].mxu0
        %2786 = vmatprep.mubr.f32.mxu0 0.0
        %2787 = vmatmul.mubr.f32.gmra.mrb[0].mxu0 %v2677
        %v2788 = vpop.f32.mrb[0].mxu0
        %v2789 = vadd.f32 0.0, %v2788
        %v2790 = vpop.f32.mrb[0].mxu0
        %2791 = vmatprep.mubr.f32.mxu0 0.0
        %2792 = vmatmul.mubr.f32.gmra.mrb[0].mxu0 %v2678
        %v2793 = vpop.f32.mrb[0].mxu0
        %v2794 = vadd.f32 0.0, %v2793
        %v2795 = vpop.f32.mrb[0].mxu0
        %2796 = vmatprep.mubr.f32.mxu0 0.0
        %2797 = vmatmul.mubr.f32.gmra.mrb[0].mxu0 %v2679
        %v2798 = vpop.f32.mrb[0].mxu0
        %v2799 = vadd.f32 0.0, %v2798
        %v2800 = vpop.f32.mrb[0].mxu0
        %2801 = vmatprep.mubr.f32.mxu0 0.0
        %2802 = vmatmul.mubr.f32.gmra.mrb[0].mxu0 %v2680
        %v2803 = vpop.f32.mrb[0].mxu0
        %v2804 = vadd.f32 0.0, %v2803
        %v2805 = vpop.f32.mrb[0].mxu0
        %2806 = vmatprep.mubr.f32.mxu0 0.0
        %2807 = vmatmul.mubr.f32.gmra.mrb[0].mxu0 %v2681
        %v2808 = vpop.f32.mrb[0].mxu0
        %v2809 = vadd.f32 0.0, %v2808
        %v2810 = vpop.f32.mrb[0].mxu0
        %2811 = vmatprep.mubr.f32.mxu0 0.0
        %2812 = vmatmul.mubr.f32.gmra.mrb[0].mxu0 %v2682
        %v2813 = vpop.f32.mrb[0].mxu0
        %v2814 = vadd.f32 0.0, %v2813
        %v2815 = vpop.f32.mrb[0].mxu0
        %2816 = vmatprep.mubr.f32.mxu0 0.0
        %2817 = vmatmul.mubr.f32.gmra.mrb[0].mxu0 %v2683
        %v2818 = vpop.f32.mrb[0].mxu0
        %v2819 = vadd.f32 0.0, %v2818
        %v2820 = vpop.f32.mrb[0].mxu0
        %2821 = vmatprep.mubr.f32.mxu0 0.0
        %2822 = vmatmul.mubr.f32.gmra.mrb[0].mxu0 %v2684
        %v2823 = vpop.f32.mrb[0].mxu0
        %v2824 = vadd.f32 0.0, %v2823
        %v2825 = vpop.f32.mrb[0].mxu0
        %2826 = vmatprep.mubr.f32.mxu0 0.0
        %2827 = vmatmul.mubr.f32.gmra.mrb[0].mxu0 %v2685
        %v2828 = vpop.f32.mrb[0].mxu0
        %v2829 = vadd.f32 0.0, %v2828
        %v2830 = vpop.f32.mrb[0].mxu0
        %2831 = vmatprep.mubr.f32.mxu0 0.0
        %2832 = vmatmul.mubr.f32.gmra.mrb[0].mxu0 %v2686
        %v2833 = vpop.f32.mrb[0].mxu0
        %v2834 = vadd.f32 0.0, %v2833
        %v2835 = vpop.f32.mrb[0].mxu0
        %2836 = vmatprep.mubr.f32.mxu0 0.0
        %2837 = vmatmul.mubr.f32.gmra.mrb[0].mxu0 %v2687
        %v2838 = vpop.f32.mrb[0].mxu0
        %v2839 = vadd.f32 0.0, %v2838
        %v2840 = vpop.f32.mrb[0].mxu0
        %2841 = vmatprep.mubr.f32.mxu0 0.0
        %2842 = vmatmul.mubr.f32.gmra.mrb[0].mxu0 %v2688
        %v2843 = vpop.f32.mrb[0].mxu0
        %v2844 = vadd.f32 0.0, %v2843
        %v2845 = vpop.f32.mrb[0].mxu0
        %2846 = vmatprep.mubr.f32.mxu0 0.0
        %2847 = vmatmul.mubr.f32.gmra.mrb[0].mxu0 %v2689
        %v2848 = vpop.f32.mrb[0].mxu0
        %v2849 = vadd.f32 0.0, %v2848
        %v2850 = vpop.f32.mrb[0].mxu0
        %2851 = vdwg.mxu0
        %v2852 = vadd.f32 %v2596, %v2774
        %v2853 = vadd.f32 %v2601, %v2779
        %v2854 = vadd.f32 %v2606, %v2784
        %v2855 = vadd.f32 %v2611, %v2789
        %v2856 = vadd.f32 %v2616, %v2794
        %v2857 = vadd.f32 %v2621, %v2799
        %v2858 = vadd.f32 %v2626, %v2804
        %v2859 = vadd.f32 %v2631, %v2809
        %v2860 = vadd.f32 %v2636, %v2814
        %v2861 = vadd.f32 %v2641, %v2819
        %v2862 = vadd.f32 %v2646, %v2824
        %v2863 = vadd.f32 %v2651, %v2829
        %v2864 = vadd.f32 %v2656, %v2834
        %v2865 = vadd.f32 %v2661, %v2839
        %v2866 = vadd.f32 %v2666, %v2844
        %v2867 = vadd.f32 %v2671, %v2849
        %v2868 = vld [vmem:[#allocation2 + $0x17] sm:$0xff]
        %v2869 = vld [vmem:[#allocation2 + $0x1f] sm:$0xff]
        %v2870 = vld [vmem:[#allocation2 + $0x27] sm:$0xff]
        %v2871 = vld [vmem:[#allocation2 + $0x2f] sm:$0xff]
        %v2872 = vld [vmem:[#allocation2 + $0x37] sm:$0xff]
        %v2873 = vld [vmem:[#allocation2 + $0x3f] sm:$0xff]
        %v2874 = vld [vmem:[#allocation2 + $0x47] sm:$0xff]
        %v2875 = vld [vmem:[#allocation2 + $0x4f] sm:$0xff]
        %v2876 = vld [vmem:[#allocation2 + $0x57] sm:$0xff]
        %v2877 = vld [vmem:[#allocation2 + $0x5f] sm:$0xff]
        %v2878 = vld [vmem:[#allocation2 + $0x67] sm:$0xff]
        %v2879 = vld [vmem:[#allocation2 + $0x6f] sm:$0xff]
        %v2880 = vld [vmem:[#allocation2 + $0x77] sm:$0xff]
        %v2881 = vld [vmem:[#allocation2 + $0x7f] sm:$0xff]
        %v2882 = vld [vmem:[#allocation2 + $0x87] sm:$0xff]
        %v2883 = vld [vmem:[#allocation2 + $0x8f] sm:$0xff]
        %s2884 = scalar_lea.vmem [#allocation8], 384
        %v2885 = vld [vmem:[%s2884] sm:$0xff]
        %v2886 = vld [vmem:[%s2884 + $0x8] sm:$0xff]
        %v2887 = vld [vmem:[%s2884 + $0x10] sm:$0xff]
        %v2888 = vld [vmem:[%s2884 + $0x18] sm:$0xff]
        %v2889 = vld [vmem:[%s2884 + $0x20] sm:$0xff]
        %v2890 = vld [vmem:[%s2884 + $0x28] sm:$0xff]
        %v2891 = vld [vmem:[%s2884 + $0x30] sm:$0xff]
        %v2892 = vld [vmem:[%s2884 + $0x38] sm:$0xff]
        %v2893 = vld [vmem:[%s2884 + $0x40] sm:$0xff]
        %v2894 = vld [vmem:[%s2884 + $0x48] sm:$0xff]
        %v2895 = vld [vmem:[%s2884 + $0x50] sm:$0xff]
        %v2896 = vld [vmem:[%s2884 + $0x58] sm:$0xff]
        %v2897 = vld [vmem:[%s2884 + $0x60] sm:$0xff]
        %v2898 = vld [vmem:[%s2884 + $0x68] sm:$0xff]
        %v2899 = vld [vmem:[%s2884 + $0x70] sm:$0xff]
        %v2900 = vld [vmem:[%s2884 + $0x78] sm:$0xff]
        %2901 = vmatprep.subr.mxu0 0.0
        %2902 = vmatpush1.msra.mxu0 %v2885
        %2903 = vmatprep.subr.mxu0 0.0
        %2904 = vmatpush1.msra.mxu0 %v2886
        %2905 = vmatprep.subr.mxu0 0.0
        %2906 = vmatpush1.msra.mxu0 %v2887
        %2907 = vmatprep.subr.mxu0 0.0
        %2908 = vmatpush1.msra.mxu0 %v2888
        %2909 = vmatprep.subr.mxu0 0.0
        %2910 = vmatpush1.msra.mxu0 %v2889
        %2911 = vmatprep.subr.mxu0 0.0
        %2912 = vmatpush1.msra.mxu0 %v2890
        %2913 = vmatprep.subr.mxu0 0.0
        %2914 = vmatpush1.msra.mxu0 %v2891
        %2915 = vmatprep.subr.mxu0 0.0
        %2916 = vmatpush1.msra.mxu0 %v2892
        %2917 = vmatprep.subr.mxu0 0.0
        %2918 = vmatpush1.msra.mxu0 %v2893
        %2919 = vmatprep.subr.mxu0 0.0
        %2920 = vmatpush1.msra.mxu0 %v2894
        %2921 = vmatprep.subr.mxu0 0.0
        %2922 = vmatpush1.msra.mxu0 %v2895
        %2923 = vmatprep.subr.mxu0 0.0
        %2924 = vmatpush1.msra.mxu0 %v2896
        %2925 = vmatprep.subr.mxu0 0.0
        %2926 = vmatpush1.msra.mxu0 %v2897
        %2927 = vmatprep.subr.mxu0 0.0
        %2928 = vmatpush1.msra.mxu0 %v2898
        %2929 = vmatprep.subr.mxu0 0.0
        %2930 = vmatpush1.msra.mxu0 %v2899
        %2931 = vmatprep.subr.mxu0 0.0
        %2932 = vmatpush1.msra.mxu0 %v2900
        %2933 = vmatprep.subr.mxu0 0.0
        %2934 = vmatpush1.msra.mxu0 0.0
        %2935 = vmatprep.subr.mxu0 0.0
        %2936 = vmatpush1.msra.mxu0 0.0
        %2937 = vmatprep.subr.mxu0 0.0
        %2938 = vmatpush1.msra.mxu0 0.0
        %2939 = vmatprep.subr.mxu0 0.0
        %2940 = vmatpush1.msra.mxu0 0.0
        %2941 = vmatprep.subr.mxu0 0.0
        %2942 = vmatpush1.msra.mxu0 0.0
        %2943 = vmatprep.subr.mxu0 0.0
        %2944 = vmatpush1.msra.mxu0 0.0
        %2945 = vmatprep.subr.mxu0 0.0
        %2946 = vmatpush1.msra.mxu0 0.0
        %2947 = vmatprep.subr.mxu0 0.0
        %2948 = vmatpush1.msra.mxu0 0.0
        %2949 = vmatprep.subr.mxu0 0.0
        %2950 = vmatpush1.msra.mxu0 0.0
        %2951 = vmatprep.subr.mxu0 0.0
        %2952 = vmatpush1.msra.mxu0 0.0
        %2953 = vmatprep.subr.mxu0 0.0
        %2954 = vmatpush1.msra.mxu0 0.0
        %2955 = vmatprep.subr.mxu0 0.0
        %2956 = vmatpush1.msra.mxu0 0.0
        %2957 = vmatprep.subr.mxu0 0.0
        %2958 = vmatpush1.msra.mxu0 0.0
        %2959 = vmatprep.subr.mxu0 0.0
        %2960 = vmatpush1.msra.mxu0 0.0
        %2961 = vmatprep.subr.mxu0 0.0
        %2962 = vmatpush1.msra.mxu0 0.0
        %2963 = vmatprep.subr.mxu0 0.0
        %2964 = vmatpush1.msra.mxu0 0.0
        %2965 = vmatprep.mubr.f32.mxu0 0.0
        %2966 = vmatmul.mubr.f32.gmra.mrb[0].mxu0 %v2868
        %v2967 = vpop.f32.mrb[0].mxu0
        %v2968 = vadd.f32 0.0, %v2967
        %v2969 = vpop.f32.mrb[0].mxu0
        %2970 = vmatprep.mubr.f32.mxu0 0.0
        %2971 = vmatmul.mubr.f32.gmra.mrb[0].mxu0 %v2869
        %v2972 = vpop.f32.mrb[0].mxu0
        %v2973 = vadd.f32 0.0, %v2972
        %v2974 = vpop.f32.mrb[0].mxu0
        %2975 = vmatprep.mubr.f32.mxu0 0.0
        %2976 = vmatmul.mubr.f32.gmra.mrb[0].mxu0 %v2870
        %v2977 = vpop.f32.mrb[0].mxu0
        %v2978 = vadd.f32 0.0, %v2977
        %v2979 = vpop.f32.mrb[0].mxu0
        %2980 = vmatprep.mubr.f32.mxu0 0.0
        %2981 = vmatmul.mubr.f32.gmra.mrb[0].mxu0 %v2871
        %v2982 = vpop.f32.mrb[0].mxu0
        %v2983 = vadd.f32 0.0, %v2982
        %v2984 = vpop.f32.mrb[0].mxu0
        %2985 = vmatprep.mubr.f32.mxu0 0.0
        %2986 = vmatmul.mubr.f32.gmra.mrb[0].mxu0 %v2872
        %v2987 = vpop.f32.mrb[0].mxu0
        %v2988 = vadd.f32 0.0, %v2987
        %v2989 = vpop.f32.mrb[0].mxu0
        %2990 = vmatprep.mubr.f32.mxu0 0.0
        %2991 = vmatmul.mubr.f32.gmra.mrb[0].mxu0 %v2873
        %v2992 = vpop.f32.mrb[0].mxu0
        %v2993 = vadd.f32 0.0, %v2992
        %v2994 = vpop.f32.mrb[0].mxu0
        %2995 = vmatprep.mubr.f32.mxu0 0.0
        %2996 = vmatmul.mubr.f32.gmra.mrb[0].mxu0 %v2874
        %v2997 = vpop.f32.mrb[0].mxu0
        %v2998 = vadd.f32 0.0, %v2997
        %v2999 = vpop.f32.mrb[0].mxu0
        %3000 = vmatprep.mubr.f32.mxu0 0.0
        %3001 = vmatmul.mubr.f32.gmra.mrb[0].mxu0 %v2875
        %v3002 = vpop.f32.mrb[0].mxu0
        %v3003 = vadd.f32 0.0, %v3002
        %v3004 = vpop.f32.mrb[0].mxu0
        %3005 = vmatprep.mubr.f32.mxu0 0.0
        %3006 = vmatmul.mubr.f32.gmra.mrb[0].mxu0 %v2876
        %v3007 = vpop.f32.mrb[0].mxu0
        %v3008 = vadd.f32 0.0, %v3007
        %v3009 = vpop.f32.mrb[0].mxu0
        %3010 = vmatprep.mubr.f32.mxu0 0.0
        %3011 = vmatmul.mubr.f32.gmra.mrb[0].mxu0 %v2877
        %v3012 = vpop.f32.mrb[0].mxu0
        %v3013 = vadd.f32 0.0, %v3012
        %v3014 = vpop.f32.mrb[0].mxu0
        %3015 = vmatprep.mubr.f32.mxu0 0.0
        %3016 = vmatmul.mubr.f32.gmra.mrb[0].mxu0 %v2878
        %v3017 = vpop.f32.mrb[0].mxu0
        %v3018 = vadd.f32 0.0, %v3017
        %v3019 = vpop.f32.mrb[0].mxu0
        %3020 = vmatprep.mubr.f32.mxu0 0.0
        %3021 = vmatmul.mubr.f32.gmra.mrb[0].mxu0 %v2879
        %v3022 = vpop.f32.mrb[0].mxu0
        %v3023 = vadd.f32 0.0, %v3022
        %v3024 = vpop.f32.mrb[0].mxu0
        %3025 = vmatprep.mubr.f32.mxu0 0.0
        %3026 = vmatmul.mubr.f32.gmra.mrb[0].mxu0 %v2880
        %v3027 = vpop.f32.mrb[0].mxu0
        %v3028 = vadd.f32 0.0, %v3027
        %v3029 = vpop.f32.mrb[0].mxu0
        %3030 = vmatprep.mubr.f32.mxu0 0.0
        %3031 = vmatmul.mubr.f32.gmra.mrb[0].mxu0 %v2881
        %v3032 = vpop.f32.mrb[0].mxu0
        %v3033 = vadd.f32 0.0, %v3032
        %v3034 = vpop.f32.mrb[0].mxu0
        %3035 = vmatprep.mubr.f32.mxu0 0.0
        %3036 = vmatmul.mubr.f32.gmra.mrb[0].mxu0 %v2882
        %v3037 = vpop.f32.mrb[0].mxu0
        %v3038 = vadd.f32 0.0, %v3037
        %v3039 = vpop.f32.mrb[0].mxu0
        %3040 = vmatprep.mubr.f32.mxu0 0.0
        %3041 = vmatmul.mubr.f32.gmra.mrb[0].mxu0 %v2883
        %v3042 = vpop.f32.mrb[0].mxu0
        %v3043 = vadd.f32 0.0, %v3042
        %v3044 = vpop.f32.mrb[0].mxu0
        %3045 = vdwg.mxu0
        %v3046 = vadd.f32 %v2852, %v2968
        %v3047 = vadd.f32 %v2853, %v2973
        %v3048 = vadd.f32 %v2854, %v2978
        %v3049 = vadd.f32 %v2855, %v2983
        %v3050 = vadd.f32 %v2856, %v2988
        %v3051 = vadd.f32 %v2857, %v2993
        %v3052 = vadd.f32 %v2858, %v2998
        %v3053 = vadd.f32 %v2859, %v3003
        %v3054 = vadd.f32 %v2860, %v3008
        %v3055 = vadd.f32 %v2861, %v3013
        %v3056 = vadd.f32 %v2862, %v3018
        %v3057 = vadd.f32 %v2863, %v3023
        %v3058 = vadd.f32 %v2864, %v3028
        %v3059 = vadd.f32 %v2865, %v3033
        %v3060 = vadd.f32 %v2866, %v3038
        %v3061 = vadd.f32 %v2867, %v3043
        %v3062 = vld [vmem:[#allocation2 + $0x18] sm:$0xff]
        %v3063 = vld [vmem:[#allocation2 + $0x20] sm:$0xff]
        %v3064 = vld [vmem:[#allocation2 + $0x28] sm:$0xff]
        %v3065 = vld [vmem:[#allocation2 + $0x30] sm:$0xff]
        %v3066 = vld [vmem:[#allocation2 + $0x38] sm:$0xff]
        %v3067 = vld [vmem:[#allocation2 + $0x40] sm:$0xff]
        %v3068 = vld [vmem:[#allocation2 + $0x48] sm:$0xff]
        %v3069 = vld [vmem:[#allocation2 + $0x50] sm:$0xff]
        %v3070 = vld [vmem:[#allocation2 + $0x58] sm:$0xff]
        %v3071 = vld [vmem:[#allocation2 + $0x60] sm:$0xff]
        %v3072 = vld [vmem:[#allocation2 + $0x68] sm:$0xff]
        %v3073 = vld [vmem:[#allocation2 + $0x70] sm:$0xff]
        %v3074 = vld [vmem:[#allocation2 + $0x78] sm:$0xff]
        %v3075 = vld [vmem:[#allocation2 + $0x80] sm:$0xff]
        %v3076 = vld [vmem:[#allocation2 + $0x88] sm:$0xff]
        %v3077 = vld [vmem:[#allocation2 + $0x90] sm:$0xff]
        %s3078 = scalar_lea.vmem [#allocation8], 512
        %v3079 = vld [vmem:[%s3078] sm:$0xff]
        %v3080 = vld [vmem:[%s3078 + $0x8] sm:$0xff]
        %v3081 = vld [vmem:[%s3078 + $0x10] sm:$0xff]
        %v3082 = vld [vmem:[%s3078 + $0x18] sm:$0xff]
        %v3083 = vld [vmem:[%s3078 + $0x20] sm:$0xff]
        %v3084 = vld [vmem:[%s3078 + $0x28] sm:$0xff]
        %v3085 = vld [vmem:[%s3078 + $0x30] sm:$0xff]
        %v3086 = vld [vmem:[%s3078 + $0x38] sm:$0xff]
        %v3087 = vld [vmem:[%s3078 + $0x40] sm:$0xff]
        %v3088 = vld [vmem:[%s3078 + $0x48] sm:$0xff]
        %v3089 = vld [vmem:[%s3078 + $0x50] sm:$0xff]
        %v3090 = vld [vmem:[%s3078 + $0x58] sm:$0xff]
        %v3091 = vld [vmem:[%s3078 + $0x60] sm:$0xff]
        %v3092 = vld [vmem:[%s3078 + $0x68] sm:$0xff]
        %v3093 = vld [vmem:[%s3078 + $0x70] sm:$0xff]
        %v3094 = vld [vmem:[%s3078 + $0x78] sm:$0xff]
        %3095 = vmatprep.subr.mxu0 0.0
        %3096 = vmatpush1.msra.mxu0 %v3079
        %3097 = vmatprep.subr.mxu0 0.0
        %3098 = vmatpush1.msra.mxu0 %v3080
        %3099 = vmatprep.subr.mxu0 0.0
        %3100 = vmatpush1.msra.mxu0 %v3081
        %3101 = vmatprep.subr.mxu0 0.0
        %3102 = vmatpush1.msra.mxu0 %v3082
        %3103 = vmatprep.subr.mxu0 0.0
        %3104 = vmatpush1.msra.mxu0 %v3083
        %3105 = vmatprep.subr.mxu0 0.0
        %3106 = vmatpush1.msra.mxu0 %v3084
        %3107 = vmatprep.subr.mxu0 0.0
        %3108 = vmatpush1.msra.mxu0 %v3085
        %3109 = vmatprep.subr.mxu0 0.0
        %3110 = vmatpush1.msra.mxu0 %v3086
        %3111 = vmatprep.subr.mxu0 0.0
        %3112 = vmatpush1.msra.mxu0 %v3087
        %3113 = vmatprep.subr.mxu0 0.0
        %3114 = vmatpush1.msra.mxu0 %v3088
        %3115 = vmatprep.subr.mxu0 0.0
        %3116 = vmatpush1.msra.mxu0 %v3089
        %3117 = vmatprep.subr.mxu0 0.0
        %3118 = vmatpush1.msra.mxu0 %v3090
        %3119 = vmatprep.subr.mxu0 0.0
        %3120 = vmatpush1.msra.mxu0 %v3091
        %3121 = vmatprep.subr.mxu0 0.0
        %3122 = vmatpush1.msra.mxu0 %v3092
        %3123 = vmatprep.subr.mxu0 0.0
        %3124 = vmatpush1.msra.mxu0 %v3093
        %3125 = vmatprep.subr.mxu0 0.0
        %3126 = vmatpush1.msra.mxu0 %v3094
        %3127 = vmatprep.subr.mxu0 0.0
        %3128 = vmatpush1.msra.mxu0 0.0
        %3129 = vmatprep.subr.mxu0 0.0
        %3130 = vmatpush1.msra.mxu0 0.0
        %3131 = vmatprep.subr.mxu0 0.0
        %3132 = vmatpush1.msra.mxu0 0.0
        %3133 = vmatprep.subr.mxu0 0.0
        %3134 = vmatpush1.msra.mxu0 0.0
        %3135 = vmatprep.subr.mxu0 0.0
        %3136 = vmatpush1.msra.mxu0 0.0
        %3137 = vmatprep.subr.mxu0 0.0
        %3138 = vmatpush1.msra.mxu0 0.0
        %3139 = vmatprep.subr.mxu0 0.0
        %3140 = vmatpush1.msra.mxu0 0.0
        %3141 = vmatprep.subr.mxu0 0.0
        %3142 = vmatpush1.msra.mxu0 0.0
        %3143 = vmatprep.subr.mxu0 0.0
        %3144 = vmatpush1.msra.mxu0 0.0
        %3145 = vmatprep.subr.mxu0 0.0
        %3146 = vmatpush1.msra.mxu0 0.0
        %3147 = vmatprep.subr.mxu0 0.0
        %3148 = vmatpush1.msra.mxu0 0.0
        %3149 = vmatprep.subr.mxu0 0.0
        %3150 = vmatpush1.msra.mxu0 0.0
        %3151 = vmatprep.subr.mxu0 0.0
        %3152 = vmatpush1.msra.mxu0 0.0
        %3153 = vmatprep.subr.mxu0 0.0
        %3154 = vmatpush1.msra.mxu0 0.0
        %3155 = vmatprep.subr.mxu0 0.0
        %3156 = vmatpush1.msra.mxu0 0.0
        %3157 = vmatprep.subr.mxu0 0.0
        %3158 = vmatpush1.msra.mxu0 0.0
        %3159 = vmatprep.mubr.f32.mxu0 0.0
        %3160 = vmatmul.mubr.f32.gmra.mrb[0].mxu0 %v3062
        %v3161 = vpop.f32.mrb[0].mxu0
        %v3162 = vadd.f32 0.0, %v3161
        %v3163 = vpop.f32.mrb[0].mxu0
        %3164 = vmatprep.mubr.f32.mxu0 0.0
        %3165 = vmatmul.mubr.f32.gmra.mrb[0].mxu0 %v3063
        %v3166 = vpop.f32.mrb[0].mxu0
        %v3167 = vadd.f32 0.0, %v3166
        %v3168 = vpop.f32.mrb[0].mxu0
        %3169 = vmatprep.mubr.f32.mxu0 0.0
        %3170 = vmatmul.mubr.f32.gmra.mrb[0].mxu0 %v3064
        %v3171 = vpop.f32.mrb[0].mxu0
        %v3172 = vadd.f32 0.0, %v3171
        %v3173 = vpop.f32.mrb[0].mxu0
        %3174 = vmatprep.mubr.f32.mxu0 0.0
        %3175 = vmatmul.mubr.f32.gmra.mrb[0].mxu0 %v3065
        %v3176 = vpop.f32.mrb[0].mxu0
        %v3177 = vadd.f32 0.0, %v3176
        %v3178 = vpop.f32.mrb[0].mxu0
        %3179 = vmatprep.mubr.f32.mxu0 0.0
        %3180 = vmatmul.mubr.f32.gmra.mrb[0].mxu0 %v3066
        %v3181 = vpop.f32.mrb[0].mxu0
        %v3182 = vadd.f32 0.0, %v3181
        %v3183 = vpop.f32.mrb[0].mxu0
        %3184 = vmatprep.mubr.f32.mxu0 0.0
        %3185 = vmatmul.mubr.f32.gmra.mrb[0].mxu0 %v3067
        %v3186 = vpop.f32.mrb[0].mxu0
        %v3187 = vadd.f32 0.0, %v3186
        %v3188 = vpop.f32.mrb[0].mxu0
        %3189 = vmatprep.mubr.f32.mxu0 0.0
        %3190 = vmatmul.mubr.f32.gmra.mrb[0].mxu0 %v3068
        %v3191 = vpop.f32.mrb[0].mxu0
        %v3192 = vadd.f32 0.0, %v3191
        %v3193 = vpop.f32.mrb[0].mxu0
        %3194 = vmatprep.mubr.f32.mxu0 0.0
        %3195 = vmatmul.mubr.f32.gmra.mrb[0].mxu0 %v3069
        %v3196 = vpop.f32.mrb[0].mxu0
        %v3197 = vadd.f32 0.0, %v3196
        %v3198 = vpop.f32.mrb[0].mxu0
        %3199 = vmatprep.mubr.f32.mxu0 0.0
        %3200 = vmatmul.mubr.f32.gmra.mrb[0].mxu0 %v3070
        %v3201 = vpop.f32.mrb[0].mxu0
        %v3202 = vadd.f32 0.0, %v3201
        %v3203 = vpop.f32.mrb[0].mxu0
        %3204 = vmatprep.mubr.f32.mxu0 0.0
        %3205 = vmatmul.mubr.f32.gmra.mrb[0].mxu0 %v3071
        %v3206 = vpop.f32.mrb[0].mxu0
        %v3207 = vadd.f32 0.0, %v3206
        %v3208 = vpop.f32.mrb[0].mxu0
        %3209 = vmatprep.mubr.f32.mxu0 0.0
        %3210 = vmatmul.mubr.f32.gmra.mrb[0].mxu0 %v3072
        %v3211 = vpop.f32.mrb[0].mxu0
        %v3212 = vadd.f32 0.0, %v3211
        %v3213 = vpop.f32.mrb[0].mxu0
        %3214 = vmatprep.mubr.f32.mxu0 0.0
        %3215 = vmatmul.mubr.f32.gmra.mrb[0].mxu0 %v3073
        %v3216 = vpop.f32.mrb[0].mxu0
        %v3217 = vadd.f32 0.0, %v3216
        %v3218 = vpop.f32.mrb[0].mxu0
        %3219 = vmatprep.mubr.f32.mxu0 0.0
        %3220 = vmatmul.mubr.f32.gmra.mrb[0].mxu0 %v3074
        %v3221 = vpop.f32.mrb[0].mxu0
        %v3222 = vadd.f32 0.0, %v3221
        %v3223 = vpop.f32.mrb[0].mxu0
        %3224 = vmatprep.mubr.f32.mxu0 0.0
        %3225 = vmatmul.mubr.f32.gmra.mrb[0].mxu0 %v3075
        %v3226 = vpop.f32.mrb[0].mxu0
        %v3227 = vadd.f32 0.0, %v3226
        %v3228 = vpop.f32.mrb[0].mxu0
        %3229 = vmatprep.mubr.f32.mxu0 0.0
        %3230 = vmatmul.mubr.f32.gmra.mrb[0].mxu0 %v3076
        %v3231 = vpop.f32.mrb[0].mxu0
        %v3232 = vadd.f32 0.0, %v3231
        %v3233 = vpop.f32.mrb[0].mxu0
        %3234 = vmatprep.mubr.f32.mxu0 0.0
        %3235 = vmatmul.mubr.f32.gmra.mrb[0].mxu0 %v3077
        %v3236 = vpop.f32.mrb[0].mxu0
        %v3237 = vadd.f32 0.0, %v3236
        %v3238 = vpop.f32.mrb[0].mxu0
        %3239 = vdwg.mxu0
        %v3240 = vadd.f32 %v3046, %v3162
        %v3241 = vadd.f32 %v3047, %v3167
        %v3242 = vadd.f32 %v3048, %v3172
        %v3243 = vadd.f32 %v3049, %v3177
        %v3244 = vadd.f32 %v3050, %v3182
        %v3245 = vadd.f32 %v3051, %v3187
        %v3246 = vadd.f32 %v3052, %v3192
        %v3247 = vadd.f32 %v3053, %v3197
        %v3248 = vadd.f32 %v3054, %v3202
        %v3249 = vadd.f32 %v3055, %v3207
        %v3250 = vadd.f32 %v3056, %v3212
        %v3251 = vadd.f32 %v3057, %v3217
        %v3252 = vadd.f32 %v3058, %v3222
        %v3253 = vadd.f32 %v3059, %v3227
        %v3254 = vadd.f32 %v3060, %v3232
        %v3255 = vadd.f32 %v3061, %v3237
        %v3256 = vld [vmem:[#allocation2 + $0x19] sm:$0xff]
        %v3257 = vld [vmem:[#allocation2 + $0x21] sm:$0xff]
        %v3258 = vld [vmem:[#allocation2 + $0x29] sm:$0xff]
        %v3259 = vld [vmem:[#allocation2 + $0x31] sm:$0xff]
        %v3260 = vld [vmem:[#allocation2 + $0x39] sm:$0xff]
        %v3261 = vld [vmem:[#allocation2 + $0x41] sm:$0xff]
        %v3262 = vld [vmem:[#allocation2 + $0x49] sm:$0xff]
        %v3263 = vld [vmem:[#allocation2 + $0x51] sm:$0xff]
        %v3264 = vld [vmem:[#allocation2 + $0x59] sm:$0xff]
        %v3265 = vld [vmem:[#allocation2 + $0x61] sm:$0xff]
        %v3266 = vld [vmem:[#allocation2 + $0x69] sm:$0xff]
        %v3267 = vld [vmem:[#allocation2 + $0x71] sm:$0xff]
        %v3268 = vld [vmem:[#allocation2 + $0x79] sm:$0xff]
        %v3269 = vld [vmem:[#allocation2 + $0x81] sm:$0xff]
        %v3270 = vld [vmem:[#allocation2 + $0x89] sm:$0xff]
        %v3271 = vld [vmem:[#allocation2 + $0x91] sm:$0xff]
        %s3272 = scalar_lea.vmem [#allocation8], 640
        %v3273 = vld [vmem:[%s3272] sm:$0xff]
        %v3274 = vld [vmem:[%s3272 + $0x8] sm:$0xff]
        %v3275 = vld [vmem:[%s3272 + $0x10] sm:$0xff]
        %v3276 = vld [vmem:[%s3272 + $0x18] sm:$0xff]
        %v3277 = vld [vmem:[%s3272 + $0x20] sm:$0xff]
        %v3278 = vld [vmem:[%s3272 + $0x28] sm:$0xff]
        %v3279 = vld [vmem:[%s3272 + $0x30] sm:$0xff]
        %v3280 = vld [vmem:[%s3272 + $0x38] sm:$0xff]
        %v3281 = vld [vmem:[%s3272 + $0x40] sm:$0xff]
        %v3282 = vld [vmem:[%s3272 + $0x48] sm:$0xff]
        %v3283 = vld [vmem:[%s3272 + $0x50] sm:$0xff]
        %v3284 = vld [vmem:[%s3272 + $0x58] sm:$0xff]
        %v3285 = vld [vmem:[%s3272 + $0x60] sm:$0xff]
        %v3286 = vld [vmem:[%s3272 + $0x68] sm:$0xff]
        %v3287 = vld [vmem:[%s3272 + $0x70] sm:$0xff]
        %v3288 = vld [vmem:[%s3272 + $0x78] sm:$0xff]
        %3289 = vmatprep.subr.mxu0 0.0
        %3290 = vmatpush1.msra.mxu0 %v3273
        %3291 = vmatprep.subr.mxu0 0.0
        %3292 = vmatpush1.msra.mxu0 %v3274
        %3293 = vmatprep.subr.mxu0 0.0
        %3294 = vmatpush1.msra.mxu0 %v3275
        %3295 = vmatprep.subr.mxu0 0.0
        %3296 = vmatpush1.msra.mxu0 %v3276
        %3297 = vmatprep.subr.mxu0 0.0
        %3298 = vmatpush1.msra.mxu0 %v3277
        %3299 = vmatprep.subr.mxu0 0.0
        %3300 = vmatpush1.msra.mxu0 %v3278
        %3301 = vmatprep.subr.mxu0 0.0
        %3302 = vmatpush1.msra.mxu0 %v3279
        %3303 = vmatprep.subr.mxu0 0.0
        %3304 = vmatpush1.msra.mxu0 %v3280
        %3305 = vmatprep.subr.mxu0 0.0
        %3306 = vmatpush1.msra.mxu0 %v3281
        %3307 = vmatprep.subr.mxu0 0.0
        %3308 = vmatpush1.msra.mxu0 %v3282
        %3309 = vmatprep.subr.mxu0 0.0
        %3310 = vmatpush1.msra.mxu0 %v3283
        %3311 = vmatprep.subr.mxu0 0.0
        %3312 = vmatpush1.msra.mxu0 %v3284
        %3313 = vmatprep.subr.mxu0 0.0
        %3314 = vmatpush1.msra.mxu0 %v3285
        %3315 = vmatprep.subr.mxu0 0.0
        %3316 = vmatpush1.msra.mxu0 %v3286
        %3317 = vmatprep.subr.mxu0 0.0
        %3318 = vmatpush1.msra.mxu0 %v3287
        %3319 = vmatprep.subr.mxu0 0.0
        %3320 = vmatpush1.msra.mxu0 %v3288
        %3321 = vmatprep.subr.mxu0 0.0
        %3322 = vmatpush1.msra.mxu0 0.0
        %3323 = vmatprep.subr.mxu0 0.0
        %3324 = vmatpush1.msra.mxu0 0.0
        %3325 = vmatprep.subr.mxu0 0.0
        %3326 = vmatpush1.msra.mxu0 0.0
        %3327 = vmatprep.subr.mxu0 0.0
        %3328 = vmatpush1.msra.mxu0 0.0
        %3329 = vmatprep.subr.mxu0 0.0
        %3330 = vmatpush1.msra.mxu0 0.0
        %3331 = vmatprep.subr.mxu0 0.0
        %3332 = vmatpush1.msra.mxu0 0.0
        %3333 = vmatprep.subr.mxu0 0.0
        %3334 = vmatpush1.msra.mxu0 0.0
        %3335 = vmatprep.subr.mxu0 0.0
        %3336 = vmatpush1.msra.mxu0 0.0
        %3337 = vmatprep.subr.mxu0 0.0
        %3338 = vmatpush1.msra.mxu0 0.0
        %3339 = vmatprep.subr.mxu0 0.0
        %3340 = vmatpush1.msra.mxu0 0.0
        %3341 = vmatprep.subr.mxu0 0.0
        %3342 = vmatpush1.msra.mxu0 0.0
        %3343 = vmatprep.subr.mxu0 0.0
        %3344 = vmatpush1.msra.mxu0 0.0
        %3345 = vmatprep.subr.mxu0 0.0
        %3346 = vmatpush1.msra.mxu0 0.0
        %3347 = vmatprep.subr.mxu0 0.0
        %3348 = vmatpush1.msra.mxu0 0.0
        %3349 = vmatprep.subr.mxu0 0.0
        %3350 = vmatpush1.msra.mxu0 0.0
        %3351 = vmatprep.subr.mxu0 0.0
        %3352 = vmatpush1.msra.mxu0 0.0
        %3353 = vmatprep.mubr.f32.mxu0 0.0
        %3354 = vmatmul.mubr.f32.gmra.mrb[0].mxu0 %v3256
        %v3355 = vpop.f32.mrb[0].mxu0
        %v3356 = vadd.f32 0.0, %v3355
        %v3357 = vpop.f32.mrb[0].mxu0
        %3358 = vmatprep.mubr.f32.mxu0 0.0
        %3359 = vmatmul.mubr.f32.gmra.mrb[0].mxu0 %v3257
        %v3360 = vpop.f32.mrb[0].mxu0
        %v3361 = vadd.f32 0.0, %v3360
        %v3362 = vpop.f32.mrb[0].mxu0
        %3363 = vmatprep.mubr.f32.mxu0 0.0
        %3364 = vmatmul.mubr.f32.gmra.mrb[0].mxu0 %v3258
        %v3365 = vpop.f32.mrb[0].mxu0
        %v3366 = vadd.f32 0.0, %v3365
        %v3367 = vpop.f32.mrb[0].mxu0
        %3368 = vmatprep.mubr.f32.mxu0 0.0
        %3369 = vmatmul.mubr.f32.gmra.mrb[0].mxu0 %v3259
        %v3370 = vpop.f32.mrb[0].mxu0
        %v3371 = vadd.f32 0.0, %v3370
        %v3372 = vpop.f32.mrb[0].mxu0
        %3373 = vmatprep.mubr.f32.mxu0 0.0
        %3374 = vmatmul.mubr.f32.gmra.mrb[0].mxu0 %v3260
        %v3375 = vpop.f32.mrb[0].mxu0
        %v3376 = vadd.f32 0.0, %v3375
        %v3377 = vpop.f32.mrb[0].mxu0
        %3378 = vmatprep.mubr.f32.mxu0 0.0
        %3379 = vmatmul.mubr.f32.gmra.mrb[0].mxu0 %v3261
        %v3380 = vpop.f32.mrb[0].mxu0
        %v3381 = vadd.f32 0.0, %v3380
        %v3382 = vpop.f32.mrb[0].mxu0
        %3383 = vmatprep.mubr.f32.mxu0 0.0
        %3384 = vmatmul.mubr.f32.gmra.mrb[0].mxu0 %v3262
        %v3385 = vpop.f32.mrb[0].mxu0
        %v3386 = vadd.f32 0.0, %v3385
        %v3387 = vpop.f32.mrb[0].mxu0
        %3388 = vmatprep.mubr.f32.mxu0 0.0
        %3389 = vmatmul.mubr.f32.gmra.mrb[0].mxu0 %v3263
        %v3390 = vpop.f32.mrb[0].mxu0
        %v3391 = vadd.f32 0.0, %v3390
        %v3392 = vpop.f32.mrb[0].mxu0
        %3393 = vmatprep.mubr.f32.mxu0 0.0
        %3394 = vmatmul.mubr.f32.gmra.mrb[0].mxu0 %v3264
        %v3395 = vpop.f32.mrb[0].mxu0
        %v3396 = vadd.f32 0.0, %v3395
        %v3397 = vpop.f32.mrb[0].mxu0
        %3398 = vmatprep.mubr.f32.mxu0 0.0
        %3399 = vmatmul.mubr.f32.gmra.mrb[0].mxu0 %v3265
        %v3400 = vpop.f32.mrb[0].mxu0
        %v3401 = vadd.f32 0.0, %v3400
        %v3402 = vpop.f32.mrb[0].mxu0
        %3403 = vmatprep.mubr.f32.mxu0 0.0
        %3404 = vmatmul.mubr.f32.gmra.mrb[0].mxu0 %v3266
        %v3405 = vpop.f32.mrb[0].mxu0
        %v3406 = vadd.f32 0.0, %v3405
        %v3407 = vpop.f32.mrb[0].mxu0
        %3408 = vmatprep.mubr.f32.mxu0 0.0
        %3409 = vmatmul.mubr.f32.gmra.mrb[0].mxu0 %v3267
        %v3410 = vpop.f32.mrb[0].mxu0
        %v3411 = vadd.f32 0.0, %v3410
        %v3412 = vpop.f32.mrb[0].mxu0
        %3413 = vmatprep.mubr.f32.mxu0 0.0
        %3414 = vmatmul.mubr.f32.gmra.mrb[0].mxu0 %v3268
        %v3415 = vpop.f32.mrb[0].mxu0
        %v3416 = vadd.f32 0.0, %v3415
        %v3417 = vpop.f32.mrb[0].mxu0
        %3418 = vmatprep.mubr.f32.mxu0 0.0
        %3419 = vmatmul.mubr.f32.gmra.mrb[0].mxu0 %v3269
        %v3420 = vpop.f32.mrb[0].mxu0
        %v3421 = vadd.f32 0.0, %v3420
        %v3422 = vpop.f32.mrb[0].mxu0
        %3423 = vmatprep.mubr.f32.mxu0 0.0
        %3424 = vmatmul.mubr.f32.gmra.mrb[0].mxu0 %v3270
        %v3425 = vpop.f32.mrb[0].mxu0
        %v3426 = vadd.f32 0.0, %v3425
        %v3427 = vpop.f32.mrb[0].mxu0
        %3428 = vmatprep.mubr.f32.mxu0 0.0
        %3429 = vmatmul.mubr.f32.gmra.mrb[0].mxu0 %v3271
        %v3430 = vpop.f32.mrb[0].mxu0
        %v3431 = vadd.f32 0.0, %v3430
        %v3432 = vpop.f32.mrb[0].mxu0
        %3433 = vdwg.mxu0
        %v3434 = vadd.f32 %v3240, %v3356
        %v3435 = vadd.f32 %v3241, %v3361
        %v3436 = vadd.f32 %v3242, %v3366
        %v3437 = vadd.f32 %v3243, %v3371
        %v3438 = vadd.f32 %v3244, %v3376
        %v3439 = vadd.f32 %v3245, %v3381
        %v3440 = vadd.f32 %v3246, %v3386
        %v3441 = vadd.f32 %v3247, %v3391
        %v3442 = vadd.f32 %v3248, %v3396
        %v3443 = vadd.f32 %v3249, %v3401
        %v3444 = vadd.f32 %v3250, %v3406
        %v3445 = vadd.f32 %v3251, %v3411
        %v3446 = vadd.f32 %v3252, %v3416
        %v3447 = vadd.f32 %v3253, %v3421
        %v3448 = vadd.f32 %v3254, %v3426
        %v3449 = vadd.f32 %v3255, %v3431
        %v3450 = vld [vmem:[#allocation2 + $0x27] sm:$0xff]
        %v3451 = vld [vmem:[#allocation2 + $0x2f] sm:$0xff]
        %v3452 = vld [vmem:[#allocation2 + $0x37] sm:$0xff]
        %v3453 = vld [vmem:[#allocation2 + $0x3f] sm:$0xff]
        %v3454 = vld [vmem:[#allocation2 + $0x47] sm:$0xff]
        %v3455 = vld [vmem:[#allocation2 + $0x4f] sm:$0xff]
        %v3456 = vld [vmem:[#allocation2 + $0x57] sm:$0xff]
        %v3457 = vld [vmem:[#allocation2 + $0x5f] sm:$0xff]
        %v3458 = vld [vmem:[#allocation2 + $0x67] sm:$0xff]
        %v3459 = vld [vmem:[#allocation2 + $0x6f] sm:$0xff]
        %v3460 = vld [vmem:[#allocation2 + $0x77] sm:$0xff]
        %v3461 = vld [vmem:[#allocation2 + $0x7f] sm:$0xff]
        %v3462 = vld [vmem:[#allocation2 + $0x87] sm:$0xff]
        %v3463 = vld [vmem:[#allocation2 + $0x8f] sm:$0xff]
        %v3464 = vld [vmem:[#allocation2 + $0x97] sm:$0xff]
        %v3465 = vld [vmem:[#allocation2 + $0x9f] sm:$0xff]
        %s3466 = scalar_lea.vmem [#allocation8], 768
        %v3467 = vld [vmem:[%s3466] sm:$0xff]
        %v3468 = vld [vmem:[%s3466 + $0x8] sm:$0xff]
        %v3469 = vld [vmem:[%s3466 + $0x10] sm:$0xff]
        %v3470 = vld [vmem:[%s3466 + $0x18] sm:$0xff]
        %v3471 = vld [vmem:[%s3466 + $0x20] sm:$0xff]
        %v3472 = vld [vmem:[%s3466 + $0x28] sm:$0xff]
        %v3473 = vld [vmem:[%s3466 + $0x30] sm:$0xff]
        %v3474 = vld [vmem:[%s3466 + $0x38] sm:$0xff]
        %v3475 = vld [vmem:[%s3466 + $0x40] sm:$0xff]
        %v3476 = vld [vmem:[%s3466 + $0x48] sm:$0xff]
        %v3477 = vld [vmem:[%s3466 + $0x50] sm:$0xff]
        %v3478 = vld [vmem:[%s3466 + $0x58] sm:$0xff]
        %v3479 = vld [vmem:[%s3466 + $0x60] sm:$0xff]
        %v3480 = vld [vmem:[%s3466 + $0x68] sm:$0xff]
        %v3481 = vld [vmem:[%s3466 + $0x70] sm:$0xff]
        %v3482 = vld [vmem:[%s3466 + $0x78] sm:$0xff]
        %3483 = vmatprep.subr.mxu0 0.0
        %3484 = vmatpush1.msra.mxu0 %v3467
        %3485 = vmatprep.subr.mxu0 0.0
        %3486 = vmatpush1.msra.mxu0 %v3468
        %3487 = vmatprep.subr.mxu0 0.0
        %3488 = vmatpush1.msra.mxu0 %v3469
        %3489 = vmatprep.subr.mxu0 0.0
        %3490 = vmatpush1.msra.mxu0 %v3470
        %3491 = vmatprep.subr.mxu0 0.0
        %3492 = vmatpush1.msra.mxu0 %v3471
        %3493 = vmatprep.subr.mxu0 0.0
        %3494 = vmatpush1.msra.mxu0 %v3472
        %3495 = vmatprep.subr.mxu0 0.0
        %3496 = vmatpush1.msra.mxu0 %v3473
        %3497 = vmatprep.subr.mxu0 0.0
        %3498 = vmatpush1.msra.mxu0 %v3474
        %3499 = vmatprep.subr.mxu0 0.0
        %3500 = vmatpush1.msra.mxu0 %v3475
        %3501 = vmatprep.subr.mxu0 0.0
        %3502 = vmatpush1.msra.mxu0 %v3476
        %3503 = vmatprep.subr.mxu0 0.0
        %3504 = vmatpush1.msra.mxu0 %v3477
        %3505 = vmatprep.subr.mxu0 0.0
        %3506 = vmatpush1.msra.mxu0 %v3478
        %3507 = vmatprep.subr.mxu0 0.0
        %3508 = vmatpush1.msra.mxu0 %v3479
        %3509 = vmatprep.subr.mxu0 0.0
        %3510 = vmatpush1.msra.mxu0 %v3480
        %3511 = vmatprep.subr.mxu0 0.0
        %3512 = vmatpush1.msra.mxu0 %v3481
        %3513 = vmatprep.subr.mxu0 0.0
        %3514 = vmatpush1.msra.mxu0 %v3482
        %3515 = vmatprep.subr.mxu0 0.0
        %3516 = vmatpush1.msra.mxu0 0.0
        %3517 = vmatprep.subr.mxu0 0.0
        %3518 = vmatpush1.msra.mxu0 0.0
        %3519 = vmatprep.subr.mxu0 0.0
        %3520 = vmatpush1.msra.mxu0 0.0
        %3521 = vmatprep.subr.mxu0 0.0
        %3522 = vmatpush1.msra.mxu0 0.0
        %3523 = vmatprep.subr.mxu0 0.0
        %3524 = vmatpush1.msra.mxu0 0.0
        %3525 = vmatprep.subr.mxu0 0.0
        %3526 = vmatpush1.msra.mxu0 0.0
        %3527 = vmatprep.subr.mxu0 0.0
        %3528 = vmatpush1.msra.mxu0 0.0
        %3529 = vmatprep.subr.mxu0 0.0
        %3530 = vmatpush1.msra.mxu0 0.0
        %3531 = vmatprep.subr.mxu0 0.0
        %3532 = vmatpush1.msra.mxu0 0.0
        %3533 = vmatprep.subr.mxu0 0.0
        %3534 = vmatpush1.msra.mxu0 0.0
        %3535 = vmatprep.subr.mxu0 0.0
        %3536 = vmatpush1.msra.mxu0 0.0
        %3537 = vmatprep.subr.mxu0 0.0
        %3538 = vmatpush1.msra.mxu0 0.0
        %3539 = vmatprep.subr.mxu0 0.0
        %3540 = vmatpush1.msra.mxu0 0.0
        %3541 = vmatprep.subr.mxu0 0.0
        %3542 = vmatpush1.msra.mxu0 0.0
        %3543 = vmatprep.subr.mxu0 0.0
        %3544 = vmatpush1.msra.mxu0 0.0
        %3545 = vmatprep.subr.mxu0 0.0
        %3546 = vmatpush1.msra.mxu0 0.0
        %3547 = vmatprep.mubr.f32.mxu0 0.0
        %3548 = vmatmul.mubr.f32.gmra.mrb[0].mxu0 %v3450
        %v3549 = vpop.f32.mrb[0].mxu0
        %v3550 = vadd.f32 0.0, %v3549
        %v3551 = vpop.f32.mrb[0].mxu0
        %3552 = vmatprep.mubr.f32.mxu0 0.0
        %3553 = vmatmul.mubr.f32.gmra.mrb[0].mxu0 %v3451
        %v3554 = vpop.f32.mrb[0].mxu0
        %v3555 = vadd.f32 0.0, %v3554
        %v3556 = vpop.f32.mrb[0].mxu0
        %3557 = vmatprep.mubr.f32.mxu0 0.0
        %3558 = vmatmul.mubr.f32.gmra.mrb[0].mxu0 %v3452
        %v3559 = vpop.f32.mrb[0].mxu0
        %v3560 = vadd.f32 0.0, %v3559
        %v3561 = vpop.f32.mrb[0].mxu0
        %3562 = vmatprep.mubr.f32.mxu0 0.0
        %3563 = vmatmul.mubr.f32.gmra.mrb[0].mxu0 %v3453
        %v3564 = vpop.f32.mrb[0].mxu0
        %v3565 = vadd.f32 0.0, %v3564
        %v3566 = vpop.f32.mrb[0].mxu0
        %3567 = vmatprep.mubr.f32.mxu0 0.0
        %3568 = vmatmul.mubr.f32.gmra.mrb[0].mxu0 %v3454
        %v3569 = vpop.f32.mrb[0].mxu0
        %v3570 = vadd.f32 0.0, %v3569
        %v3571 = vpop.f32.mrb[0].mxu0
        %3572 = vmatprep.mubr.f32.mxu0 0.0
        %3573 = vmatmul.mubr.f32.gmra.mrb[0].mxu0 %v3455
        %v3574 = vpop.f32.mrb[0].mxu0
        %v3575 = vadd.f32 0.0, %v3574
        %v3576 = vpop.f32.mrb[0].mxu0
        %3577 = vmatprep.mubr.f32.mxu0 0.0
        %3578 = vmatmul.mubr.f32.gmra.mrb[0].mxu0 %v3456
        %v3579 = vpop.f32.mrb[0].mxu0
        %v3580 = vadd.f32 0.0, %v3579
        %v3581 = vpop.f32.mrb[0].mxu0
        %3582 = vmatprep.mubr.f32.mxu0 0.0
        %3583 = vmatmul.mubr.f32.gmra.mrb[0].mxu0 %v3457
        %v3584 = vpop.f32.mrb[0].mxu0
        %v3585 = vadd.f32 0.0, %v3584
        %v3586 = vpop.f32.mrb[0].mxu0
        %3587 = vmatprep.mubr.f32.mxu0 0.0
        %3588 = vmatmul.mubr.f32.gmra.mrb[0].mxu0 %v3458
        %v3589 = vpop.f32.mrb[0].mxu0
        %v3590 = vadd.f32 0.0, %v3589
        %v3591 = vpop.f32.mrb[0].mxu0
        %3592 = vmatprep.mubr.f32.mxu0 0.0
        %3593 = vmatmul.mubr.f32.gmra.mrb[0].mxu0 %v3459
        %v3594 = vpop.f32.mrb[0].mxu0
        %v3595 = vadd.f32 0.0, %v3594
        %v3596 = vpop.f32.mrb[0].mxu0
        %3597 = vmatprep.mubr.f32.mxu0 0.0
        %3598 = vmatmul.mubr.f32.gmra.mrb[0].mxu0 %v3460
        %v3599 = vpop.f32.mrb[0].mxu0
        %v3600 = vadd.f32 0.0, %v3599
        %v3601 = vpop.f32.mrb[0].mxu0
        %3602 = vmatprep.mubr.f32.mxu0 0.0
        %3603 = vmatmul.mubr.f32.gmra.mrb[0].mxu0 %v3461
        %v3604 = vpop.f32.mrb[0].mxu0
        %v3605 = vadd.f32 0.0, %v3604
        %v3606 = vpop.f32.mrb[0].mxu0
        %3607 = vmatprep.mubr.f32.mxu0 0.0
        %3608 = vmatmul.mubr.f32.gmra.mrb[0].mxu0 %v3462
        %v3609 = vpop.f32.mrb[0].mxu0
        %v3610 = vadd.f32 0.0, %v3609
        %v3611 = vpop.f32.mrb[0].mxu0
        %3612 = vmatprep.mubr.f32.mxu0 0.0
        %3613 = vmatmul.mubr.f32.gmra.mrb[0].mxu0 %v3463
        %v3614 = vpop.f32.mrb[0].mxu0
        %v3615 = vadd.f32 0.0, %v3614
        %v3616 = vpop.f32.mrb[0].mxu0
        %3617 = vmatprep.mubr.f32.mxu0 0.0
        %3618 = vmatmul.mubr.f32.gmra.mrb[0].mxu0 %v3464
        %v3619 = vpop.f32.mrb[0].mxu0
        %v3620 = vadd.f32 0.0, %v3619
        %v3621 = vpop.f32.mrb[0].mxu0
        %3622 = vmatprep.mubr.f32.mxu0 0.0
        %3623 = vmatmul.mubr.f32.gmra.mrb[0].mxu0 %v3465
        %v3624 = vpop.f32.mrb[0].mxu0
        %v3625 = vadd.f32 0.0, %v3624
        %v3626 = vpop.f32.mrb[0].mxu0
        %3627 = vdwg.mxu0
        %v3628 = vadd.f32 %v3434, %v3550
        %v3629 = vadd.f32 %v3435, %v3555
        %v3630 = vadd.f32 %v3436, %v3560
        %v3631 = vadd.f32 %v3437, %v3565
        %v3632 = vadd.f32 %v3438, %v3570
        %v3633 = vadd.f32 %v3439, %v3575
        %v3634 = vadd.f32 %v3440, %v3580
        %v3635 = vadd.f32 %v3441, %v3585
        %v3636 = vadd.f32 %v3442, %v3590
        %v3637 = vadd.f32 %v3443, %v3595
        %v3638 = vadd.f32 %v3444, %v3600
        %v3639 = vadd.f32 %v3445, %v3605
        %v3640 = vadd.f32 %v3446, %v3610
        %v3641 = vadd.f32 %v3447, %v3615
        %v3642 = vadd.f32 %v3448, %v3620
        %v3643 = vadd.f32 %v3449, %v3625
        %v3644 = vld [vmem:[#allocation2 + $0x28] sm:$0xff]
        %v3645 = vld [vmem:[#allocation2 + $0x30] sm:$0xff]
        %v3646 = vld [vmem:[#allocation2 + $0x38] sm:$0xff]
        %v3647 = vld [vmem:[#allocation2 + $0x40] sm:$0xff]
        %v3648 = vld [vmem:[#allocation2 + $0x48] sm:$0xff]
        %v3649 = vld [vmem:[#allocation2 + $0x50] sm:$0xff]
        %v3650 = vld [vmem:[#allocation2 + $0x58] sm:$0xff]
        %v3651 = vld [vmem:[#allocation2 + $0x60] sm:$0xff]
        %v3652 = vld [vmem:[#allocation2 + $0x68] sm:$0xff]
        %v3653 = vld [vmem:[#allocation2 + $0x70] sm:$0xff]
        %v3654 = vld [vmem:[#allocation2 + $0x78] sm:$0xff]
        %v3655 = vld [vmem:[#allocation2 + $0x80] sm:$0xff]
        %v3656 = vld [vmem:[#allocation2 + $0x88] sm:$0xff]
        %v3657 = vld [vmem:[#allocation2 + $0x90] sm:$0xff]
        %v3658 = vld [vmem:[#allocation2 + $0x98] sm:$0xff]
        %v3659 = vld [vmem:[#allocation2 + $0xa0] sm:$0xff]
        %s3660 = scalar_lea.vmem [#allocation8], 896
        %v3661 = vld [vmem:[%s3660] sm:$0xff]
        %v3662 = vld [vmem:[%s3660 + $0x8] sm:$0xff]
        %v3663 = vld [vmem:[%s3660 + $0x10] sm:$0xff]
        %v3664 = vld [vmem:[%s3660 + $0x18] sm:$0xff]
        %v3665 = vld [vmem:[%s3660 + $0x20] sm:$0xff]
        %v3666 = vld [vmem:[%s3660 + $0x28] sm:$0xff]
        %v3667 = vld [vmem:[%s3660 + $0x30] sm:$0xff]
        %v3668 = vld [vmem:[%s3660 + $0x38] sm:$0xff]
        %v3669 = vld [vmem:[%s3660 + $0x40] sm:$0xff]
        %v3670 = vld [vmem:[%s3660 + $0x48] sm:$0xff]
        %v3671 = vld [vmem:[%s3660 + $0x50] sm:$0xff]
        %v3672 = vld [vmem:[%s3660 + $0x58] sm:$0xff]
        %v3673 = vld [vmem:[%s3660 + $0x60] sm:$0xff]
        %v3674 = vld [vmem:[%s3660 + $0x68] sm:$0xff]
        %v3675 = vld [vmem:[%s3660 + $0x70] sm:$0xff]
        %v3676 = vld [vmem:[%s3660 + $0x78] sm:$0xff]
        %3677 = vmatprep.subr.mxu0 0.0
        %3678 = vmatpush1.msra.mxu0 %v3661
        %3679 = vmatprep.subr.mxu0 0.0
        %3680 = vmatpush1.msra.mxu0 %v3662
        %3681 = vmatprep.subr.mxu0 0.0
        %3682 = vmatpush1.msra.mxu0 %v3663
        %3683 = vmatprep.subr.mxu0 0.0
        %3684 = vmatpush1.msra.mxu0 %v3664
        %3685 = vmatprep.subr.mxu0 0.0
        %3686 = vmatpush1.msra.mxu0 %v3665
        %3687 = vmatprep.subr.mxu0 0.0
        %3688 = vmatpush1.msra.mxu0 %v3666
        %3689 = vmatprep.subr.mxu0 0.0
        %3690 = vmatpush1.msra.mxu0 %v3667
        %3691 = vmatprep.subr.mxu0 0.0
        %3692 = vmatpush1.msra.mxu0 %v3668
        %3693 = vmatprep.subr.mxu0 0.0
        %3694 = vmatpush1.msra.mxu0 %v3669
        %3695 = vmatprep.subr.mxu0 0.0
        %3696 = vmatpush1.msra.mxu0 %v3670
        %3697 = vmatprep.subr.mxu0 0.0
        %3698 = vmatpush1.msra.mxu0 %v3671
        %3699 = vmatprep.subr.mxu0 0.0
        %3700 = vmatpush1.msra.mxu0 %v3672
        %3701 = vmatprep.subr.mxu0 0.0
        %3702 = vmatpush1.msra.mxu0 %v3673
        %3703 = vmatprep.subr.mxu0 0.0
        %3704 = vmatpush1.msra.mxu0 %v3674
        %3705 = vmatprep.subr.mxu0 0.0
        %3706 = vmatpush1.msra.mxu0 %v3675
        %3707 = vmatprep.subr.mxu0 0.0
        %3708 = vmatpush1.msra.mxu0 %v3676
        %3709 = vmatprep.subr.mxu0 0.0
        %3710 = vmatpush1.msra.mxu0 0.0
        %3711 = vmatprep.subr.mxu0 0.0
        %3712 = vmatpush1.msra.mxu0 0.0
        %3713 = vmatprep.subr.mxu0 0.0
        %3714 = vmatpush1.msra.mxu0 0.0
        %3715 = vmatprep.subr.mxu0 0.0
        %3716 = vmatpush1.msra.mxu0 0.0
        %3717 = vmatprep.subr.mxu0 0.0
        %3718 = vmatpush1.msra.mxu0 0.0
        %3719 = vmatprep.subr.mxu0 0.0
        %3720 = vmatpush1.msra.mxu0 0.0
        %3721 = vmatprep.subr.mxu0 0.0
        %3722 = vmatpush1.msra.mxu0 0.0
        %3723 = vmatprep.subr.mxu0 0.0
        %3724 = vmatpush1.msra.mxu0 0.0
        %3725 = vmatprep.subr.mxu0 0.0
        %3726 = vmatpush1.msra.mxu0 0.0
        %3727 = vmatprep.subr.mxu0 0.0
        %3728 = vmatpush1.msra.mxu0 0.0
        %3729 = vmatprep.subr.mxu0 0.0
        %3730 = vmatpush1.msra.mxu0 0.0
        %3731 = vmatprep.subr.mxu0 0.0
        %3732 = vmatpush1.msra.mxu0 0.0
        %3733 = vmatprep.subr.mxu0 0.0
        %3734 = vmatpush1.msra.mxu0 0.0
        %3735 = vmatprep.subr.mxu0 0.0
        %3736 = vmatpush1.msra.mxu0 0.0
        %3737 = vmatprep.subr.mxu0 0.0
        %3738 = vmatpush1.msra.mxu0 0.0
        %3739 = vmatprep.subr.mxu0 0.0
        %3740 = vmatpush1.msra.mxu0 0.0
        %3741 = vmatprep.mubr.f32.mxu0 0.0
        %3742 = vmatmul.mubr.f32.gmra.mrb[0].mxu0 %v3644
        %v3743 = vpop.f32.mrb[0].mxu0
        %v3744 = vadd.f32 0.0, %v3743
        %v3745 = vpop.f32.mrb[0].mxu0
        %3746 = vmatprep.mubr.f32.mxu0 0.0
        %3747 = vmatmul.mubr.f32.gmra.mrb[0].mxu0 %v3645
        %v3748 = vpop.f32.mrb[0].mxu0
        %v3749 = vadd.f32 0.0, %v3748
        %v3750 = vpop.f32.mrb[0].mxu0
        %3751 = vmatprep.mubr.f32.mxu0 0.0
        %3752 = vmatmul.mubr.f32.gmra.mrb[0].mxu0 %v3646
        %v3753 = vpop.f32.mrb[0].mxu0
        %v3754 = vadd.f32 0.0, %v3753
        %v3755 = vpop.f32.mrb[0].mxu0
        %3756 = vmatprep.mubr.f32.mxu0 0.0
        %3757 = vmatmul.mubr.f32.gmra.mrb[0].mxu0 %v3647
        %v3758 = vpop.f32.mrb[0].mxu0
        %v3759 = vadd.f32 0.0, %v3758
        %v3760 = vpop.f32.mrb[0].mxu0
        %3761 = vmatprep.mubr.f32.mxu0 0.0
        %3762 = vmatmul.mubr.f32.gmra.mrb[0].mxu0 %v3648
        %v3763 = vpop.f32.mrb[0].mxu0
        %v3764 = vadd.f32 0.0, %v3763
        %v3765 = vpop.f32.mrb[0].mxu0
        %3766 = vmatprep.mubr.f32.mxu0 0.0
        %3767 = vmatmul.mubr.f32.gmra.mrb[0].mxu0 %v3649
        %v3768 = vpop.f32.mrb[0].mxu0
        %v3769 = vadd.f32 0.0, %v3768
        %v3770 = vpop.f32.mrb[0].mxu0
        %3771 = vmatprep.mubr.f32.mxu0 0.0
        %3772 = vmatmul.mubr.f32.gmra.mrb[0].mxu0 %v3650
        %v3773 = vpop.f32.mrb[0].mxu0
        %v3774 = vadd.f32 0.0, %v3773
        %v3775 = vpop.f32.mrb[0].mxu0
        %3776 = vmatprep.mubr.f32.mxu0 0.0
        %3777 = vmatmul.mubr.f32.gmra.mrb[0].mxu0 %v3651
        %v3778 = vpop.f32.mrb[0].mxu0
        %v3779 = vadd.f32 0.0, %v3778
        %v3780 = vpop.f32.mrb[0].mxu0
        %3781 = vmatprep.mubr.f32.mxu0 0.0
        %3782 = vmatmul.mubr.f32.gmra.mrb[0].mxu0 %v3652
        %v3783 = vpop.f32.mrb[0].mxu0
        %v3784 = vadd.f32 0.0, %v3783
        %v3785 = vpop.f32.mrb[0].mxu0
        %3786 = vmatprep.mubr.f32.mxu0 0.0
        %3787 = vmatmul.mubr.f32.gmra.mrb[0].mxu0 %v3653
        %v3788 = vpop.f32.mrb[0].mxu0
        %v3789 = vadd.f32 0.0, %v3788
        %v3790 = vpop.f32.mrb[0].mxu0
        %3791 = vmatprep.mubr.f32.mxu0 0.0
        %3792 = vmatmul.mubr.f32.gmra.mrb[0].mxu0 %v3654
        %v3793 = vpop.f32.mrb[0].mxu0
        %v3794 = vadd.f32 0.0, %v3793
        %v3795 = vpop.f32.mrb[0].mxu0
        %3796 = vmatprep.mubr.f32.mxu0 0.0
        %3797 = vmatmul.mubr.f32.gmra.mrb[0].mxu0 %v3655
        %v3798 = vpop.f32.mrb[0].mxu0
        %v3799 = vadd.f32 0.0, %v3798
        %v3800 = vpop.f32.mrb[0].mxu0
        %3801 = vmatprep.mubr.f32.mxu0 0.0
        %3802 = vmatmul.mubr.f32.gmra.mrb[0].mxu0 %v3656
        %v3803 = vpop.f32.mrb[0].mxu0
        %v3804 = vadd.f32 0.0, %v3803
        %v3805 = vpop.f32.mrb[0].mxu0
        %3806 = vmatprep.mubr.f32.mxu0 0.0
        %3807 = vmatmul.mubr.f32.gmra.mrb[0].mxu0 %v3657
        %v3808 = vpop.f32.mrb[0].mxu0
        %v3809 = vadd.f32 0.0, %v3808
        %v3810 = vpop.f32.mrb[0].mxu0
        %3811 = vmatprep.mubr.f32.mxu0 0.0
        %3812 = vmatmul.mubr.f32.gmra.mrb[0].mxu0 %v3658
        %v3813 = vpop.f32.mrb[0].mxu0
        %v3814 = vadd.f32 0.0, %v3813
        %v3815 = vpop.f32.mrb[0].mxu0
        %3816 = vmatprep.mubr.f32.mxu0 0.0
        %3817 = vmatmul.mubr.f32.gmra.mrb[0].mxu0 %v3659
        %v3818 = vpop.f32.mrb[0].mxu0
        %v3819 = vadd.f32 0.0, %v3818
        %v3820 = vpop.f32.mrb[0].mxu0
        %3821 = vdwg.mxu0
        %v3822 = vadd.f32 %v3628, %v3744
        %v3823 = vadd.f32 %v3629, %v3749
        %v3824 = vadd.f32 %v3630, %v3754
        %v3825 = vadd.f32 %v3631, %v3759
        %v3826 = vadd.f32 %v3632, %v3764
        %v3827 = vadd.f32 %v3633, %v3769
        %v3828 = vadd.f32 %v3634, %v3774
        %v3829 = vadd.f32 %v3635, %v3779
        %v3830 = vadd.f32 %v3636, %v3784
        %v3831 = vadd.f32 %v3637, %v3789
        %v3832 = vadd.f32 %v3638, %v3794
        %v3833 = vadd.f32 %v3639, %v3799
        %v3834 = vadd.f32 %v3640, %v3804
        %v3835 = vadd.f32 %v3641, %v3809
        %v3836 = vadd.f32 %v3642, %v3814
        %v3837 = vadd.f32 %v3643, %v3819
        %v3838 = vld [vmem:[#allocation2 + $0x29] sm:$0xff]
        %v3839 = vld [vmem:[#allocation2 + $0x31] sm:$0xff]
        %v3840 = vld [vmem:[#allocation2 + $0x39] sm:$0xff]
        %v3841 = vld [vmem:[#allocation2 + $0x41] sm:$0xff]
        %v3842 = vld [vmem:[#allocation2 + $0x49] sm:$0xff]
        %v3843 = vld [vmem:[#allocation2 + $0x51] sm:$0xff]
        %v3844 = vld [vmem:[#allocation2 + $0x59] sm:$0xff]
        %v3845 = vld [vmem:[#allocation2 + $0x61] sm:$0xff]
        %v3846 = vld [vmem:[#allocation2 + $0x69] sm:$0xff]
        %v3847 = vld [vmem:[#allocation2 + $0x71] sm:$0xff]
        %v3848 = vld [vmem:[#allocation2 + $0x79] sm:$0xff]
        %v3849 = vld [vmem:[#allocation2 + $0x81] sm:$0xff]
        %v3850 = vld [vmem:[#allocation2 + $0x89] sm:$0xff]
        %v3851 = vld [vmem:[#allocation2 + $0x91] sm:$0xff]
        %v3852 = vld [vmem:[#allocation2 + $0x99] sm:$0xff]
        %v3853 = vld [vmem:[#allocation2 + $0xa1] sm:$0xff]
        %s3854 = scalar_lea.vmem [#allocation8], 1024
        %v3855 = vld [vmem:[%s3854] sm:$0xff]
        %v3856 = vld [vmem:[%s3854 + $0x8] sm:$0xff]
        %v3857 = vld [vmem:[%s3854 + $0x10] sm:$0xff]
        %v3858 = vld [vmem:[%s3854 + $0x18] sm:$0xff]
        %v3859 = vld [vmem:[%s3854 + $0x20] sm:$0xff]
        %v3860 = vld [vmem:[%s3854 + $0x28] sm:$0xff]
        %v3861 = vld [vmem:[%s3854 + $0x30] sm:$0xff]
        %v3862 = vld [vmem:[%s3854 + $0x38] sm:$0xff]
        %v3863 = vld [vmem:[%s3854 + $0x40] sm:$0xff]
        %v3864 = vld [vmem:[%s3854 + $0x48] sm:$0xff]
        %v3865 = vld [vmem:[%s3854 + $0x50] sm:$0xff]
        %v3866 = vld [vmem:[%s3854 + $0x58] sm:$0xff]
        %v3867 = vld [vmem:[%s3854 + $0x60] sm:$0xff]
        %v3868 = vld [vmem:[%s3854 + $0x68] sm:$0xff]
        %v3869 = vld [vmem:[%s3854 + $0x70] sm:$0xff]
        %v3870 = vld [vmem:[%s3854 + $0x78] sm:$0xff]
        %3871 = vmatprep.subr.mxu0 0.0
        %3872 = vmatpush1.msra.mxu0 %v3855
        %3873 = vmatprep.subr.mxu0 0.0
        %3874 = vmatpush1.msra.mxu0 %v3856
        %3875 = vmatprep.subr.mxu0 0.0
        %3876 = vmatpush1.msra.mxu0 %v3857
        %3877 = vmatprep.subr.mxu0 0.0
        %3878 = vmatpush1.msra.mxu0 %v3858
        %3879 = vmatprep.subr.mxu0 0.0
        %3880 = vmatpush1.msra.mxu0 %v3859
        %3881 = vmatprep.subr.mxu0 0.0
        %3882 = vmatpush1.msra.mxu0 %v3860
        %3883 = vmatprep.subr.mxu0 0.0
        %3884 = vmatpush1.msra.mxu0 %v3861
        %3885 = vmatprep.subr.mxu0 0.0
        %3886 = vmatpush1.msra.mxu0 %v3862
        %3887 = vmatprep.subr.mxu0 0.0
        %3888 = vmatpush1.msra.mxu0 %v3863
        %3889 = vmatprep.subr.mxu0 0.0
        %3890 = vmatpush1.msra.mxu0 %v3864
        %3891 = vmatprep.subr.mxu0 0.0
        %3892 = vmatpush1.msra.mxu0 %v3865
        %3893 = vmatprep.subr.mxu0 0.0
        %3894 = vmatpush1.msra.mxu0 %v3866
        %3895 = vmatprep.subr.mxu0 0.0
        %3896 = vmatpush1.msra.mxu0 %v3867
        %3897 = vmatprep.subr.mxu0 0.0
        %3898 = vmatpush1.msra.mxu0 %v3868
        %3899 = vmatprep.subr.mxu0 0.0
        %3900 = vmatpush1.msra.mxu0 %v3869
        %3901 = vmatprep.subr.mxu0 0.0
        %3902 = vmatpush1.msra.mxu0 %v3870
        %3903 = vmatprep.subr.mxu0 0.0
        %3904 = vmatpush1.msra.mxu0 0.0
        %3905 = vmatprep.subr.mxu0 0.0
        %3906 = vmatpush1.msra.mxu0 0.0
        %3907 = vmatprep.subr.mxu0 0.0
        %3908 = vmatpush1.msra.mxu0 0.0
        %3909 = vmatprep.subr.mxu0 0.0
        %3910 = vmatpush1.msra.mxu0 0.0
        %3911 = vmatprep.subr.mxu0 0.0
        %3912 = vmatpush1.msra.mxu0 0.0
        %3913 = vmatprep.subr.mxu0 0.0
        %3914 = vmatpush1.msra.mxu0 0.0
        %3915 = vmatprep.subr.mxu0 0.0
        %3916 = vmatpush1.msra.mxu0 0.0
        %3917 = vmatprep.subr.mxu0 0.0
        %3918 = vmatpush1.msra.mxu0 0.0
        %3919 = vmatprep.subr.mxu0 0.0
        %3920 = vmatpush1.msra.mxu0 0.0
        %3921 = vmatprep.subr.mxu0 0.0
        %3922 = vmatpush1.msra.mxu0 0.0
        %3923 = vmatprep.subr.mxu0 0.0
        %3924 = vmatpush1.msra.mxu0 0.0
        %3925 = vmatprep.subr.mxu0 0.0
        %3926 = vmatpush1.msra.mxu0 0.0
        %3927 = vmatprep.subr.mxu0 0.0
        %3928 = vmatpush1.msra.mxu0 0.0
        %3929 = vmatprep.subr.mxu0 0.0
        %3930 = vmatpush1.msra.mxu0 0.0
        %3931 = vmatprep.subr.mxu0 0.0
        %3932 = vmatpush1.msra.mxu0 0.0
        %3933 = vmatprep.subr.mxu0 0.0
        %3934 = vmatpush1.msra.mxu0 0.0
        %3935 = vmatprep.mubr.f32.mxu0 0.0
        %3936 = vmatmul.mubr.f32.gmra.mrb[0].mxu0 %v3838
        %v3937 = vpop.f32.mrb[0].mxu0
        %v3938 = vadd.f32 0.0, %v3937
        %v3939 = vpop.f32.mrb[0].mxu0
        %3940 = vmatprep.mubr.f32.mxu0 0.0
        %3941 = vmatmul.mubr.f32.gmra.mrb[0].mxu0 %v3839
        %v3942 = vpop.f32.mrb[0].mxu0
        %v3943 = vadd.f32 0.0, %v3942
        %v3944 = vpop.f32.mrb[0].mxu0
        %3945 = vmatprep.mubr.f32.mxu0 0.0
        %3946 = vmatmul.mubr.f32.gmra.mrb[0].mxu0 %v3840
        %v3947 = vpop.f32.mrb[0].mxu0
        %v3948 = vadd.f32 0.0, %v3947
        %v3949 = vpop.f32.mrb[0].mxu0
        %3950 = vmatprep.mubr.f32.mxu0 0.0
        %3951 = vmatmul.mubr.f32.gmra.mrb[0].mxu0 %v3841
        %v3952 = vpop.f32.mrb[0].mxu0
        %v3953 = vadd.f32 0.0, %v3952
        %v3954 = vpop.f32.mrb[0].mxu0
        %3955 = vmatprep.mubr.f32.mxu0 0.0
        %3956 = vmatmul.mubr.f32.gmra.mrb[0].mxu0 %v3842
        %v3957 = vpop.f32.mrb[0].mxu0
        %v3958 = vadd.f32 0.0, %v3957
        %v3959 = vpop.f32.mrb[0].mxu0
        %3960 = vmatprep.mubr.f32.mxu0 0.0
        %3961 = vmatmul.mubr.f32.gmra.mrb[0].mxu0 %v3843
        %v3962 = vpop.f32.mrb[0].mxu0
        %v3963 = vadd.f32 0.0, %v3962
        %v3964 = vpop.f32.mrb[0].mxu0
        %3965 = vmatprep.mubr.f32.mxu0 0.0
        %3966 = vmatmul.mubr.f32.gmra.mrb[0].mxu0 %v3844
        %v3967 = vpop.f32.mrb[0].mxu0
        %v3968 = vadd.f32 0.0, %v3967
        %v3969 = vpop.f32.mrb[0].mxu0
        %3970 = vmatprep.mubr.f32.mxu0 0.0
        %3971 = vmatmul.mubr.f32.gmra.mrb[0].mxu0 %v3845
        %v3972 = vpop.f32.mrb[0].mxu0
        %v3973 = vadd.f32 0.0, %v3972
        %v3974 = vpop.f32.mrb[0].mxu0
        %3975 = vmatprep.mubr.f32.mxu0 0.0
        %3976 = vmatmul.mubr.f32.gmra.mrb[0].mxu0 %v3846
        %v3977 = vpop.f32.mrb[0].mxu0
        %v3978 = vadd.f32 0.0, %v3977
        %v3979 = vpop.f32.mrb[0].mxu0
        %3980 = vmatprep.mubr.f32.mxu0 0.0
        %3981 = vmatmul.mubr.f32.gmra.mrb[0].mxu0 %v3847
        %v3982 = vpop.f32.mrb[0].mxu0
        %v3983 = vadd.f32 0.0, %v3982
        %v3984 = vpop.f32.mrb[0].mxu0
        %3985 = vmatprep.mubr.f32.mxu0 0.0
        %3986 = vmatmul.mubr.f32.gmra.mrb[0].mxu0 %v3848
        %v3987 = vpop.f32.mrb[0].mxu0
        %v3988 = vadd.f32 0.0, %v3987
        %v3989 = vpop.f32.mrb[0].mxu0
        %3990 = vmatprep.mubr.f32.mxu0 0.0
        %3991 = vmatmul.mubr.f32.gmra.mrb[0].mxu0 %v3849
        %v3992 = vpop.f32.mrb[0].mxu0
        %v3993 = vadd.f32 0.0, %v3992
        %v3994 = vpop.f32.mrb[0].mxu0
        %3995 = vmatprep.mubr.f32.mxu0 0.0
        %3996 = vmatmul.mubr.f32.gmra.mrb[0].mxu0 %v3850
        %v3997 = vpop.f32.mrb[0].mxu0
        %v3998 = vadd.f32 0.0, %v3997
        %v3999 = vpop.f32.mrb[0].mxu0
        %4000 = vmatprep.mubr.f32.mxu0 0.0
        %4001 = vmatmul.mubr.f32.gmra.mrb[0].mxu0 %v3851
        %v4002 = vpop.f32.mrb[0].mxu0
        %v4003 = vadd.f32 0.0, %v4002
        %v4004 = vpop.f32.mrb[0].mxu0
        %4005 = vmatprep.mubr.f32.mxu0 0.0
        %4006 = vmatmul.mubr.f32.gmra.mrb[0].mxu0 %v3852
        %v4007 = vpop.f32.mrb[0].mxu0
        %v4008 = vadd.f32 0.0, %v4007
        %v4009 = vpop.f32.mrb[0].mxu0
        %4010 = vmatprep.mubr.f32.mxu0 0.0
        %4011 = vmatmul.mubr.f32.gmra.mrb[0].mxu0 %v3853
        %v4012 = vpop.f32.mrb[0].mxu0
        %v4013 = vadd.f32 0.0, %v4012
        %v4014 = vpop.f32.mrb[0].mxu0
        %4015 = vdwg.mxu0
        %v4016 = vadd.f32 %v3822, %v3938
        %v4017 = vadd.f32 %v3823, %v3943
        %v4018 = vadd.f32 %v3824, %v3948
        %v4019 = vadd.f32 %v3825, %v3953
        %v4020 = vadd.f32 %v3826, %v3958
        %v4021 = vadd.f32 %v3827, %v3963
        %v4022 = vadd.f32 %v3828, %v3968
        %v4023 = vadd.f32 %v3829, %v3973
        %v4024 = vadd.f32 %v3830, %v3978
        %v4025 = vadd.f32 %v3831, %v3983
        %v4026 = vadd.f32 %v3832, %v3988
        %v4027 = vadd.f32 %v3833, %v3993
        %v4028 = vadd.f32 %v3834, %v3998
        %v4029 = vadd.f32 %v3835, %v4003
        %v4030 = vadd.f32 %v3836, %v4008
        %v4031 = vadd.f32 %v3837, %v4013
        %v4032 = vld [vmem:[%s4] sm:$0x1]
        %v4034 = vlaneseq
        %v4035 = vshrl.u32 %v4034, 7
        %v4036 = vsub.s32 0, %v4035
        %v4037 = vrot.slane %v4032, %v4036
        %v4039 = vadd.f32 %v4016, %v4037
        %v4040 = vadd.f32 %v4017, %v4037
        %v4041 = vadd.f32 %v4018, %v4037
        %v4042 = vadd.f32 %v4019, %v4037
        %v4043 = vadd.f32 %v4020, %v4037
        %v4044 = vadd.f32 %v4021, %v4037
        %v4045 = vadd.f32 %v4022, %v4037
        %v4046 = vadd.f32 %v4023, %v4037
        %v4047 = vadd.f32 %v4024, %v4037
        %v4048 = vadd.f32 %v4025, %v4037
        %v4049 = vadd.f32 %v4026, %v4037
        %v4050 = vadd.f32 %v4027, %v4037
        %v4051 = vadd.f32 %v4028, %v4037
        %v4052 = vadd.f32 %v4029, %v4037
        %v4053 = vadd.f32 %v4030, %v4037
        %v4054 = vadd.f32 %v4031, %v4037
        %v4055 = vmax.f32 %v4039, 0.0
        %v4056 = vmax.f32 %v4040, 0.0
        %v4057 = vmax.f32 %v4041, 0.0
        %v4058 = vmax.f32 %v4042, 0.0
        %v4059 = vmax.f32 %v4043, 0.0
        %v4060 = vmax.f32 %v4044, 0.0
        %v4061 = vmax.f32 %v4045, 0.0
        %v4062 = vmax.f32 %v4046, 0.0
        %v4063 = vmax.f32 %v4047, 0.0
        %v4064 = vmax.f32 %v4048, 0.0
        %v4065 = vmax.f32 %v4049, 0.0
        %v4066 = vmax.f32 %v4050, 0.0
        %v4067 = vmax.f32 %v4051, 0.0
        %v4068 = vmax.f32 %v4052, 0.0
        %v4069 = vmax.f32 %v4053, 0.0
        %v4070 = vmax.f32 %v4054, 0.0
        %4071 = vst [vmem:[%s271] sm:$0xff] %v4055
        %4072 = vst [vmem:[%s271 + $0x8] sm:$0xff] %v4056
        %4073 = vst [vmem:[%s271 + $0x10] sm:$0xff] %v4057
        %4074 = vst [vmem:[%s271 + $0x18] sm:$0xff] %v4058
        %4075 = vst [vmem:[%s271 + $0x20] sm:$0xff] %v4059
        %4076 = vst [vmem:[%s271 + $0x28] sm:$0xff] %v4060
        %4077 = vst [vmem:[%s271 + $0x30] sm:$0xff] %v4061
        %4078 = vst [vmem:[%s271 + $0x38] sm:$0xff] %v4062
        %4079 = vst [vmem:[%s271 + $0x40] sm:$0xff] %v4063
        %4080 = vst [vmem:[%s271 + $0x48] sm:$0xff] %v4064
        %4081 = vst [vmem:[%s271 + $0x50] sm:$0xff] %v4065
        %4082 = vst [vmem:[%s271 + $0x58] sm:$0xff] %v4066
        %4083 = vst [vmem:[%s271 + $0x60] sm:$0xff] %v4067
        %4084 = vst [vmem:[%s271 + $0x68] sm:$0xff] %v4068
        %4085 = vst [vmem:[%s271 + $0x70] sm:$0xff] %v4069
        %4086 = vst [vmem:[%s271 + $0x78] sm:$0xff] %v4070
        %s4087 = sand.u32 %s141, 1
        %s4088 = scalar_lea.sflag [#allocation5], %s4087
        %s4089 = sand.u32 %s141, 1
        %s4090 = smul.addr %s4089, 128
        %s4091 = scalar_lea.vmem [#allocation9], %s4090
        // Predicated region
        $region53: #{tpu_custom_call.1} parent=39 // pred_check
          %p4092 = pneg %p151
        $region54: #{tpu_custom_call.1} parent=39 // pred_check_branch
          %4094 = sbr.rel (%p4092) target = $region56
        $region55: #{tpu_custom_call.1} parent=39 // pred_region
          %s4096 = ssub.s32 2048, 2048
          %4097 = vsyncadd %s4088, %s4096
          %s4098 = smul.addr %s23, 16
          %s4099 = smul.addr %s4098, 128
          %s4100 = scalar_lea.hbm %s5, %s4099
          %s4101 = sshll.u32 %s4091, 4
          %s4102 = int_to_ptr.vmem [resolvable:$true] %s4101
          %4107 = dma.vmem_to_hbm [thread:$0]  %s4102, 2048, %s4100, %s4088, 128, 128, 8
        $region56: #{tpu_custom_call.1} parent=39 // pred_fallthru
          _
      $region40: #{tpu_custom_call.1} parent=5 // pred_fallthru
        _
      %p4108 = scmp.le.s32.totalorder 2, %s18
      // Predicated region
      $region57: #{tpu_custom_call.1} parent=5 // pred_check
        %p4109 = pneg %p4108
      $region58: #{tpu_custom_call.1} parent=5 // pred_check_branch
        %4111 = sbr.rel (%p4109) target = $region60
      $region59: #{tpu_custom_call.1} parent=5 // pred_region
        %s4112 = ssub.s32 %s18, 2
        // Predicated region
        $region61: #{tpu_custom_call.1} parent=59 // pred_check
          %p4113 = pneg %p157
        $region62: #{tpu_custom_call.1} parent=59 // pred_check_branch
          %4115 = sbr.rel (%p4113) target = $region64
        $region63: #{tpu_custom_call.1} parent=59 // pred_region
          %s4116 = sand.u32 %s142, 1
          %s4117 = scalar_lea.sflag [#allocation5], %s4116
          %s4118 = sand.u32 %s142, 1
          %s4119 = smul.addr %s4118, 128
          %s4120 = scalar_lea.vmem [#allocation9], %s4119
          %4121 = dma.done %s4117, 2048
        $region64: #{tpu_custom_call.1} parent=59 // pred_fallthru
          _
      $region60: #{tpu_custom_call.1} parent=5 // pred_fallthru
        _
    $region6: #{tpu_custom_call.1} parent=1 // loop_footer
      %s22 = sadd.s32 1, %s18
    $region7: #{tpu_custom_call.1} parent=1 // loop_footer_branch
      %17 = sbr.rel target = $region3
    $region8: #{tpu_custom_call.1} parent=1 // loop_exit
      _
    %4122 = vsyncpa [#allocation4], 1
    %s4123 = scalar_lea.sflag [#allocation4], 1
    %4124 = vsyncpa %s4123, 1
    %4125 = vsyncpa [#allocation7], 1
    %4126 = vsyncpa [#allocation5], 1
    %s4127 = scalar_lea.sflag [#allocation5], 1
    %4128 = vsyncpa %s4127, 1

</llo_original>
